<compile_context>
chip_gen: v7x
topology: tpu7x:2x2x1
jax: 0.10.0
libtpu: 0.0.40
codegen_flags: <defaults>
</compile_context>

<pallas_src>
import functools

import jax
import jax.numpy as jnp
from jax.experimental import pallas as pl
from jax.experimental.pallas import tpu as pltpu


# ----------------------------- in-kernel helpers -----------------------------
def _sigmoid_fast(x):
    # exp() and the approximate reciprocal both go to the EUP slot.
    return pl.reciprocal(1.0 + jnp.exp(-x), approx=True)


def _swish_fast(x):
    return x * _sigmoid_fast(x)


# --------------------------------- kernel ------------------------------------
def mbconv_kernel(x_ref, w_exp_ref, taps_ref, se_red_ref, mid_ref,
                  w_proj_ref, pool_ref, bcast_ref, o_ref,
                  *, H, W, Cin, Cmid, Csq, K, id_skip):
    pad = (K - 1) // 2
    center = pad * K + pad
    N = x_ref.shape[1]                      # bblk * H * W lanes (lane-dense)

    x_aug = x_ref[...]                      # (Cin+1, N): channels + ones row

    # ---- 1x1 expand conv + BN0 + swish (MXU, f32 acc) -----------------------
    # BN0 scale folded into the weights; BN0 bias rides the constant-ones row.
    xe = jnp.dot(w_exp_ref[...], x_aug, preferred_element_type=jnp.float32)
    xe = _swish_fast(xe)                    # (Cmid, N)

    # ---- depthwise KxK conv, "same" padding, stride 1 (in-vreg rolls) -------
    # taps_ref[t] (Cmid, N) already carries the BN1 scale, the per-tap boundary
    # mask (which also kills cross-image leakage from the batched-lane roll)
    # and the lane broadcast: one XLU roll + one VPU multiply-add per tap.
    acc = xe * taps_ref[center]
    for t in range(K * K):
        if t == center:
            continue
        di, dj = divmod(t, K)
        off = (di - pad) * W + (dj - pad)
        # roll semantics: out[i] = in[(i + off) mod N]; masked taps guarantee
        # no in-bounds lane ever reads across an image boundary (|off| < H*W).
        shifted = pltpu.roll(xe, (-off) % N, axis=1)
        acc = acc + shifted * taps_ref[t]
    xd = _swish_fast(acc + taps_ref[K * K])          # + pre-broadcast BN1 bias

    # ---- squeeze & excitation ------------------------------------------------
    # Per-image mean pool / per-image gate broadcast via block-diagonal
    # indicator matmuls (no sublane<->lane relayout); 1/HW folded into pool_ref.
    pooled = jnp.dot(xd, pool_ref[...],
                     preferred_element_type=jnp.float32)          # (Cmid, bblk)
    sq = jnp.dot(se_red_ref[:, :Cmid], pooled,
                 preferred_element_type=jnp.float32) + se_red_ref[:, Cmid:Cmid + 1]
    sq = _swish_fast(sq)                                          # (Csq, bblk)
    ex = jnp.dot(mid_ref[:, 1:1 + Csq], sq,
                 preferred_element_type=jnp.float32) + mid_ref[:, 0:1]
    gate = _sigmoid_fast(ex)                                      # (Cmid, bblk)
    xd = xd * jnp.dot(gate, bcast_ref[...],
                      preferred_element_type=jnp.float32)         # (Cmid, N)

    # ---- 1x1 project conv + BN2 bias + identity skip (MXU, f32 acc) ---------
    out = jnp.dot(w_proj_ref[:, :Cmid], xd,
                  preferred_element_type=jnp.float32) + w_proj_ref[:, Cmid:Cmid + 1]
    if id_skip:
        # id_skip and stride == 1 and input_filters == output_filters;
        # drop_connect_rate is None -> no drop connect (matches forward()).
        out = out + x_aug[:Cin, :]
    o_ref[...] = out.astype(o_ref.dtype)     # lane-dense, unmasked vst


# --------------------------------- wrapper -----------------------------------
def mbconv_block(x, params, *, kernel_size=3, id_skip=True, bblk_max=8):
    """x: (B, Cin, H, W) float32 (NCHW, like PyTorch). Returns (B, Cout, H, W)."""
    B, Cin, H, W = x.shape
    Cmid = params["w_exp"].shape[1]
    Csq = params["w_ser"].shape[1]
    Cout = params["w_proj"].shape[1]
    K = kernel_size
    HW = H * W
    pad_ = (K - 1) // 2

    # TODO(synk): pad HW up to a lane multiple for general spatial sizes
    #             (e.g. 14x14=196); only multiples of 128 are handled here.
    assert HW % 128 == 0, "H*W must be a multiple of 128 lanes"

    # Images per grid step.  Keep >= 2 grid steps when B >= 2 so v7x's two
    # TensorCores both get work; bblk_max ~ 8 keeps the pre-broadcast tap slab
    # (and its double buffer) comfortably inside v7x's 64 MiB VMEM.
    bblk = max(1, min(bblk_max, (B + 1) // 2)) if B > 1 else 1
    nblk = (B + bblk - 1) // bblk
    Bpad = nblk * bblk
    N = bblk * HW
    f32 = jnp.float32

    # ---- one-time parameter transforms (BN folding, packing, layouts) -------
    # Expand conv: (Cmid, Cin) with BN0 scale folded, BN0 bias as extra column.
    w_exp_aug = jnp.concatenate(
        [(params["w_exp"] * params["bn0_s"]).T,
         params["bn0_b"].reshape(Cmid, 1)], axis=1).astype(f32)   # (Cmid, Cin+1)

    # Depthwise taps: BN1 scale folded, per-tap "same"-padding boundary mask
    # baked in, broadcast over (Cmid, HW) and tiled over the bblk images in the
    # lane axis.  Slot K*K holds the pre-broadcast BN1 bias.
    flat = jnp.arange(HW)
    h_idx, w_idx = flat // W, flat % W
    masks = []
    for di in range(K):
        for dj in range(K):
            m = jnp.ones((HW,), bool)
            if di < pad_:
                m = m & (h_idx >= pad_ - di)
            if di > pad_:
                m = m & (h_idx < H - (di - pad_))
            if dj < pad_:
                m = m & (w_idx >= pad_ - dj)
            if dj > pad_:
                m = m & (w_idx < W - (dj - pad_))
            masks.append(m)
    mask = jnp.stack(masks).astype(f32)                            # (K*K, HW)
    tap_w = (params["w_dw"] * params["bn1_s"]).astype(f32)         # (K*K, Cmid)
    taps_hw = tap_w[:, :, None] * mask[:, None, :]                 # (K*K, Cmid, HW)
    bn1_b_hw = jnp.broadcast_to(params["bn1_b"].reshape(Cmid, 1),
                                (Cmid, HW))[None]                  # (1, Cmid, HW)
    taps_big = jnp.tile(jnp.concatenate([taps_hw, bn1_b_hw], axis=0),
                        (1, 1, bblk)).astype(f32)                  # (K*K+1, Cmid, N)

    # SE weights (1/HW pooling scale folded into the reduce weights).
    se_red = jnp.concatenate(
        [params["w_ser"].T * (1.0 / HW),
         params["b_ser"].reshape(Csq, 1)], axis=1).astype(f32)     # (Csq, Cmid+1)
    mid_mat = jnp.concatenate(
        [params["b_see"].reshape(Cmid, 1),
         params["w_see"].T], axis=1).astype(f32)                   # (Cmid, 1+Csq)

    # Project conv: BN2 scale folded, BN2 bias as extra column.
    w_proj_aug = jnp.concatenate(
        [(params["w_proj"] * params["bn2_s"]).T,
         params["bn2_b"].reshape(Cout, 1)], axis=1).astype(f32)    # (Cout, Cmid+1)

    # Block-diagonal indicator matrices for per-image pooling / gate broadcast.
    img_id = jnp.arange(N) // HW
    pool_mat = (img_id[:, None] == jnp.arange(bblk)[None, :]).astype(f32)  # (N, bblk)
    bcast_mat = (jnp.arange(bblk)[:, None] == img_id[None, :]).astype(f32)  # (bblk, N)

    const_params = (w_exp_aug, taps_big, se_red, mid_mat, w_proj_aug,
                    pool_mat, bcast_mat)

    # ---- activation layout: (Cin+1, Bpad*HW), channels-on-sublane -----------
    x_cn = jnp.transpose(x, (1, 0, 2, 3)).reshape(Cin, B, HW)
    if Bpad != B:
        x_cn = jnp.pad(x_cn, ((0, 0), (0, Bpad - B), (0, 0)))
    x_flat = x_cn.reshape(Cin, Bpad * HW).astype(f32)
    x_aug = jnp.concatenate([x_flat, jnp.ones((1, Bpad * HW), f32)], axis=0)

    def full_spec(a):
        nd = a.ndim
        return pl.BlockSpec(a.shape, lambda i, _nd=nd: (0,) * _nd)

    kernel = functools.partial(
        mbconv_kernel,
        H=H, W=W, Cin=Cin, Cmid=Cmid, Csq=Csq, K=K,
        id_skip=(id_skip and Cin == Cout))

    out_flat = pl.pallas_call(
        kernel,
        out_shape=jax.ShapeDtypeStruct((Cout, Bpad * HW), x.dtype),
        grid_spec=pltpu.PrefetchScalarGridSpec(
            num_scalar_prefetch=0,
            grid=(nblk,),
            in_specs=[pl.BlockSpec((Cin + 1, N), lambda i: (0, i))]
                     + [full_spec(p) for p in const_params],
            out_specs=pl.BlockSpec((Cout, N), lambda i: (0, i)),
        ),
        compiler_params=pltpu.CompilerParams(
            # Batch blocks are independent -> shard across v7x's 2 TensorCores.
            dimension_semantics=("parallel",),
            vmem_limit_bytes=32 * 1024 * 1024,
        ),
    )(x_aug, *const_params)

    out = out_flat.reshape(Cout, Bpad, H, W).transpose(1, 0, 2, 3)[:B]
    return out


# ------------------------------ pure-JAX reference ---------------------------
def _swish_ref(x):
    return x * jax.nn.sigmoid(x)


def mbconv_ref(x, p, *, kernel_size=3, id_skip=True):
    """Pure-JAX f32 reference (NCHW, inference-mode BN)."""
    B, Cin, H, W = x.shape
    K = kernel_size
    pad = (K - 1) // 2

    def sc(v):                                   # (1, C) -> (1, C, 1, 1)
        return v.reshape(1, -1, 1, 1)

    xe = jnp.einsum("bchw,cd->bdhw", x, p["w_exp"])
    xe = _swish_ref(xe * sc(p["bn0_s"]) + sc(p["bn0_b"]))
    xp = jnp.pad(xe, ((0, 0), (0, 0), (pad, pad), (pad, pad)))
    acc = jnp.zeros_like(xe)
    for di in range(K):
        for dj in range(K):
            acc = acc + xp[:, :, di:di + H, dj:dj + W] * sc(p["w_dw"][di * K + dj])
    xd = _swish_ref(acc * sc(p["bn1_s"]) + sc(p["bn1_b"]))
    pooled = jnp.mean(xd, axis=(2, 3))                           # (B, Cmid)
    sq = _swish_ref(pooled @ p["w_ser"] + p["b_ser"])            # (B, Csq)
    ex = sq @ p["w_see"] + p["b_see"]                            # (B, Cmid)
    xd = xd * jax.nn.sigmoid(ex)[:, :, None, None]
    out = jnp.einsum("bchw,cd->bdhw", xd, p["w_proj"]) * sc(p["bn2_s"]) + sc(p["bn2_b"])
    if id_skip and Cin == out.shape[1]:
        out = out + x
    return out


def make_params(key, Cin, Cout, expand_ratio, se_ratio, K, eps=1e-3):
    Cmid = Cin * expand_ratio
    Csq = max(1, int(Cin * se_ratio))
    ks = jax.random.split(key, 20)

    def rnd(k, shape, scale=0.1):
        return (scale * jax.random.normal(k, shape)).astype(jnp.float32)

    def bn_fold(kg, kb, km, kv, C):
        gamma = 1.0 + rnd(kg, (1, C))
        beta = rnd(kb, (1, C))
        mean = rnd(km, (1, C))
        var = 1.0 + jnp.abs(rnd(kv, (1, C)))
        scale = gamma / jnp.sqrt(var + eps)
        bias = beta - mean * scale
        return scale.astype(jnp.float32), bias.astype(jnp.float32)

    bn0_s, bn0_b = bn_fold(ks[1], ks[2], ks[3], ks[4], Cmid)
    bn1_s, bn1_b = bn_fold(ks[6], ks[7], ks[8], ks[9], Cmid)
    bn2_s, bn2_b = bn_fold(ks[15], ks[16], ks[17], ks[18], Cout)

    return {
        "w_exp": rnd(ks[0], (Cin, Cmid)),          # 1x1 expand conv, no bias
        "bn0_s": bn0_s, "bn0_b": bn0_b,
        "w_dw": rnd(ks[5], (K * K, Cmid)),         # depthwise taps, (k*k, C)
        "bn1_s": bn1_s, "bn1_b": bn1_b,
        "w_ser": rnd(ks[10], (Cmid, Csq)),         # SE reduce (with bias)
        "b_ser": rnd(ks[11], (1, Csq)),
        "w_see": rnd(ks[12], (Csq, Cmid)),         # SE expand (with bias)
        "b_see": rnd(ks[13], (1, Cmid)),
        "w_proj": rnd(ks[14], (Cmid, Cout)),       # 1x1 project conv, no bias
        "bn2_s": bn2_s, "bn2_b": bn2_b,
    }


if __name__ == "__main__":
    # Small but structurally faithful MBConv block (identity-skip path).
    # B=8 with bblk=4 exercises the batched-lane layout and a 2-step grid.
    B, H, W = 8, 16, 16
    Cin, Cout = 8, 8
    expand_ratio, se_ratio, K = 6, 0.25, 3

    key = jax.random.PRNGKey(0)
    kx, kp = jax.random.split(key)
    x = jax.random.normal(kx, (B, Cin, H, W), dtype=jnp.float32)
    params = make_params(kp, Cin, Cout, expand_ratio, se_ratio, K)

    out = mbconv_block(x, params, kernel_size=K, id_skip=True)
    out = jax.block_until_ready(out)

    ref = jax.block_until_ready(mbconv_ref(x, params, kernel_size=K, id_skip=True))
    assert out.shape == (B, Cout, H, W)
    assert bool(jnp.all(jnp.isfinite(out)))
    # approx-EUP sigmoid + MXU accumulation vs pure-f32 reference -> small tol.
    assert jnp.allclose(out, ref, atol=5e-2, rtol=5e-2), (
        float(jnp.max(jnp.abs(out - ref))))

    print("KERNEL_OK")
</pallas_src>

<mosaic_0001>
module attributes {stable_mosaic.version = 11 : i64} {
  func.func @mbconv_kernel(%arg0: i32, %arg1: memref<9x1024xf32, #tpu.memory_space<vmem>>, %arg2: memref<48x9xf32, #tpu.memory_space<vmem>>, %arg3: memref<10x48x1024xf32, #tpu.memory_space<vmem>>, %arg4: memref<2x49xf32, #tpu.memory_space<vmem>>, %arg5: memref<48x3xf32, #tpu.memory_space<vmem>>, %arg6: memref<8x49xf32, #tpu.memory_space<vmem>>, %arg7: memref<1024x4xf32, #tpu.memory_space<vmem>>, %arg8: memref<4x1024xf32, #tpu.memory_space<vmem>>, %arg9: memref<8x1024xf32, #tpu.memory_space<vmem>>) attributes {dimension_semantics = [#tpu.dimension_semantics<parallel>], iteration_bounds = array<i64: 2>, scalar_prefetch = 0 : i64, scratch_operands = 0 : i64, tpu.core_type = #tpu.core_type<tc>, window_params = [{transform_indices = @transform_0, window_bounds = array<i64: 9, 1024>}, {pipeline_mode = #tpu.pipeline_mode<synchronous>, transform_indices = @transform_1, window_bounds = array<i64: 48, 9>}, {pipeline_mode = #tpu.pipeline_mode<synchronous>, transform_indices = @transform_2, window_bounds = array<i64: 10, 48, 1024>}, {pipeline_mode = #tpu.pipeline_mode<synchronous>, transform_indices = @transform_3, window_bounds = array<i64: 2, 49>}, {pipeline_mode = #tpu.pipeline_mode<synchronous>, transform_indices = @transform_4, window_bounds = array<i64: 48, 3>}, {pipeline_mode = #tpu.pipeline_mode<synchronous>, transform_indices = @transform_5, window_bounds = array<i64: 8, 49>}, {pipeline_mode = #tpu.pipeline_mode<synchronous>, transform_indices = @transform_6, window_bounds = array<i64: 1024, 4>}, {pipeline_mode = #tpu.pipeline_mode<synchronous>, transform_indices = @transform_7, window_bounds = array<i64: 4, 1024>}, {transform_indices = @transform_8, window_bounds = array<i64: 8, 1024>}]} {
    %c0 = arith.constant 0 : index
    %c0_0 = arith.constant 0 : index
    %0 = vector.load %arg1[%c0, %c0_0] : memref<9x1024xf32, #tpu.memory_space<vmem>>, vector<9x1024xf32>
    %c0_1 = arith.constant 0 : index
    %c0_2 = arith.constant 0 : index
    %1 = vector.load %arg2[%c0_1, %c0_2] : memref<48x9xf32, #tpu.memory_space<vmem>>, vector<48x9xf32>
    %cst = arith.constant dense<0.000000e+00> : vector<48x1024xf32>
    %2 = tpu.matmul %1, %0, %cst {dimension_numbers = #tpu.dot_dimension_numbers<[1], [0], [0], [1], [0, 0, 1, 1], [], []>} : vector<48x9xf32>, vector<9x1024xf32>, vector<48x1024xf32> -> vector<48x1024xf32>
    %cst_3 = arith.constant 0.000000e+00 : f32
    %3 = vector.broadcast %cst_3 : f32 to vector<48x1024xf32>
    %4 = arith.subf %3, %2 : vector<48x1024xf32>
    %5 = math.exp %4 : vector<48x1024xf32>
    %cst_4 = arith.constant 1.000000e+00 : f32
    %6 = vector.broadcast %cst_4 : f32 to vector<48x1024xf32>
    %7 = arith.addf %6, %5 : vector<48x1024xf32>
    %8 = tpu.reciprocal %7 {approx = true} : vector<48x1024xf32> -> vector<48x1024xf32>
    %9 = arith.mulf %2, %8 : vector<48x1024xf32>
    %c4 = arith.constant 4 : index
    %c0_5 = arith.constant 0 : index
    %c0_6 = arith.constant 0 : index
    %10 = vector.load %arg3[%c4, %c0_5, %c0_6] : memref<10x48x1024xf32, #tpu.memory_space<vmem>>, vector<1x48x1024xf32>
    %11 = vector.shape_cast %10 : vector<1x48x1024xf32> to vector<48x1024xf32>
    %12 = arith.mulf %9, %11 : vector<48x1024xf32>
    %c17_i32 = arith.constant 17 : i32
    %13 = tpu.dynamic_rotate %9 by %c17_i32 dim 1 : vector<48x1024xf32>, i32 -> vector<48x1024xf32>
    %c0_7 = arith.constant 0 : index
    %c0_8 = arith.constant 0 : index
    %c0_9 = arith.constant 0 : index
    %14 = vector.load %arg3[%c0_7, %c0_8, %c0_9] : memref<10x48x1024xf32, #tpu.memory_space<vmem>>, vector<1x48x1024xf32>
    %15 = vector.shape_cast %14 : vector<1x48x1024xf32> to vector<48x1024xf32>
    %16 = arith.mulf %13, %15 : vector<48x1024xf32>
    %17 = arith.addf %12, %16 : vector<48x1024xf32>
    %c16_i32 = arith.constant 16 : i32
    %18 = tpu.dynamic_rotate %9 by %c16_i32 dim 1 : vector<48x1024xf32>, i32 -> vector<48x1024xf32>
    %c1 = arith.constant 1 : index
    %c0_10 = arith.constant 0 : index
    %c0_11 = arith.constant 0 : index
    %19 = vector.load %arg3[%c1, %c0_10, %c0_11] : memref<10x48x1024xf32, #tpu.memory_space<vmem>>, vector<1x48x1024xf32>
    %20 = vector.shape_cast %19 : vector<1x48x1024xf32> to vector<48x1024xf32>
    %21 = arith.mulf %18, %20 : vector<48x1024xf32>
    %22 = arith.addf %17, %21 : vector<48x1024xf32>
    %c15_i32 = arith.constant 15 : i32
    %23 = tpu.dynamic_rotate %9 by %c15_i32 dim 1 : vector<48x1024xf32>, i32 -> vector<48x1024xf32>
    %c2 = arith.constant 2 : index
    %c0_12 = arith.constant 0 : index
    %c0_13 = arith.constant 0 : index
    %24 = vector.load %arg3[%c2, %c0_12, %c0_13] : memref<10x48x1024xf32, #tpu.memory_space<vmem>>, vector<1x48x1024xf32>
    %25 = vector.shape_cast %24 : vector<1x48x1024xf32> to vector<48x1024xf32>
    %26 = arith.mulf %23, %25 : vector<48x1024xf32>
    %27 = arith.addf %22, %26 : vector<48x1024xf32>
    %c1_i32 = arith.constant 1 : i32
    %28 = tpu.dynamic_rotate %9 by %c1_i32 dim 1 : vector<48x1024xf32>, i32 -> vector<48x1024xf32>
    %c3 = arith.constant 3 : index
    %c0_14 = arith.constant 0 : index
    %c0_15 = arith.constant 0 : index
    %29 = vector.load %arg3[%c3, %c0_14, %c0_15] : memref<10x48x1024xf32, #tpu.memory_space<vmem>>, vector<1x48x1024xf32>
    %30 = vector.shape_cast %29 : vector<1x48x1024xf32> to vector<48x1024xf32>
    %31 = arith.mulf %28, %30 : vector<48x1024xf32>
    %32 = arith.addf %27, %31 : vector<48x1024xf32>
    %c1023_i32 = arith.constant 1023 : i32
    %33 = tpu.dynamic_rotate %9 by %c1023_i32 dim 1 : vector<48x1024xf32>, i32 -> vector<48x1024xf32>
    %c5 = arith.constant 5 : index
    %c0_16 = arith.constant 0 : index
    %c0_17 = arith.constant 0 : index
    %34 = vector.load %arg3[%c5, %c0_16, %c0_17] : memref<10x48x1024xf32, #tpu.memory_space<vmem>>, vector<1x48x1024xf32>
    %35 = vector.shape_cast %34 : vector<1x48x1024xf32> to vector<48x1024xf32>
    %36 = arith.mulf %33, %35 : vector<48x1024xf32>
    %37 = arith.addf %32, %36 : vector<48x1024xf32>
    %c1009_i32 = arith.constant 1009 : i32
    %38 = tpu.dynamic_rotate %9 by %c1009_i32 dim 1 : vector<48x1024xf32>, i32 -> vector<48x1024xf32>
    %c6 = arith.constant 6 : index
    %c0_18 = arith.constant 0 : index
    %c0_19 = arith.constant 0 : index
    %39 = vector.load %arg3[%c6, %c0_18, %c0_19] : memref<10x48x1024xf32, #tpu.memory_space<vmem>>, vector<1x48x1024xf32>
    %40 = vector.shape_cast %39 : vector<1x48x1024xf32> to vector<48x1024xf32>
    %41 = arith.mulf %38, %40 : vector<48x1024xf32>
    %42 = arith.addf %37, %41 : vector<48x1024xf32>
    %c1008_i32 = arith.constant 1008 : i32
    %43 = tpu.dynamic_rotate %9 by %c1008_i32 dim 1 : vector<48x1024xf32>, i32 -> vector<48x1024xf32>
    %c7 = arith.constant 7 : index
    %c0_20 = arith.constant 0 : index
    %c0_21 = arith.constant 0 : index
    %44 = vector.load %arg3[%c7, %c0_20, %c0_21] : memref<10x48x1024xf32, #tpu.memory_space<vmem>>, vector<1x48x1024xf32>
    %45 = vector.shape_cast %44 : vector<1x48x1024xf32> to vector<48x1024xf32>
    %46 = arith.mulf %43, %45 : vector<48x1024xf32>
    %47 = arith.addf %42, %46 : vector<48x1024xf32>
    %c1007_i32 = arith.constant 1007 : i32
    %48 = tpu.dynamic_rotate %9 by %c1007_i32 dim 1 : vector<48x1024xf32>, i32 -> vector<48x1024xf32>
    %c8 = arith.constant 8 : index
    %c0_22 = arith.constant 0 : index
    %c0_23 = arith.constant 0 : index
    %49 = vector.load %arg3[%c8, %c0_22, %c0_23] : memref<10x48x1024xf32, #tpu.memory_space<vmem>>, vector<1x48x1024xf32>
    %50 = vector.shape_cast %49 : vector<1x48x1024xf32> to vector<48x1024xf32>
    %51 = arith.mulf %48, %50 : vector<48x1024xf32>
    %52 = arith.addf %47, %51 : vector<48x1024xf32>
    %c9 = arith.constant 9 : index
    %c0_24 = arith.constant 0 : index
    %c0_25 = arith.constant 0 : index
    %53 = vector.load %arg3[%c9, %c0_24, %c0_25] : memref<10x48x1024xf32, #tpu.memory_space<vmem>>, vector<1x48x1024xf32>
    %54 = vector.shape_cast %53 : vector<1x48x1024xf32> to vector<48x1024xf32>
    %55 = arith.addf %52, %54 : vector<48x1024xf32>
    %cst_26 = arith.constant 0.000000e+00 : f32
    %56 = vector.broadcast %cst_26 : f32 to vector<48x1024xf32>
    %57 = arith.subf %56, %55 : vector<48x1024xf32>
    %58 = math.exp %57 : vector<48x1024xf32>
    %cst_27 = arith.constant 1.000000e+00 : f32
    %59 = vector.broadcast %cst_27 : f32 to vector<48x1024xf32>
    %60 = arith.addf %59, %58 : vector<48x1024xf32>
    %61 = tpu.reciprocal %60 {approx = true} : vector<48x1024xf32> -> vector<48x1024xf32>
    %62 = arith.mulf %55, %61 : vector<48x1024xf32>
    %c0_28 = arith.constant 0 : index
    %c0_29 = arith.constant 0 : index
    %63 = vector.load %arg7[%c0_28, %c0_29] : memref<1024x4xf32, #tpu.memory_space<vmem>>, vector<1024x4xf32>
    %cst_30 = arith.constant dense<0.000000e+00> : vector<48x4xf32>
    %64 = tpu.matmul %62, %63, %cst_30 {dimension_numbers = #tpu.dot_dimension_numbers<[1], [0], [0], [1], [0, 0, 1, 1], [], []>} : vector<48x1024xf32>, vector<1024x4xf32>, vector<48x4xf32> -> vector<48x4xf32>
    %c0_31 = arith.constant 0 : index
    %c0_32 = arith.constant 0 : index
    %65 = vector.load %arg4[%c0_31, %c0_32] : memref<2x49xf32, #tpu.memory_space<vmem>>, vector<2x48xf32>
    %cst_33 = arith.constant dense<0.000000e+00> : vector<2x4xf32>
    %66 = tpu.matmul %65, %64, %cst_33 {dimension_numbers = #tpu.dot_dimension_numbers<[1], [0], [0], [1], [0, 0, 1, 1], [], []>} : vector<2x48xf32>, vector<48x4xf32>, vector<2x4xf32> -> vector<2x4xf32>
    %c0_34 = arith.constant 0 : index
    %c48 = arith.constant 48 : index
    %67 = vector.load %arg4[%c0_34, %c48] : memref<2x49xf32, #tpu.memory_space<vmem>>, vector<2x1xf32>
    %68 = vector.broadcast %67 : vector<2x1xf32> to vector<2x4xf32>
    %69 = arith.addf %66, %68 : vector<2x4xf32>
    %cst_35 = arith.constant 0.000000e+00 : f32
    %70 = vector.broadcast %cst_35 : f32 to vector<2x4xf32>
    %71 = arith.subf %70, %69 : vector<2x4xf32>
    %72 = math.exp %71 : vector<2x4xf32>
    %cst_36 = arith.constant 1.000000e+00 : f32
    %73 = vector.broadcast %cst_36 : f32 to vector<2x4xf32>
    %74 = arith.addf %73, %72 : vector<2x4xf32>
    %75 = tpu.reciprocal %74 {approx = true} : vector<2x4xf32> -> vector<2x4xf32>
    %76 = arith.mulf %69, %75 : vector<2x4xf32>
    %c0_37 = arith.constant 0 : index
    %c1_38 = arith.constant 1 : index
    %77 = vector.load %arg5[%c0_37, %c1_38] : memref<48x3xf32, #tpu.memory_space<vmem>>, vector<48x2xf32>
    %cst_39 = arith.constant dense<0.000000e+00> : vector<48x4xf32>
    %78 = tpu.matmul %77, %76, %cst_39 {dimension_numbers = #tpu.dot_dimension_numbers<[1], [0], [0], [1], [0, 0, 1, 1], [], []>} : vector<48x2xf32>, vector<2x4xf32>, vector<48x4xf32> -> vector<48x4xf32>
    %c0_40 = arith.constant 0 : index
    %c0_41 = arith.constant 0 : index
    %79 = vector.load %arg5[%c0_40, %c0_41] : memref<48x3xf32, #tpu.memory_space<vmem>>, vector<48x1xf32>
    %80 = vector.broadcast %79 : vector<48x1xf32> to vector<48x4xf32>
    %81 = arith.addf %78, %80 : vector<48x4xf32>
    %cst_42 = arith.constant 0.000000e+00 : f32
    %82 = vector.broadcast %cst_42 : f32 to vector<48x4xf32>
    %83 = arith.subf %82, %81 : vector<48x4xf32>
    %84 = math.exp %83 : vector<48x4xf32>
    %cst_43 = arith.constant 1.000000e+00 : f32
    %85 = vector.broadcast %cst_43 : f32 to vector<48x4xf32>
    %86 = arith.addf %85, %84 : vector<48x4xf32>
    %87 = tpu.reciprocal %86 {approx = true} : vector<48x4xf32> -> vector<48x4xf32>
    %c0_44 = arith.constant 0 : index
    %c0_45 = arith.constant 0 : index
    %88 = vector.load %arg8[%c0_44, %c0_45] : memref<4x1024xf32, #tpu.memory_space<vmem>>, vector<4x1024xf32>
    %cst_46 = arith.constant dense<0.000000e+00> : vector<48x1024xf32>
    %89 = tpu.matmul %87, %88, %cst_46 {dimension_numbers = #tpu.dot_dimension_numbers<[1], [0], [0], [1], [0, 0, 1, 1], [], []>} : vector<48x4xf32>, vector<4x1024xf32>, vector<48x1024xf32> -> vector<48x1024xf32>
    %90 = arith.mulf %62, %89 : vector<48x1024xf32>
    %c0_47 = arith.constant 0 : index
    %c0_48 = arith.constant 0 : index
    %91 = vector.load %arg6[%c0_47, %c0_48] : memref<8x49xf32, #tpu.memory_space<vmem>>, vector<8x48xf32>
    %cst_49 = arith.constant dense<0.000000e+00> : vector<8x1024xf32>
    %92 = tpu.matmul %91, %90, %cst_49 {dimension_numbers = #tpu.dot_dimension_numbers<[1], [0], [0], [1], [0, 0, 1, 1], [], []>} : vector<8x48xf32>, vector<48x1024xf32>, vector<8x1024xf32> -> vector<8x1024xf32>
    %c0_50 = arith.constant 0 : index
    %c48_51 = arith.constant 48 : index
    %93 = vector.load %arg6[%c0_50, %c48_51] : memref<8x49xf32, #tpu.memory_space<vmem>>, vector<8x1xf32>
    %94 = vector.broadcast %93 : vector<8x1xf32> to vector<8x1024xf32>
    %95 = arith.addf %92, %94 : vector<8x1024xf32>
    %96 = vector.extract_strided_slice %0 {offsets = [0, 0], sizes = [8, 1024], strides = [1, 1]} : vector<9x1024xf32> to vector<8x1024xf32>
    %97 = arith.addf %95, %96 : vector<8x1024xf32>
    %c0_52 = arith.constant 0 : index
    %c0_53 = arith.constant 0 : index
    %98 = vector.load %arg9[%c0_52, %c0_53] : memref<8x1024xf32, #tpu.memory_space<vmem>>, vector<8x1024xf32>
    tpu.vector_store %arg9[%c0_52, %c0_53], %97 {strides = array<i32>} : memref<8x1024xf32, #tpu.memory_space<vmem>>, vector<8x1024xf32>,
    return
  }
  func.func @transform_0(%arg0: i32) -> (i32, i32) {
    %c0_i32 = arith.constant 0 : i32
    %c0_i32_0 = arith.constant 0 : i32
    return %c0_i32, %arg0 : i32, i32
  }
  func.func @transform_1(%arg0: i32) -> (i32, i32) {
    %c0_i32 = arith.constant 0 : i32
    %c0_i32_0 = arith.constant 0 : i32
    %c0_i32_1 = arith.constant 0 : i32
    return %c0_i32, %c0_i32_0 : i32, i32
  }
  func.func @transform_2(%arg0: i32) -> (i32, i32, i32) {
    %c0_i32 = arith.constant 0 : i32
    %c0_i32_0 = arith.constant 0 : i32
    %c0_i32_1 = arith.constant 0 : i32
    %c0_i32_2 = arith.constant 0 : i32
    return %c0_i32, %c0_i32_0, %c0_i32_1 : i32, i32, i32
  }
  func.func @transform_3(%arg0: i32) -> (i32, i32) {
    %c0_i32 = arith.constant 0 : i32
    %c0_i32_0 = arith.constant 0 : i32
    %c0_i32_1 = arith.constant 0 : i32
    return %c0_i32, %c0_i32_0 : i32, i32
  }
  func.func @transform_4(%arg0: i32) -> (i32, i32) {
    %c0_i32 = arith.constant 0 : i32
    %c0_i32_0 = arith.constant 0 : i32
    %c0_i32_1 = arith.constant 0 : i32
    return %c0_i32, %c0_i32_0 : i32, i32
  }
  func.func @transform_5(%arg0: i32) -> (i32, i32) {
    %c0_i32 = arith.constant 0 : i32
    %c0_i32_0 = arith.constant 0 : i32
    %c0_i32_1 = arith.constant 0 : i32
    return %c0_i32, %c0_i32_0 : i32, i32
  }
  func.func @transform_6(%arg0: i32) -> (i32, i32) {
    %c0_i32 = arith.constant 0 : i32
    %c0_i32_0 = arith.constant 0 : i32
    %c0_i32_1 = arith.constant 0 : i32
    return %c0_i32, %c0_i32_0 : i32, i32
  }
  func.func @transform_7(%arg0: i32) -> (i32, i32) {
    %c0_i32 = arith.constant 0 : i32
    %c0_i32_0 = arith.constant 0 : i32
    %c0_i32_1 = arith.constant 0 : i32
    return %c0_i32, %c0_i32_0 : i32, i32
  }
  func.func @transform_8(%arg0: i32) -> (i32, i32) {
    %c0_i32 = arith.constant 0 : i32
    %c0_i32_0 = arith.constant 0 : i32
    return %c0_i32, %arg0 : i32, i32
  }
}

</mosaic_0001>

<llo_original>
// kernel: tpu_custom_call.1
$region0: #{tpu_custom_call.1}
  #allocation0 [shape = 'u32[]', space=smem, size = 0x4, offset = 0x4, fixed_abs, tag = 'smem constant byte address 0x4 - core index']
  #allocation1 [shape = 'u32[144,128]{1,0:T(1,128)}', space=vmem, size = 0x12000, scoped, tag = 'internal scratch']
  %s0 = inlined_call_operand.hbm [shape: f32[9,2048], index: 0, kind: input, shape index: {}]
  %s1 = inlined_call_operand.vmem [shape: f32[48,9], index: 1, kind: input, shape index: {}]
  %s2 = inlined_call_operand.hbm [shape: f32[10,48,1024], index: 2, kind: input, shape index: {}]
  %s3 = inlined_call_operand.hbm [shape: f32[2,49], index: 3, kind: input, shape index: {}]
  %s4 = inlined_call_operand.vmem [shape: f32[48,3], index: 4, kind: input, shape index: {}]
  %s5 = inlined_call_operand.hbm [shape: f32[8,49], index: 5, kind: input, shape index: {}]
  %s6 = inlined_call_operand.vmem [shape: f32[1024,4], index: 6, kind: input, shape index: {}]
  %s7 = inlined_call_operand.hbm [shape: f32[4,1024], index: 7, kind: input, shape index: {}]
  %s8 = inlined_call_operand.hbm [shape: f32[8,2048], index: 8, kind: output, shape index: {}]
  %s9 = sld [smem:[#allocation0]]
  $region85: #{tpu_custom_call.1} parent=0
    _
  %s11 = ssub.s32 1, %s9
  %s12 = scalar_select 0, %s11, %s9
  $region1: #{tpu_custom_call.1} parent=0
    #allocation2 [shape = 'u8[131072]{0}', space=vmem, size = 0x20000, scoped, tag = 'input window, operand 0']
    #allocation3 [shape = 's32[2]{0}', space=sflag, size = 0x8, scoped, tag = 'scoped memory for tpu_custom_call.1']
    #allocation4 [shape = 's32[2]{0}', space=sflag, size = 0x8, scoped, tag = 'scoped memory for tpu_custom_call.1']
    #allocation5 [shape = 'u8[1966080]{0}', space=vmem, size = 0x1e0000, scoped, tag = 'input window, operand 2, single buffered']
    #allocation6 [shape = 's32[1]{0}', space=sflag, size = 0x4, scoped, tag = 'scoped memory for tpu_custom_call.1']
    #allocation7 [shape = 'u8[1024]{0}', space=vmem, size = 0x400, scoped, tag = 'input window, operand 3, single buffered']
    #allocation8 [shape = 'u8[4096]{0}', space=vmem, size = 0x1000, scoped, tag = 'input window, operand 5, single buffered']
    #allocation9 [shape = 's32[1]{0}', space=sflag, size = 0x4, scoped, tag = 'scoped memory for tpu_custom_call.1']
    #allocation10 [shape = 'u8[16384]{0}', space=vmem, size = 0x4000, scoped, tag = 'input window, operand 7, single buffered']
    #allocation11 [shape = 'u8[65536]{0}', space=vmem, size = 0x10000, scoped, tag = 'output window, operand 0']
    %13 = vsyncpa [#allocation3], 0
    %s14 = scalar_lea.sflag [#allocation3], 1
    %15 = vsyncpa %s14, 0
    %16 = vsyncpa [#allocation6], 0
    %17 = vsyncpa [#allocation9], 0
    %18 = vsyncpa [#allocation4], 0
    %s19 = scalar_lea.sflag [#allocation4], 1
    %20 = vsyncpa %s19, 0
    loop: start=0, step=1, limit=4
    $region2: #{tpu_custom_call.1} parent=1 // loop_pre_header
      _
    $region3: #{tpu_custom_call.1} parent=1 // loop_header
      %s22 = sphi 0, %s26
      %p23 = scmp.ge.s32.totalorder %s22, 4
      %s32 = sphi 0, %s34
      %s35 = sphi 0, %s32
      %s36 = sphi 0, %s35
      %s52 = sphi 0, %s36
      %s56 = sphi 0, %s56
      %s58 = sphi 0, %s56
      %s59 = sphi 0, %s58
      %s73 = sphi 0, %s59
      %s77 = sphi 0, %s77
      %s79 = sphi 0, %s77
      %s80 = sphi 0, %s79
      %s94 = sphi 0, %s80
      %s98 = sphi 0, %s98
      %s100 = sphi 0, %s98
      %s101 = sphi 0, %s100
      %s115 = sphi 0, %s101
      %s119 = sphi 0, %s119
      %s121 = sphi 0, %s119
      %s122 = sphi 0, %s121
      %s136 = sphi 0, %s122
      %s140 = sphi 0, %s140
      %s142 = sphi 0, %s140
      %s143 = sphi 0, %s142
      %s157 = sphi 0, %s143
      %s161 = sphi 0, %s161
      %s163 = sphi 0, %s161
      %s164 = sphi 0, %s163
      %s178 = sphi 0, %s164
      %s182 = sphi 0, %s182
      %s184 = sphi 0, %s182
      %s185 = sphi 0, %s184
      %s199 = sphi 0, %s185
      %s205 = sphi 0, %s207
      %s208 = sphi 0, %s205
      %s209 = sphi 0, %s208
      %s225 = sphi 0, %s209
    $region4: #{tpu_custom_call.1} parent=1 // loop_header_branch
      %25 = sbr.rel (%p23) target = $region8
    $region5: #{tpu_custom_call.1} parent=1 // loop_body
      %s27 = ssub.s32 %s22, 1
      %s28 = ssub.s32 %s22, 2
      %s29 = sadd.s32 %s22, 1
      %s30 = ssub.s32 %s22, %s29
      %p31 = scmp.eq.s32.totalorder %s30, 0
      %s33 = sadd.s32 %s32, 1
      %s34 = scalar_select %p31, %s32, %s33
      %p37 = pneg %p31
      %p38 = scmp.eq.s32.totalorder %s22, 1
      %p39 = por %p37, %p38
      %p40 = scmp.ne.s32.totalorder %s32, %s35
      %p41 = scmp.eq.s32.totalorder %s22, 0
      %p42 = por %p40, %p41
      %p43 = scmp.ne.s32.totalorder %s32, %s35
      %p44 = scmp.eq.s32.totalorder %s27, 1
      %p45 = por %p43, %p44
      %p46 = scmp.ne.s32.totalorder %s35, %s36
      %p47 = scmp.eq.s32.totalorder %s27, 0
      %p48 = por %p46, %p47
      %p49 = scmp.ne.s32.totalorder %s35, %s36
      %p50 = scmp.eq.s32.totalorder %s28, 1
      %p51 = por %p49, %p50
      %p53 = scmp.ne.s32.totalorder %s36, %s52
      %p54 = scmp.eq.s32.totalorder %s28, 0
      %p55 = por %p53, %p54
      %s57 = sadd.s32 %s56, 1
      %p60 = scmp.eq.s32.totalorder %s22, 1
      %p61 = scmp.ne.s32.totalorder %s56, %s58
      %p62 = scmp.eq.s32.totalorder %s22, 0
      %p63 = por %p61, %p62
      %p64 = scmp.ne.s32.totalorder %s56, %s58
      %p65 = scmp.eq.s32.totalorder %s27, 1
      %p66 = por %p64, %p65
      %p67 = scmp.ne.s32.totalorder %s58, %s59
      %p68 = scmp.eq.s32.totalorder %s27, 0
      %p69 = por %p67, %p68
      %p70 = scmp.ne.s32.totalorder %s58, %s59
      %p71 = scmp.eq.s32.totalorder %s28, 1
      %p72 = por %p70, %p71
      %p74 = scmp.ne.s32.totalorder %s59, %s73
      %p75 = scmp.eq.s32.totalorder %s28, 0
      %p76 = por %p74, %p75
      %s78 = sadd.s32 %s77, 1
      %p81 = scmp.eq.s32.totalorder %s22, 1
      %p82 = scmp.ne.s32.totalorder %s77, %s79
      %p83 = scmp.eq.s32.totalorder %s22, 0
      %p84 = por %p82, %p83
      %p85 = scmp.ne.s32.totalorder %s77, %s79
      %p86 = scmp.eq.s32.totalorder %s27, 1
      %p87 = por %p85, %p86
      %p88 = scmp.ne.s32.totalorder %s79, %s80
      %p89 = scmp.eq.s32.totalorder %s27, 0
      %p90 = por %p88, %p89
      %p91 = scmp.ne.s32.totalorder %s79, %s80
      %p92 = scmp.eq.s32.totalorder %s28, 1
      %p93 = por %p91, %p92
      %p95 = scmp.ne.s32.totalorder %s80, %s94
      %p96 = scmp.eq.s32.totalorder %s28, 0
      %p97 = por %p95, %p96
      %s99 = sadd.s32 %s98, 1
      %p102 = scmp.eq.s32.totalorder %s22, 1
      %p103 = scmp.ne.s32.totalorder %s98, %s100
      %p104 = scmp.eq.s32.totalorder %s22, 0
      %p105 = por %p103, %p104
      %p106 = scmp.ne.s32.totalorder %s98, %s100
      %p107 = scmp.eq.s32.totalorder %s27, 1
      %p108 = por %p106, %p107
      %p109 = scmp.ne.s32.totalorder %s100, %s101
      %p110 = scmp.eq.s32.totalorder %s27, 0
      %p111 = por %p109, %p110
      %p112 = scmp.ne.s32.totalorder %s100, %s101
      %p113 = scmp.eq.s32.totalorder %s28, 1
      %p114 = por %p112, %p113
      %p116 = scmp.ne.s32.totalorder %s101, %s115
      %p117 = scmp.eq.s32.totalorder %s28, 0
      %p118 = por %p116, %p117
      %s120 = sadd.s32 %s119, 1
      %p123 = scmp.eq.s32.totalorder %s22, 1
      %p124 = scmp.ne.s32.totalorder %s119, %s121
      %p125 = scmp.eq.s32.totalorder %s22, 0
      %p126 = por %p124, %p125
      %p127 = scmp.ne.s32.totalorder %s119, %s121
      %p128 = scmp.eq.s32.totalorder %s27, 1
      %p129 = por %p127, %p128
      %p130 = scmp.ne.s32.totalorder %s121, %s122
      %p131 = scmp.eq.s32.totalorder %s27, 0
      %p132 = por %p130, %p131
      %p133 = scmp.ne.s32.totalorder %s121, %s122
      %p134 = scmp.eq.s32.totalorder %s28, 1
      %p135 = por %p133, %p134
      %p137 = scmp.ne.s32.totalorder %s122, %s136
      %p138 = scmp.eq.s32.totalorder %s28, 0
      %p139 = por %p137, %p138
      %s141 = sadd.s32 %s140, 1
      %p144 = scmp.eq.s32.totalorder %s22, 1
      %p145 = scmp.ne.s32.totalorder %s140, %s142
      %p146 = scmp.eq.s32.totalorder %s22, 0
      %p147 = por %p145, %p146
      %p148 = scmp.ne.s32.totalorder %s140, %s142
      %p149 = scmp.eq.s32.totalorder %s27, 1
      %p150 = por %p148, %p149
      %p151 = scmp.ne.s32.totalorder %s142, %s143
      %p152 = scmp.eq.s32.totalorder %s27, 0
      %p153 = por %p151, %p152
      %p154 = scmp.ne.s32.totalorder %s142, %s143
      %p155 = scmp.eq.s32.totalorder %s28, 1
      %p156 = por %p154, %p155
      %p158 = scmp.ne.s32.totalorder %s143, %s157
      %p159 = scmp.eq.s32.totalorder %s28, 0
      %p160 = por %p158, %p159
      %s162 = sadd.s32 %s161, 1
      %p165 = scmp.eq.s32.totalorder %s22, 1
      %p166 = scmp.ne.s32.totalorder %s161, %s163
      %p167 = scmp.eq.s32.totalorder %s22, 0
      %p168 = por %p166, %p167
      %p169 = scmp.ne.s32.totalorder %s161, %s163
      %p170 = scmp.eq.s32.totalorder %s27, 1
      %p171 = por %p169, %p170
      %p172 = scmp.ne.s32.totalorder %s163, %s164
      %p173 = scmp.eq.s32.totalorder %s27, 0
      %p174 = por %p172, %p173
      %p175 = scmp.ne.s32.totalorder %s163, %s164
      %p176 = scmp.eq.s32.totalorder %s28, 1
      %p177 = por %p175, %p176
      %p179 = scmp.ne.s32.totalorder %s164, %s178
      %p180 = scmp.eq.s32.totalorder %s28, 0
      %p181 = por %p179, %p180
      %s183 = sadd.s32 %s182, 1
      %p186 = scmp.eq.s32.totalorder %s22, 1
      %p187 = scmp.ne.s32.totalorder %s182, %s184
      %p188 = scmp.eq.s32.totalorder %s22, 0
      %p189 = por %p187, %p188
      %p190 = scmp.ne.s32.totalorder %s182, %s184
      %p191 = scmp.eq.s32.totalorder %s27, 1
      %p192 = por %p190, %p191
      %p193 = scmp.ne.s32.totalorder %s184, %s185
      %p194 = scmp.eq.s32.totalorder %s27, 0
      %p195 = por %p193, %p194
      %p196 = scmp.ne.s32.totalorder %s184, %s185
      %p197 = scmp.eq.s32.totalorder %s28, 1
      %p198 = por %p196, %p197
      %p200 = scmp.ne.s32.totalorder %s185, %s199
      %p201 = scmp.eq.s32.totalorder %s28, 0
      %p202 = por %p200, %p201
      %s203 = ssub.s32 %s22, %s29
      %p204 = scmp.eq.s32.totalorder %s203, 0
      %s206 = sadd.s32 %s205, 1
      %s207 = scalar_select %p204, %s205, %s206
      %p210 = pneg %p204
      %p211 = scmp.eq.s32.totalorder %s22, 1
      %p212 = por %p210, %p211
      %p213 = scmp.ne.s32.totalorder %s205, %s208
      %p214 = scmp.eq.s32.totalorder %s22, 0
      %p215 = por %p213, %p214
      %p216 = scmp.ne.s32.totalorder %s205, %s208
      %p217 = scmp.eq.s32.totalorder %s27, 1
      %p218 = por %p216, %p217
      %p219 = scmp.ne.s32.totalorder %s208, %s209
      %p220 = scmp.eq.s32.totalorder %s27, 0
      %p221 = por %p219, %p220
      %p222 = scmp.ne.s32.totalorder %s208, %s209
      %p223 = scmp.eq.s32.totalorder %s28, 1
      %p224 = por %p222, %p223
      %p226 = scmp.ne.s32.totalorder %s209, %s225
      %p227 = scmp.eq.s32.totalorder %s28, 0
      %p228 = por %p226, %p227
      %p229 = scmp.le.s32.totalorder 1, %s22
      %p230 = scmp.lt.s32.totalorder %s22, 3
      %p231 = pnand %p229, %p230
      %p232 = pneg %p231
      // Predicated region
      $region9: #{tpu_custom_call.1} parent=5 // pred_check
        _
      $region10: #{tpu_custom_call.1} parent=5 // pred_check_branch
        %234 = sbr.rel (%p231) target = $region12
      $region11: #{tpu_custom_call.1} parent=5 // pred_region
        %s235 = ssub.s32 %s22, 1
        // Predicated region
        $region13: #{tpu_custom_call.1} parent=11 // pred_check
          %p236 = pneg %p69
        $region14: #{tpu_custom_call.1} parent=11 // pred_check_branch
          %238 = sbr.rel (%p236) target = $region16
        $region15: #{tpu_custom_call.1} parent=11 // pred_region
          _
        $region16: #{tpu_custom_call.1} parent=11 // pred_fallthru
          _
        // Predicated region
        $region17: #{tpu_custom_call.1} parent=11 // pred_check
          %p239 = pneg %p90
        $region18: #{tpu_custom_call.1} parent=11 // pred_check_branch
          %241 = sbr.rel (%p239) target = $region20
        $region19: #{tpu_custom_call.1} parent=11 // pred_region
          %s243 = ssub.s32 61440, 61440
          %244 = vsyncadd [#allocation6], %s243
          %s245 = sshll.u32 [#allocation5], 4
          %s246 = int_to_ptr.vmem [resolvable:$true] %s245
          %251 = dma.hbm_to_vmem [thread:$0]  %s2, 61440, %s246, [#allocation6], 1024, 1024, 64
        $region20: #{tpu_custom_call.1} parent=11 // pred_fallthru
          _
        // Predicated region
        $region21: #{tpu_custom_call.1} parent=11 // pred_check
          %p252 = pneg %p111
        $region22: #{tpu_custom_call.1} parent=11 // pred_check_branch
          %254 = sbr.rel (%p252) target = $region24
        $region23: #{tpu_custom_call.1} parent=11 // pred_region
          %s256 = ssub.s32 32, 32
          %257 = vsyncadd [#allocation6], %s256
          %s259 = sshll.u32 [#allocation7], 4
          %s260 = int_to_ptr.vmem [resolvable:$true] %s259
          %262 = dma.hbm_to_vmem [thread:$0]  %s3, 32, %s260, [#allocation6]
        $region24: #{tpu_custom_call.1} parent=11 // pred_fallthru
          _
        // Predicated region
        $region25: #{tpu_custom_call.1} parent=11 // pred_check
          %p263 = pneg %p132
        $region26: #{tpu_custom_call.1} parent=11 // pred_check_branch
          %265 = sbr.rel (%p263) target = $region28
        $region27: #{tpu_custom_call.1} parent=11 // pred_region
          _
        $region28: #{tpu_custom_call.1} parent=11 // pred_fallthru
          _
        // Predicated region
        $region29: #{tpu_custom_call.1} parent=11 // pred_check
          %p266 = pneg %p153
        $region30: #{tpu_custom_call.1} parent=11 // pred_check_branch
          %268 = sbr.rel (%p266) target = $region32
        $region31: #{tpu_custom_call.1} parent=11 // pred_region
          %s270 = ssub.s32 128, 128
          %271 = vsyncadd [#allocation9], %s270
          %s273 = sshll.u32 [#allocation8], 4
          %s274 = int_to_ptr.vmem [resolvable:$true] %s273
          %276 = dma.hbm_to_vmem [thread:$0]  %s5, 128, %s274, [#allocation9]
        $region32: #{tpu_custom_call.1} parent=11 // pred_fallthru
          _
        // Predicated region
        $region33: #{tpu_custom_call.1} parent=11 // pred_check
          %p277 = pneg %p174
        $region34: #{tpu_custom_call.1} parent=11 // pred_check_branch
          %279 = sbr.rel (%p277) target = $region36
        $region35: #{tpu_custom_call.1} parent=11 // pred_region
          _
        $region36: #{tpu_custom_call.1} parent=11 // pred_fallthru
          _
        // Predicated region
        $region37: #{tpu_custom_call.1} parent=11 // pred_check
          %p280 = pneg %p195
        $region38: #{tpu_custom_call.1} parent=11 // pred_check_branch
          %282 = sbr.rel (%p280) target = $region40
        $region39: #{tpu_custom_call.1} parent=11 // pred_region
          %s284 = ssub.s32 512, 512
          %285 = vsyncadd [#allocation9], %s284
          %s287 = sshll.u32 [#allocation10], 4
          %s288 = int_to_ptr.vmem [resolvable:$true] %s287
          %290 = dma.hbm_to_vmem [thread:$0]  %s7, 512, %s288, [#allocation9]
        $region40: #{tpu_custom_call.1} parent=11 // pred_fallthru
          _
      $region12: #{tpu_custom_call.1} parent=5 // pred_fallthru
        _
      %p291 = scmp.lt.s32.totalorder %s22, 2
      // Predicated region
      $region41: #{tpu_custom_call.1} parent=5 // pred_check
        %p292 = pneg %p291
      $region42: #{tpu_custom_call.1} parent=5 // pred_check_branch
        %294 = sbr.rel (%p292) target = $region44
      $region43: #{tpu_custom_call.1} parent=5 // pred_region
        // Predicated region
        $region45: #{tpu_custom_call.1} parent=43 // pred_check
          %p295 = pneg %p42
        $region46: #{tpu_custom_call.1} parent=43 // pred_check_branch
          %297 = sbr.rel (%p295) target = $region48
        $region47: #{tpu_custom_call.1} parent=43 // pred_region
          %s298 = sand.u32 %s32, 1
          %s299 = scalar_lea.sflag [#allocation3], %s298
          %s300 = sand.u32 %s32, 1
          %s301 = smul.addr %s300, 128
          %s302 = scalar_lea.vmem [#allocation2], %s301
          %s303 = smul.u32 8, %s22
          %s305 = ssub.s32 2048, 2048
          %306 = vsyncadd %s299, %s305
          %s307 = smul.addr %s303, 128
          %s308 = scalar_lea.hbm %s0, %s307
          %s309 = sshll.u32 %s302, 4
          %s310 = int_to_ptr.vmem [resolvable:$true] %s309
          %315 = dma.hbm_to_vmem [thread:$0]  %s308, 2048, %s310, %s299, 2048, 1024, 64
        $region48: #{tpu_custom_call.1} parent=43 // pred_fallthru
          _
      $region44: #{tpu_custom_call.1} parent=5 // pred_fallthru
        _
      %p316 = scmp.le.s32.totalorder 1, %s22
      %p317 = scmp.lt.s32.totalorder %s22, 3
      %p318 = pnand %p316, %p317
      %p319 = pneg %p318
      // Predicated region
      $region49: #{tpu_custom_call.1} parent=5 // pred_check
        _
      $region50: #{tpu_custom_call.1} parent=5 // pred_check_branch
        %321 = sbr.rel (%p318) target = $region52
      $region51: #{tpu_custom_call.1} parent=5 // pred_region
        %s322 = ssub.s32 %s22, 1
        %s323 = sand.u32 %s35, 1
        %s324 = scalar_lea.sflag [#allocation3], %s323
        %s325 = sand.u32 %s35, 1
        %s326 = smul.addr %s325, 128
        %s327 = scalar_lea.vmem [#allocation2], %s326
        // Predicated region
        $region53: #{tpu_custom_call.1} parent=51 // pred_check
          %p328 = pneg %p48
        $region54: #{tpu_custom_call.1} parent=51 // pred_check_branch
          %330 = sbr.rel (%p328) target = $region56
        $region55: #{tpu_custom_call.1} parent=51 // pred_region
          %331 = dma.done %s324, 2048
        $region56: #{tpu_custom_call.1} parent=51 // pred_fallthru
          _
        // Predicated region
        $region57: #{tpu_custom_call.1} parent=51 // pred_check
          %p332 = pneg %p90
        $region58: #{tpu_custom_call.1} parent=51 // pred_check_branch
          %334 = sbr.rel (%p332) target = $region60
        $region59: #{tpu_custom_call.1} parent=51 // pred_region
          %335 = dma.done [#allocation6], 61440
        $region60: #{tpu_custom_call.1} parent=51 // pred_fallthru
          _
        // Predicated region
        $region61: #{tpu_custom_call.1} parent=51 // pred_check
          %p336 = pneg %p111
        $region62: #{tpu_custom_call.1} parent=51 // pred_check_branch
          %338 = sbr.rel (%p336) target = $region64
        $region63: #{tpu_custom_call.1} parent=51 // pred_region
          %339 = dma.done [#allocation6], 32
        $region64: #{tpu_custom_call.1} parent=51 // pred_fallthru
          _
        // Predicated region
        $region65: #{tpu_custom_call.1} parent=51 // pred_check
          %p340 = pneg %p153
        $region66: #{tpu_custom_call.1} parent=51 // pred_check_branch
          %342 = sbr.rel (%p340) target = $region68
        $region67: #{tpu_custom_call.1} parent=51 // pred_region
          %343 = dma.done [#allocation9], 128
        $region68: #{tpu_custom_call.1} parent=51 // pred_fallthru
          _
        // Predicated region
        $region69: #{tpu_custom_call.1} parent=51 // pred_check
          %p344 = pneg %p195
        $region70: #{tpu_custom_call.1} parent=51 // pred_check_branch
          %346 = sbr.rel (%p344) target = $region72
        $region71: #{tpu_custom_call.1} parent=51 // pred_region
          %347 = dma.done [#allocation9], 512
        $region72: #{tpu_custom_call.1} parent=51 // pred_fallthru
          _
        %s348 = sand.u32 %s35, 1
        %s349 = scalar_lea.sflag [#allocation3], %s348
        %s350 = sand.u32 %s35, 1
        %s351 = smul.addr %s350, 128
        %s352 = scalar_lea.vmem [#allocation2], %s351
        %p353 = pneg %p48
        %p354 = pneg %p45
        %p355 = pneg %p69
        %p356 = pneg %p66
        %p357 = pneg %p90
        %p358 = pneg %p87
        %p359 = pneg %p111
        %p360 = pneg %p108
        %p361 = pneg %p132
        %p362 = pneg %p129
        %p363 = pneg %p153
        %p364 = pneg %p150
        %p365 = pneg %p174
        %p366 = pneg %p171
        %p367 = pneg %p195
        %p368 = pneg %p192
        %p369 = pneg %p221
        %p370 = pneg %p218
        %s371 = sand.u32 %s208, 1
        %s372 = scalar_lea.sflag [#allocation4], %s371
        %s373 = sand.u32 %s208, 1
        %s374 = smul.addr %s373, 64
        %s375 = scalar_lea.vmem [#allocation11], %s374
        %s376 = smul.u32 8, %s27
        %s377 = smul.u32 8, %s27
        %v378 = vld [vmem:[%s327] sm:$0xff]
        %v379 = vld [vmem:[%s327 + $0x8] sm:$0xff]
        %v380 = vld [vmem:[%s327 + $0x10] sm:$0xff]
        %v381 = vld [vmem:[%s327 + $0x18] sm:$0xff]
        %v382 = vld [vmem:[%s327 + $0x20] sm:$0xff]
        %v383 = vld [vmem:[%s327 + $0x28] sm:$0xff]
        %v384 = vld [vmem:[%s327 + $0x30] sm:$0xff]
        %v385 = vld [vmem:[%s327 + $0x38] sm:$0xff]
        %v386 = vld [vmem:[%s327 + $0x40] sm:$0x1]
        %v387 = vld [vmem:[%s327 + $0x48] sm:$0x1]
        %v388 = vld [vmem:[%s327 + $0x50] sm:$0x1]
        %v389 = vld [vmem:[%s327 + $0x58] sm:$0x1]
        %v390 = vld [vmem:[%s327 + $0x60] sm:$0x1]
        %v391 = vld [vmem:[%s327 + $0x68] sm:$0x1]
        %v392 = vld [vmem:[%s327 + $0x70] sm:$0x1]
        %v393 = vld [vmem:[%s327 + $0x78] sm:$0x1]
        %v394 = vld [vmem:[%s1] sm:$0xff]
        %v395 = vld [vmem:[%s1 + $0x8] sm:$0xff]
        %v396 = vld [vmem:[%s1 + $0x10] sm:$0xff]
        %v397 = vld [vmem:[%s1 + $0x18] sm:$0xff]
        %v398 = vld [vmem:[%s1 + $0x20] sm:$0xff]
        %v399 = vld [vmem:[%s1 + $0x28] sm:$0xff]
        %vm400 = vcmask 72704
        %v402 = vsel %vm400, %v394, 0
        %v405 = vsel %vm400, %v395, 0
        %v408 = vsel %vm400, %v396, 0
        %v411 = vsel %vm400, %v397, 0
        %v414 = vsel %vm400, %v398, 0
        %v417 = vsel %vm400, %v399, 0
        %vm419 = vcmask 1040384
        %v421 = vsel %vm419, %v386, 0
        %v424 = vsel %vm419, %v387, 0
        %v427 = vsel %vm419, %v388, 0
        %v430 = vsel %vm419, %v389, 0
        %v433 = vsel %vm419, %v390, 0
        %v436 = vsel %vm419, %v391, 0
        %v439 = vsel %vm419, %v392, 0
        %v442 = vsel %vm419, %v393, 0
        %444 = vmatprep.subr.mxu0 %v379
        %445 = vmatpush1.msra.mxu0 %v378
        %446 = vmatprep.subr.mxu0 %v424
        %447 = vmatpush1.msra.mxu0 %v421
        %448 = vmatprep.subr.mxu0 0.0
        %449 = vmatpush1.msra.mxu0 0.0
        %450 = vmatprep.subr.mxu0 0.0
        %451 = vmatpush1.msra.mxu0 0.0
        %452 = vmatprep.subr.mxu0 0.0
        %453 = vmatpush1.msra.mxu0 0.0
        %454 = vmatprep.subr.mxu0 0.0
        %455 = vmatpush1.msra.mxu0 0.0
        %456 = vmatprep.subr.mxu0 0.0
        %457 = vmatpush1.msra.mxu0 0.0
        %458 = vmatprep.subr.mxu0 0.0
        %459 = vmatpush1.msra.mxu0 0.0
        %460 = vmatprep.subr.mxu0 0.0
        %461 = vmatpush1.msra.mxu0 0.0
        %462 = vmatprep.subr.mxu0 0.0
        %463 = vmatpush1.msra.mxu0 0.0
        %464 = vmatprep.subr.mxu0 0.0
        %465 = vmatpush1.msra.mxu0 0.0
        %466 = vmatprep.subr.mxu0 0.0
        %467 = vmatpush1.msra.mxu0 0.0
        %468 = vmatprep.subr.mxu0 0.0
        %469 = vmatpush1.msra.mxu0 0.0
        %470 = vmatprep.subr.mxu0 0.0
        %471 = vmatpush1.msra.mxu0 0.0
        %472 = vmatprep.subr.mxu0 0.0
        %473 = vmatpush1.msra.mxu0 0.0
        %474 = vmatprep.subr.mxu0 0.0
        %475 = vmatpush1.msra.mxu0 0.0
        %476 = vmatprep.subr.mxu0 0.0
        %477 = vmatpush1.msra.mxu0 0.0
        %478 = vmatprep.subr.mxu0 0.0
        %479 = vmatpush1.msra.mxu0 0.0
        %480 = vmatprep.subr.mxu0 0.0
        %481 = vmatpush1.msra.mxu0 0.0
        %482 = vmatprep.subr.mxu0 0.0
        %483 = vmatpush1.msra.mxu0 0.0
        %484 = vmatprep.subr.mxu0 0.0
        %485 = vmatpush1.msra.mxu0 0.0
        %486 = vmatprep.subr.mxu0 0.0
        %487 = vmatpush1.msra.mxu0 0.0
        %488 = vmatprep.subr.mxu0 0.0
        %489 = vmatpush1.msra.mxu0 0.0
        %490 = vmatprep.subr.mxu0 0.0
        %491 = vmatpush1.msra.mxu0 0.0
        %492 = vmatprep.subr.mxu0 0.0
        %493 = vmatpush1.msra.mxu0 0.0
        %494 = vmatprep.subr.mxu0 0.0
        %495 = vmatpush1.msra.mxu0 0.0
        %496 = vmatprep.subr.mxu0 0.0
        %497 = vmatpush1.msra.mxu0 0.0
        %498 = vmatprep.subr.mxu0 0.0
        %499 = vmatpush1.msra.mxu0 0.0
        %500 = vmatprep.subr.mxu0 0.0
        %501 = vmatpush1.msra.mxu0 0.0
        %502 = vmatprep.subr.mxu0 0.0
        %503 = vmatpush1.msra.mxu0 0.0
        %504 = vmatprep.subr.mxu0 0.0
        %505 = vmatpush1.msra.mxu0 0.0
        %506 = vmatprep.subr.mxu0 0.0
        %507 = vmatpush1.msra.mxu0 0.0
        %508 = vmatprep.mubr.f32.mxu0 0.0
        %509 = vmatmul.mubr.f32.gmra.mrb[0].mxu0 %v402
        %v510 = vpop.f32.mrb[0].mxu0
        %v511 = vadd.f32 0.0, %v510
        %v512 = vpop.f32.mrb[0].mxu0
        %v513 = vadd.f32 0.0, %v512
        %514 = vmatprep.mubr.f32.mxu0 0.0
        %515 = vmatmul.mubr.f32.gmra.mrb[0].mxu0 %v405
        %v516 = vpop.f32.mrb[0].mxu0
        %v517 = vadd.f32 0.0, %v516
        %v518 = vpop.f32.mrb[0].mxu0
        %v519 = vadd.f32 0.0, %v518
        %520 = vmatprep.mubr.f32.mxu0 0.0
        %521 = vmatmul.mubr.f32.gmra.mrb[0].mxu0 %v408
        %v522 = vpop.f32.mrb[0].mxu0
        %v523 = vadd.f32 0.0, %v522
        %v524 = vpop.f32.mrb[0].mxu0
        %v525 = vadd.f32 0.0, %v524
        %526 = vmatprep.mubr.f32.mxu0 0.0
        %527 = vmatmul.mubr.f32.gmra.mrb[0].mxu0 %v411
        %v528 = vpop.f32.mrb[0].mxu0
        %v529 = vadd.f32 0.0, %v528
        %v530 = vpop.f32.mrb[0].mxu0
        %v531 = vadd.f32 0.0, %v530
        %532 = vmatprep.mubr.f32.mxu0 0.0
        %533 = vmatmul.mubr.f32.gmra.mrb[0].mxu0 %v414
        %v534 = vpop.f32.mrb[0].mxu0
        %v535 = vadd.f32 0.0, %v534
        %v536 = vpop.f32.mrb[0].mxu0
        %v537 = vadd.f32 0.0, %v536
        %538 = vmatprep.mubr.f32.mxu0 0.0
        %539 = vmatmul.mubr.f32.gmra.mrb[0].mxu0 %v417
        %v540 = vpop.f32.mrb[0].mxu0
        %v541 = vadd.f32 0.0, %v540
        %v542 = vpop.f32.mrb[0].mxu0
        %v543 = vadd.f32 0.0, %v542
        %544 = vdwg.mxu0
        %545 = vmatprep.subr.mxu0 %v381
        %546 = vmatpush1.msra.mxu0 %v380
        %547 = vmatprep.subr.mxu0 %v430
        %548 = vmatpush1.msra.mxu0 %v427
        %549 = vmatprep.subr.mxu0 0.0
        %550 = vmatpush1.msra.mxu0 0.0
        %551 = vmatprep.subr.mxu0 0.0
        %552 = vmatpush1.msra.mxu0 0.0
        %553 = vmatprep.subr.mxu0 0.0
        %554 = vmatpush1.msra.mxu0 0.0
        %555 = vmatprep.subr.mxu0 0.0
        %556 = vmatpush1.msra.mxu0 0.0
        %557 = vmatprep.subr.mxu0 0.0
        %558 = vmatpush1.msra.mxu0 0.0
        %559 = vmatprep.subr.mxu0 0.0
        %560 = vmatpush1.msra.mxu0 0.0
        %561 = vmatprep.subr.mxu0 0.0
        %562 = vmatpush1.msra.mxu0 0.0
        %563 = vmatprep.subr.mxu0 0.0
        %564 = vmatpush1.msra.mxu0 0.0
        %565 = vmatprep.subr.mxu0 0.0
        %566 = vmatpush1.msra.mxu0 0.0
        %567 = vmatprep.subr.mxu0 0.0
        %568 = vmatpush1.msra.mxu0 0.0
        %569 = vmatprep.subr.mxu0 0.0
        %570 = vmatpush1.msra.mxu0 0.0
        %571 = vmatprep.subr.mxu0 0.0
        %572 = vmatpush1.msra.mxu0 0.0
        %573 = vmatprep.subr.mxu0 0.0
        %574 = vmatpush1.msra.mxu0 0.0
        %575 = vmatprep.subr.mxu0 0.0
        %576 = vmatpush1.msra.mxu0 0.0
        %577 = vmatprep.subr.mxu0 0.0
        %578 = vmatpush1.msra.mxu0 0.0
        %579 = vmatprep.subr.mxu0 0.0
        %580 = vmatpush1.msra.mxu0 0.0
        %581 = vmatprep.subr.mxu0 0.0
        %582 = vmatpush1.msra.mxu0 0.0
        %583 = vmatprep.subr.mxu0 0.0
        %584 = vmatpush1.msra.mxu0 0.0
        %585 = vmatprep.subr.mxu0 0.0
        %586 = vmatpush1.msra.mxu0 0.0
        %587 = vmatprep.subr.mxu0 0.0
        %588 = vmatpush1.msra.mxu0 0.0
        %589 = vmatprep.subr.mxu0 0.0
        %590 = vmatpush1.msra.mxu0 0.0
        %591 = vmatprep.subr.mxu0 0.0
        %592 = vmatpush1.msra.mxu0 0.0
        %593 = vmatprep.subr.mxu0 0.0
        %594 = vmatpush1.msra.mxu0 0.0
        %595 = vmatprep.subr.mxu0 0.0
        %596 = vmatpush1.msra.mxu0 0.0
        %597 = vmatprep.subr.mxu0 0.0
        %598 = vmatpush1.msra.mxu0 0.0
        %599 = vmatprep.subr.mxu0 0.0
        %600 = vmatpush1.msra.mxu0 0.0
        %601 = vmatprep.subr.mxu0 0.0
        %602 = vmatpush1.msra.mxu0 0.0
        %603 = vmatprep.subr.mxu0 0.0
        %604 = vmatpush1.msra.mxu0 0.0
        %605 = vmatprep.subr.mxu0 0.0
        %606 = vmatpush1.msra.mxu0 0.0
        %607 = vmatprep.subr.mxu0 0.0
        %608 = vmatpush1.msra.mxu0 0.0
        %609 = vmatprep.mubr.f32.mxu0 0.0
        %610 = vmatmul.mubr.f32.gmra.mrb[0].mxu0 %v402
        %v611 = vpop.f32.mrb[0].mxu0
        %v612 = vadd.f32 0.0, %v611
        %v613 = vpop.f32.mrb[0].mxu0
        %v614 = vadd.f32 0.0, %v613
        %615 = vmatprep.mubr.f32.mxu0 0.0
        %616 = vmatmul.mubr.f32.gmra.mrb[0].mxu0 %v405
        %v617 = vpop.f32.mrb[0].mxu0
        %v618 = vadd.f32 0.0, %v617
        %v619 = vpop.f32.mrb[0].mxu0
        %v620 = vadd.f32 0.0, %v619
        %621 = vmatprep.mubr.f32.mxu0 0.0
        %622 = vmatmul.mubr.f32.gmra.mrb[0].mxu0 %v408
        %v623 = vpop.f32.mrb[0].mxu0
        %v624 = vadd.f32 0.0, %v623
        %v625 = vpop.f32.mrb[0].mxu0
        %v626 = vadd.f32 0.0, %v625
        %627 = vmatprep.mubr.f32.mxu0 0.0
        %628 = vmatmul.mubr.f32.gmra.mrb[0].mxu0 %v411
        %v629 = vpop.f32.mrb[0].mxu0
        %v630 = vadd.f32 0.0, %v629
        %v631 = vpop.f32.mrb[0].mxu0
        %v632 = vadd.f32 0.0, %v631
        %633 = vmatprep.mubr.f32.mxu0 0.0
        %634 = vmatmul.mubr.f32.gmra.mrb[0].mxu0 %v414
        %v635 = vpop.f32.mrb[0].mxu0
        %v636 = vadd.f32 0.0, %v635
        %v637 = vpop.f32.mrb[0].mxu0
        %v638 = vadd.f32 0.0, %v637
        %639 = vmatprep.mubr.f32.mxu0 0.0
        %640 = vmatmul.mubr.f32.gmra.mrb[0].mxu0 %v417
        %v641 = vpop.f32.mrb[0].mxu0
        %v642 = vadd.f32 0.0, %v641
        %v643 = vpop.f32.mrb[0].mxu0
        %v644 = vadd.f32 0.0, %v643
        %645 = vdwg.mxu0
        %646 = vmatprep.subr.mxu0 %v383
        %647 = vmatpush1.msra.mxu0 %v382
        %648 = vmatprep.subr.mxu0 %v436
        %649 = vmatpush1.msra.mxu0 %v433
        %650 = vmatprep.subr.mxu0 0.0
        %651 = vmatpush1.msra.mxu0 0.0
        %652 = vmatprep.subr.mxu0 0.0
        %653 = vmatpush1.msra.mxu0 0.0
        %654 = vmatprep.subr.mxu0 0.0
        %655 = vmatpush1.msra.mxu0 0.0
        %656 = vmatprep.subr.mxu0 0.0
        %657 = vmatpush1.msra.mxu0 0.0
        %658 = vmatprep.subr.mxu0 0.0
        %659 = vmatpush1.msra.mxu0 0.0
        %660 = vmatprep.subr.mxu0 0.0
        %661 = vmatpush1.msra.mxu0 0.0
        %662 = vmatprep.subr.mxu0 0.0
        %663 = vmatpush1.msra.mxu0 0.0
        %664 = vmatprep.subr.mxu0 0.0
        %665 = vmatpush1.msra.mxu0 0.0
        %666 = vmatprep.subr.mxu0 0.0
        %667 = vmatpush1.msra.mxu0 0.0
        %668 = vmatprep.subr.mxu0 0.0
        %669 = vmatpush1.msra.mxu0 0.0
        %670 = vmatprep.subr.mxu0 0.0
        %671 = vmatpush1.msra.mxu0 0.0
        %672 = vmatprep.subr.mxu0 0.0
        %673 = vmatpush1.msra.mxu0 0.0
        %674 = vmatprep.subr.mxu0 0.0
        %675 = vmatpush1.msra.mxu0 0.0
        %676 = vmatprep.subr.mxu0 0.0
        %677 = vmatpush1.msra.mxu0 0.0
        %678 = vmatprep.subr.mxu0 0.0
        %679 = vmatpush1.msra.mxu0 0.0
        %680 = vmatprep.subr.mxu0 0.0
        %681 = vmatpush1.msra.mxu0 0.0
        %682 = vmatprep.subr.mxu0 0.0
        %683 = vmatpush1.msra.mxu0 0.0
        %684 = vmatprep.subr.mxu0 0.0
        %685 = vmatpush1.msra.mxu0 0.0
        %686 = vmatprep.subr.mxu0 0.0
        %687 = vmatpush1.msra.mxu0 0.0
        %688 = vmatprep.subr.mxu0 0.0
        %689 = vmatpush1.msra.mxu0 0.0
        %690 = vmatprep.subr.mxu0 0.0
        %691 = vmatpush1.msra.mxu0 0.0
        %692 = vmatprep.subr.mxu0 0.0
        %693 = vmatpush1.msra.mxu0 0.0
        %694 = vmatprep.subr.mxu0 0.0
        %695 = vmatpush1.msra.mxu0 0.0
        %696 = vmatprep.subr.mxu0 0.0
        %697 = vmatpush1.msra.mxu0 0.0
        %698 = vmatprep.subr.mxu0 0.0
        %699 = vmatpush1.msra.mxu0 0.0
        %700 = vmatprep.subr.mxu0 0.0
        %701 = vmatpush1.msra.mxu0 0.0
        %702 = vmatprep.subr.mxu0 0.0
        %703 = vmatpush1.msra.mxu0 0.0
        %704 = vmatprep.subr.mxu0 0.0
        %705 = vmatpush1.msra.mxu0 0.0
        %706 = vmatprep.subr.mxu0 0.0
        %707 = vmatpush1.msra.mxu0 0.0
        %708 = vmatprep.subr.mxu0 0.0
        %709 = vmatpush1.msra.mxu0 0.0
        %710 = vmatprep.mubr.f32.mxu0 0.0
        %711 = vmatmul.mubr.f32.gmra.mrb[0].mxu0 %v402
        %v712 = vpop.f32.mrb[0].mxu0
        %v713 = vadd.f32 0.0, %v712
        %v714 = vpop.f32.mrb[0].mxu0
        %v715 = vadd.f32 0.0, %v714
        %716 = vmatprep.mubr.f32.mxu0 0.0
        %717 = vmatmul.mubr.f32.gmra.mrb[0].mxu0 %v405
        %v718 = vpop.f32.mrb[0].mxu0
        %v719 = vadd.f32 0.0, %v718
        %v720 = vpop.f32.mrb[0].mxu0
        %v721 = vadd.f32 0.0, %v720
        %722 = vmatprep.mubr.f32.mxu0 0.0
        %723 = vmatmul.mubr.f32.gmra.mrb[0].mxu0 %v408
        %v724 = vpop.f32.mrb[0].mxu0
        %v725 = vadd.f32 0.0, %v724
        %v726 = vpop.f32.mrb[0].mxu0
        %v727 = vadd.f32 0.0, %v726
        %728 = vmatprep.mubr.f32.mxu0 0.0
        %729 = vmatmul.mubr.f32.gmra.mrb[0].mxu0 %v411
        %v730 = vpop.f32.mrb[0].mxu0
        %v731 = vadd.f32 0.0, %v730
        %v732 = vpop.f32.mrb[0].mxu0
        %v733 = vadd.f32 0.0, %v732
        %734 = vmatprep.mubr.f32.mxu0 0.0
        %735 = vmatmul.mubr.f32.gmra.mrb[0].mxu0 %v414
        %v736 = vpop.f32.mrb[0].mxu0
        %v737 = vadd.f32 0.0, %v736
        %v738 = vpop.f32.mrb[0].mxu0
        %v739 = vadd.f32 0.0, %v738
        %740 = vmatprep.mubr.f32.mxu0 0.0
        %741 = vmatmul.mubr.f32.gmra.mrb[0].mxu0 %v417
        %v742 = vpop.f32.mrb[0].mxu0
        %v743 = vadd.f32 0.0, %v742
        %v744 = vpop.f32.mrb[0].mxu0
        %v745 = vadd.f32 0.0, %v744
        %746 = vdwg.mxu0
        %747 = vmatprep.subr.mxu0 %v385
        %748 = vmatpush1.msra.mxu0 %v384
        %749 = vmatprep.subr.mxu0 %v442
        %750 = vmatpush1.msra.mxu0 %v439
        %751 = vmatprep.subr.mxu0 0.0
        %752 = vmatpush1.msra.mxu0 0.0
        %753 = vmatprep.subr.mxu0 0.0
        %754 = vmatpush1.msra.mxu0 0.0
        %755 = vmatprep.subr.mxu0 0.0
        %756 = vmatpush1.msra.mxu0 0.0
        %757 = vmatprep.subr.mxu0 0.0
        %758 = vmatpush1.msra.mxu0 0.0
        %759 = vmatprep.subr.mxu0 0.0
        %760 = vmatpush1.msra.mxu0 0.0
        %761 = vmatprep.subr.mxu0 0.0
        %762 = vmatpush1.msra.mxu0 0.0
        %763 = vmatprep.subr.mxu0 0.0
        %764 = vmatpush1.msra.mxu0 0.0
        %765 = vmatprep.subr.mxu0 0.0
        %766 = vmatpush1.msra.mxu0 0.0
        %767 = vmatprep.subr.mxu0 0.0
        %768 = vmatpush1.msra.mxu0 0.0
        %769 = vmatprep.subr.mxu0 0.0
        %770 = vmatpush1.msra.mxu0 0.0
        %771 = vmatprep.subr.mxu0 0.0
        %772 = vmatpush1.msra.mxu0 0.0
        %773 = vmatprep.subr.mxu0 0.0
        %774 = vmatpush1.msra.mxu0 0.0
        %775 = vmatprep.subr.mxu0 0.0
        %776 = vmatpush1.msra.mxu0 0.0
        %777 = vmatprep.subr.mxu0 0.0
        %778 = vmatpush1.msra.mxu0 0.0
        %779 = vmatprep.subr.mxu0 0.0
        %780 = vmatpush1.msra.mxu0 0.0
        %781 = vmatprep.subr.mxu0 0.0
        %782 = vmatpush1.msra.mxu0 0.0
        %783 = vmatprep.subr.mxu0 0.0
        %784 = vmatpush1.msra.mxu0 0.0
        %785 = vmatprep.subr.mxu0 0.0
        %786 = vmatpush1.msra.mxu0 0.0
        %787 = vmatprep.subr.mxu0 0.0
        %788 = vmatpush1.msra.mxu0 0.0
        %789 = vmatprep.subr.mxu0 0.0
        %790 = vmatpush1.msra.mxu0 0.0
        %791 = vmatprep.subr.mxu0 0.0
        %792 = vmatpush1.msra.mxu0 0.0
        %793 = vmatprep.subr.mxu0 0.0
        %794 = vmatpush1.msra.mxu0 0.0
        %795 = vmatprep.subr.mxu0 0.0
        %796 = vmatpush1.msra.mxu0 0.0
        %797 = vmatprep.subr.mxu0 0.0
        %798 = vmatpush1.msra.mxu0 0.0
        %799 = vmatprep.subr.mxu0 0.0
        %800 = vmatpush1.msra.mxu0 0.0
        %801 = vmatprep.subr.mxu0 0.0
        %802 = vmatpush1.msra.mxu0 0.0
        %803 = vmatprep.subr.mxu0 0.0
        %804 = vmatpush1.msra.mxu0 0.0
        %805 = vmatprep.subr.mxu0 0.0
        %806 = vmatpush1.msra.mxu0 0.0
        %807 = vmatprep.subr.mxu0 0.0
        %808 = vmatpush1.msra.mxu0 0.0
        %809 = vmatprep.subr.mxu0 0.0
        %810 = vmatpush1.msra.mxu0 0.0
        %811 = vmatprep.mubr.f32.mxu0 0.0
        %812 = vmatmul.mubr.f32.gmra.mrb[0].mxu0 %v402
        %v813 = vpop.f32.mrb[0].mxu0
        %v814 = vadd.f32 0.0, %v813
        %v815 = vpop.f32.mrb[0].mxu0
        %v816 = vadd.f32 0.0, %v815
        %817 = vmatprep.mubr.f32.mxu0 0.0
        %818 = vmatmul.mubr.f32.gmra.mrb[0].mxu0 %v405
        %v819 = vpop.f32.mrb[0].mxu0
        %v820 = vadd.f32 0.0, %v819
        %v821 = vpop.f32.mrb[0].mxu0
        %v822 = vadd.f32 0.0, %v821
        %823 = vmatprep.mubr.f32.mxu0 0.0
        %824 = vmatmul.mubr.f32.gmra.mrb[0].mxu0 %v408
        %v825 = vpop.f32.mrb[0].mxu0
        %v826 = vadd.f32 0.0, %v825
        %v827 = vpop.f32.mrb[0].mxu0
        %v828 = vadd.f32 0.0, %v827
        %829 = vmatprep.mubr.f32.mxu0 0.0
        %830 = vmatmul.mubr.f32.gmra.mrb[0].mxu0 %v411
        %v831 = vpop.f32.mrb[0].mxu0
        %v832 = vadd.f32 0.0, %v831
        %v833 = vpop.f32.mrb[0].mxu0
        %v834 = vadd.f32 0.0, %v833
        %835 = vmatprep.mubr.f32.mxu0 0.0
        %836 = vmatmul.mubr.f32.gmra.mrb[0].mxu0 %v414
        %v837 = vpop.f32.mrb[0].mxu0
        %v838 = vadd.f32 0.0, %v837
        %v839 = vpop.f32.mrb[0].mxu0
        %v840 = vadd.f32 0.0, %v839
        %841 = vmatprep.mubr.f32.mxu0 0.0
        %842 = vmatmul.mubr.f32.gmra.mrb[0].mxu0 %v417
        %v843 = vpop.f32.mrb[0].mxu0
        %v844 = vadd.f32 0.0, %v843
        %v845 = vpop.f32.mrb[0].mxu0
        %v846 = vadd.f32 0.0, %v845
        %847 = vdwg.mxu0
        %v848 = vsub.f32 0.0, %v511
        %v849 = vsub.f32 0.0, %v513
        %v850 = vsub.f32 0.0, %v612
        %v851 = vsub.f32 0.0, %v614
        %v852 = vsub.f32 0.0, %v713
        %v853 = vsub.f32 0.0, %v715
        %v854 = vsub.f32 0.0, %v814
        %v855 = vsub.f32 0.0, %v816
        %v856 = vsub.f32 0.0, %v517
        %v857 = vsub.f32 0.0, %v519
        %v858 = vsub.f32 0.0, %v618
        %v859 = vsub.f32 0.0, %v620
        %v860 = vsub.f32 0.0, %v719
        %v861 = vsub.f32 0.0, %v721
        %v862 = vsub.f32 0.0, %v820
        %v863 = vsub.f32 0.0, %v822
        %v864 = vsub.f32 0.0, %v523
        %v865 = vsub.f32 0.0, %v525
        %v866 = vsub.f32 0.0, %v624
        %v867 = vsub.f32 0.0, %v626
        %v868 = vsub.f32 0.0, %v725
        %v869 = vsub.f32 0.0, %v727
        %v870 = vsub.f32 0.0, %v826
        %v871 = vsub.f32 0.0, %v828
        %v872 = vsub.f32 0.0, %v529
        %v873 = vsub.f32 0.0, %v531
        %v874 = vsub.f32 0.0, %v630
        %v875 = vsub.f32 0.0, %v632
        %v876 = vsub.f32 0.0, %v731
        %v877 = vsub.f32 0.0, %v733
        %v878 = vsub.f32 0.0, %v832
        %v879 = vsub.f32 0.0, %v834
        %v880 = vsub.f32 0.0, %v535
        %v881 = vsub.f32 0.0, %v537
        %v882 = vsub.f32 0.0, %v636
        %v883 = vsub.f32 0.0, %v638
        %v884 = vsub.f32 0.0, %v737
        %v885 = vsub.f32 0.0, %v739
        %v886 = vsub.f32 0.0, %v838
        %v887 = vsub.f32 0.0, %v840
        %v888 = vsub.f32 0.0, %v541
        %v889 = vsub.f32 0.0, %v543
        %v890 = vsub.f32 0.0, %v642
        %v891 = vsub.f32 0.0, %v644
        %v892 = vsub.f32 0.0, %v743
        %v893 = vsub.f32 0.0, %v745
        %v894 = vsub.f32 0.0, %v844
        %v895 = vsub.f32 0.0, %v846
        %v896 = vmul.f32 %v848, 1.442695
        %v897 = vpow.pop %v896
        %v898 = vmul.f32 %v849, 1.442695
        %v899 = vpow.pop %v898
        %v900 = vmul.f32 %v850, 1.442695
        %v901 = vpow.pop %v900
        %v902 = vmul.f32 %v851, 1.442695
        %v903 = vpow.pop %v902
        %v904 = vmul.f32 %v852, 1.442695
        %v905 = vpow.pop %v904
        %v906 = vmul.f32 %v853, 1.442695
        %v907 = vpow.pop %v906
        %v908 = vmul.f32 %v854, 1.442695
        %v909 = vpow.pop %v908
        %v910 = vmul.f32 %v855, 1.442695
        %v911 = vpow.pop %v910
        %v912 = vmul.f32 %v856, 1.442695
        %v913 = vpow.pop %v912
        %v914 = vmul.f32 %v857, 1.442695
        %v915 = vpow.pop %v914
        %v916 = vmul.f32 %v858, 1.442695
        %v917 = vpow.pop %v916
        %v918 = vmul.f32 %v859, 1.442695
        %v919 = vpow.pop %v918
        %v920 = vmul.f32 %v860, 1.442695
        %v921 = vpow.pop %v920
        %v922 = vmul.f32 %v861, 1.442695
        %v923 = vpow.pop %v922
        %v924 = vmul.f32 %v862, 1.442695
        %v925 = vpow.pop %v924
        %v926 = vmul.f32 %v863, 1.442695
        %v927 = vpow.pop %v926
        %v928 = vmul.f32 %v864, 1.442695
        %v929 = vpow.pop %v928
        %v930 = vmul.f32 %v865, 1.442695
        %v931 = vpow.pop %v930
        %v932 = vmul.f32 %v866, 1.442695
        %v933 = vpow.pop %v932
        %v934 = vmul.f32 %v867, 1.442695
        %v935 = vpow.pop %v934
        %v936 = vmul.f32 %v868, 1.442695
        %v937 = vpow.pop %v936
        %v938 = vmul.f32 %v869, 1.442695
        %v939 = vpow.pop %v938
        %v940 = vmul.f32 %v870, 1.442695
        %v941 = vpow.pop %v940
        %v942 = vmul.f32 %v871, 1.442695
        %v943 = vpow.pop %v942
        %v944 = vmul.f32 %v872, 1.442695
        %v945 = vpow.pop %v944
        %v946 = vmul.f32 %v873, 1.442695
        %v947 = vpow.pop %v946
        %v948 = vmul.f32 %v874, 1.442695
        %v949 = vpow.pop %v948
        %v950 = vmul.f32 %v875, 1.442695
        %v951 = vpow.pop %v950
        %v952 = vmul.f32 %v876, 1.442695
        %v953 = vpow.pop %v952
        %v954 = vmul.f32 %v877, 1.442695
        %v955 = vpow.pop %v954
        %v956 = vmul.f32 %v878, 1.442695
        %v957 = vpow.pop %v956
        %v958 = vmul.f32 %v879, 1.442695
        %v959 = vpow.pop %v958
        %v960 = vmul.f32 %v880, 1.442695
        %v961 = vpow.pop %v960
        %v962 = vmul.f32 %v881, 1.442695
        %v963 = vpow.pop %v962
        %v964 = vmul.f32 %v882, 1.442695
        %v965 = vpow.pop %v964
        %v966 = vmul.f32 %v883, 1.442695
        %v967 = vpow.pop %v966
        %v968 = vmul.f32 %v884, 1.442695
        %v969 = vpow.pop %v968
        %v970 = vmul.f32 %v885, 1.442695
        %v971 = vpow.pop %v970
        %v972 = vmul.f32 %v886, 1.442695
        %v973 = vpow.pop %v972
        %v974 = vmul.f32 %v887, 1.442695
        %v975 = vpow.pop %v974
        %v976 = vmul.f32 %v888, 1.442695
        %v977 = vpow.pop %v976
        %v978 = vmul.f32 %v889, 1.442695
        %v979 = vpow.pop %v978
        %v980 = vmul.f32 %v890, 1.442695
        %v981 = vpow.pop %v980
        %v982 = vmul.f32 %v891, 1.442695
        %v983 = vpow.pop %v982
        %v984 = vmul.f32 %v892, 1.442695
        %v985 = vpow.pop %v984
        %v986 = vmul.f32 %v893, 1.442695
        %v987 = vpow.pop %v986
        %v988 = vmul.f32 %v894, 1.442695
        %v989 = vpow.pop %v988
        %v990 = vmul.f32 %v895, 1.442695
        %v991 = vpow.pop %v990
        %v992 = vadd.f32 %v897, 1.0
        %v993 = vadd.f32 %v899, 1.0
        %v994 = vadd.f32 %v901, 1.0
        %v995 = vadd.f32 %v903, 1.0
        %v996 = vadd.f32 %v905, 1.0
        %v997 = vadd.f32 %v907, 1.0
        %v998 = vadd.f32 %v909, 1.0
        %v999 = vadd.f32 %v911, 1.0
        %v1000 = vadd.f32 %v913, 1.0
        %v1001 = vadd.f32 %v915, 1.0
        %v1002 = vadd.f32 %v917, 1.0
        %v1003 = vadd.f32 %v919, 1.0
        %v1004 = vadd.f32 %v921, 1.0
        %v1005 = vadd.f32 %v923, 1.0
        %v1006 = vadd.f32 %v925, 1.0
        %v1007 = vadd.f32 %v927, 1.0
        %v1008 = vadd.f32 %v929, 1.0
        %v1009 = vadd.f32 %v931, 1.0
        %v1010 = vadd.f32 %v933, 1.0
        %v1011 = vadd.f32 %v935, 1.0
        %v1012 = vadd.f32 %v937, 1.0
        %v1013 = vadd.f32 %v939, 1.0
        %v1014 = vadd.f32 %v941, 1.0
        %v1015 = vadd.f32 %v943, 1.0
        %v1016 = vadd.f32 %v945, 1.0
        %v1017 = vadd.f32 %v947, 1.0
        %v1018 = vadd.f32 %v949, 1.0
        %v1019 = vadd.f32 %v951, 1.0
        %v1020 = vadd.f32 %v953, 1.0
        %v1021 = vadd.f32 %v955, 1.0
        %v1022 = vadd.f32 %v957, 1.0
        %v1023 = vadd.f32 %v959, 1.0
        %v1024 = vadd.f32 %v961, 1.0
        %v1025 = vadd.f32 %v963, 1.0
        %v1026 = vadd.f32 %v965, 1.0
        %v1027 = vadd.f32 %v967, 1.0
        %v1028 = vadd.f32 %v969, 1.0
        %v1029 = vadd.f32 %v971, 1.0
        %v1030 = vadd.f32 %v973, 1.0
        %v1031 = vadd.f32 %v975, 1.0
        %v1032 = vadd.f32 %v977, 1.0
        %v1033 = vadd.f32 %v979, 1.0
        %v1034 = vadd.f32 %v981, 1.0
        %v1035 = vadd.f32 %v983, 1.0
        %v1036 = vadd.f32 %v985, 1.0
        %v1037 = vadd.f32 %v987, 1.0
        %v1038 = vadd.f32 %v989, 1.0
        %v1039 = vadd.f32 %v991, 1.0
        %v1040 = vrcp.pop %v992
        %v1041 = vrcp.pop %v993
        %v1042 = vrcp.pop %v994
        %v1043 = vrcp.pop %v995
        %v1044 = vrcp.pop %v996
        %v1045 = vrcp.pop %v997
        %v1046 = vrcp.pop %v998
        %v1047 = vrcp.pop %v999
        %v1048 = vrcp.pop %v1000
        %v1049 = vrcp.pop %v1001
        %v1050 = vrcp.pop %v1002
        %v1051 = vrcp.pop %v1003
        %v1052 = vrcp.pop %v1004
        %v1053 = vrcp.pop %v1005
        %v1054 = vrcp.pop %v1006
        %v1055 = vrcp.pop %v1007
        %v1056 = vrcp.pop %v1008
        %v1057 = vrcp.pop %v1009
        %v1058 = vrcp.pop %v1010
        %v1059 = vrcp.pop %v1011
        %v1060 = vrcp.pop %v1012
        %v1061 = vrcp.pop %v1013
        %v1062 = vrcp.pop %v1014
        %v1063 = vrcp.pop %v1015
        %v1064 = vrcp.pop %v1016
        %v1065 = vrcp.pop %v1017
        %v1066 = vrcp.pop %v1018
        %v1067 = vrcp.pop %v1019
        %v1068 = vrcp.pop %v1020
        %v1069 = vrcp.pop %v1021
        %v1070 = vrcp.pop %v1022
        %v1071 = vrcp.pop %v1023
        %v1072 = vrcp.pop %v1024
        %v1073 = vrcp.pop %v1025
        %v1074 = vrcp.pop %v1026
        %v1075 = vrcp.pop %v1027
        %v1076 = vrcp.pop %v1028
        %v1077 = vrcp.pop %v1029
        %v1078 = vrcp.pop %v1030
        %v1079 = vrcp.pop %v1031
        %v1080 = vrcp.pop %v1032
        %v1081 = vrcp.pop %v1033
        %v1082 = vrcp.pop %v1034
        %v1083 = vrcp.pop %v1035
        %v1084 = vrcp.pop %v1036
        %v1085 = vrcp.pop %v1037
        %v1086 = vrcp.pop %v1038
        %v1087 = vrcp.pop %v1039
        %v1088 = vmul.f32 %v511, %v1040
        %v1089 = vmul.f32 %v513, %v1041
        %v1090 = vmul.f32 %v612, %v1042
        %v1091 = vmul.f32 %v614, %v1043
        %v1092 = vmul.f32 %v713, %v1044
        %v1093 = vmul.f32 %v715, %v1045
        %v1094 = vmul.f32 %v814, %v1046
        %v1095 = vmul.f32 %v816, %v1047
        %v1096 = vmul.f32 %v517, %v1048
        %v1097 = vmul.f32 %v519, %v1049
        %v1098 = vmul.f32 %v618, %v1050
        %v1099 = vmul.f32 %v620, %v1051
        %v1100 = vmul.f32 %v719, %v1052
        %v1101 = vmul.f32 %v721, %v1053
        %v1102 = vmul.f32 %v820, %v1054
        %v1103 = vmul.f32 %v822, %v1055
        %v1104 = vmul.f32 %v523, %v1056
        %v1105 = vmul.f32 %v525, %v1057
        %v1106 = vmul.f32 %v624, %v1058
        %v1107 = vmul.f32 %v626, %v1059
        %v1108 = vmul.f32 %v725, %v1060
        %v1109 = vmul.f32 %v727, %v1061
        %v1110 = vmul.f32 %v826, %v1062
        %v1111 = vmul.f32 %v828, %v1063
        %v1112 = vmul.f32 %v529, %v1064
        %v1113 = vmul.f32 %v531, %v1065
        %v1114 = vmul.f32 %v630, %v1066
        %v1115 = vmul.f32 %v632, %v1067
        %v1116 = vmul.f32 %v731, %v1068
        %v1117 = vmul.f32 %v733, %v1069
        %v1118 = vmul.f32 %v832, %v1070
        %v1119 = vmul.f32 %v834, %v1071
        %v1120 = vmul.f32 %v535, %v1072
        %v1121 = vmul.f32 %v537, %v1073
        %v1122 = vmul.f32 %v636, %v1074
        %v1123 = vmul.f32 %v638, %v1075
        %v1124 = vmul.f32 %v737, %v1076
        %v1125 = vmul.f32 %v739, %v1077
        %v1126 = vmul.f32 %v838, %v1078
        %v1127 = vmul.f32 %v840, %v1079
        %v1128 = vmul.f32 %v541, %v1080
        %v1129 = vmul.f32 %v543, %v1081
        %v1130 = vmul.f32 %v642, %v1082
        %v1131 = vmul.f32 %v644, %v1083
        %v1132 = vmul.f32 %v743, %v1084
        %v1133 = vmul.f32 %v745, %v1085
        %v1134 = vmul.f32 %v844, %v1086
        %v1135 = vmul.f32 %v846, %v1087
        %s1136 = scalar_lea.vmem [#allocation5], 1536
        %v1137 = vld [vmem:[%s1136] sm:$0xff]
        %v1138 = vld [vmem:[%s1136 + $0x8] sm:$0xff]
        %v1139 = vld [vmem:[%s1136 + $0x10] sm:$0xff]
        %v1140 = vld [vmem:[%s1136 + $0x18] sm:$0xff]
        %v1141 = vld [vmem:[%s1136 + $0x20] sm:$0xff]
        %v1142 = vld [vmem:[%s1136 + $0x28] sm:$0xff]
        %v1143 = vld [vmem:[%s1136 + $0x30] sm:$0xff]
        %v1144 = vld [vmem:[%s1136 + $0x38] sm:$0xff]
        %v1145 = vld [vmem:[%s1136 + $0x40] sm:$0xff]
        %v1146 = vld [vmem:[%s1136 + $0x48] sm:$0xff]
        %v1147 = vld [vmem:[%s1136 + $0x50] sm:$0xff]
        %v1148 = vld [vmem:[%s1136 + $0x58] sm:$0xff]
        %v1149 = vld [vmem:[%s1136 + $0x60] sm:$0xff]
        %v1150 = vld [vmem:[%s1136 + $0x68] sm:$0xff]
        %v1151 = vld [vmem:[%s1136 + $0x70] sm:$0xff]
        %v1152 = vld [vmem:[%s1136 + $0x78] sm:$0xff]
        %v1153 = vld [vmem:[%s1136 + $0x80] sm:$0xff]
        %v1154 = vld [vmem:[%s1136 + $0x88] sm:$0xff]
        %v1155 = vld [vmem:[%s1136 + $0x90] sm:$0xff]
        %v1156 = vld [vmem:[%s1136 + $0x98] sm:$0xff]
        %v1157 = vld [vmem:[%s1136 + $0xa0] sm:$0xff]
        %v1158 = vld [vmem:[%s1136 + $0xa8] sm:$0xff]
        %v1159 = vld [vmem:[%s1136 + $0xb0] sm:$0xff]
        %v1160 = vld [vmem:[%s1136 + $0xb8] sm:$0xff]
        %v1161 = vld [vmem:[%s1136 + $0xc0] sm:$0xff]
        %v1162 = vld [vmem:[%s1136 + $0xc8] sm:$0xff]
        %v1163 = vld [vmem:[%s1136 + $0xd0] sm:$0xff]
        %v1164 = vld [vmem:[%s1136 + $0xd8] sm:$0xff]
        %v1165 = vld [vmem:[%s1136 + $0xe0] sm:$0xff]
        %v1166 = vld [vmem:[%s1136 + $0xe8] sm:$0xff]
        %v1167 = vld [vmem:[%s1136 + $0xf0] sm:$0xff]
        %v1168 = vld [vmem:[%s1136 + $0xf8] sm:$0xff]
        %v1169 = vld [vmem:[%s1136 + $0x100] sm:$0xff]
        %v1170 = vld [vmem:[%s1136 + $0x108] sm:$0xff]
        %v1171 = vld [vmem:[%s1136 + $0x110] sm:$0xff]
        %v1172 = vld [vmem:[%s1136 + $0x118] sm:$0xff]
        %v1173 = vld [vmem:[%s1136 + $0x120] sm:$0xff]
        %v1174 = vld [vmem:[%s1136 + $0x128] sm:$0xff]
        %v1175 = vld [vmem:[%s1136 + $0x130] sm:$0xff]
        %v1176 = vld [vmem:[%s1136 + $0x138] sm:$0xff]
        %v1177 = vld [vmem:[%s1136 + $0x140] sm:$0xff]
        %v1178 = vld [vmem:[%s1136 + $0x148] sm:$0xff]
        %v1179 = vld [vmem:[%s1136 + $0x150] sm:$0xff]
        %v1180 = vld [vmem:[%s1136 + $0x158] sm:$0xff]
        %v1181 = vld [vmem:[%s1136 + $0x160] sm:$0xff]
        %v1182 = vld [vmem:[%s1136 + $0x168] sm:$0xff]
        %v1183 = vld [vmem:[%s1136 + $0x170] sm:$0xff]
        %v1184 = vld [vmem:[%s1136 + $0x178] sm:$0xff]
        %v1185 = vmul.f32 %v1088, %v1137
        %v1186 = vmul.f32 %v1089, %v1138
        %v1187 = vmul.f32 %v1090, %v1139
        %v1188 = vmul.f32 %v1091, %v1140
        %v1189 = vmul.f32 %v1092, %v1141
        %v1190 = vmul.f32 %v1093, %v1142
        %v1191 = vmul.f32 %v1094, %v1143
        %v1192 = vmul.f32 %v1095, %v1144
        %v1193 = vmul.f32 %v1096, %v1145
        %v1194 = vmul.f32 %v1097, %v1146
        %v1195 = vmul.f32 %v1098, %v1147
        %v1196 = vmul.f32 %v1099, %v1148
        %v1197 = vmul.f32 %v1100, %v1149
        %v1198 = vmul.f32 %v1101, %v1150
        %v1199 = vmul.f32 %v1102, %v1151
        %v1200 = vmul.f32 %v1103, %v1152
        %v1201 = vmul.f32 %v1104, %v1153
        %v1202 = vmul.f32 %v1105, %v1154
        %v1203 = vmul.f32 %v1106, %v1155
        %v1204 = vmul.f32 %v1107, %v1156
        %v1205 = vmul.f32 %v1108, %v1157
        %v1206 = vmul.f32 %v1109, %v1158
        %v1207 = vmul.f32 %v1110, %v1159
        %v1208 = vmul.f32 %v1111, %v1160
        %v1209 = vmul.f32 %v1112, %v1161
        %v1210 = vmul.f32 %v1113, %v1162
        %v1211 = vmul.f32 %v1114, %v1163
        %v1212 = vmul.f32 %v1115, %v1164
        %v1213 = vmul.f32 %v1116, %v1165
        %v1214 = vmul.f32 %v1117, %v1166
        %v1215 = vmul.f32 %v1118, %v1167
        %v1216 = vmul.f32 %v1119, %v1168
        %v1217 = vmul.f32 %v1120, %v1169
        %v1218 = vmul.f32 %v1121, %v1170
        %v1219 = vmul.f32 %v1122, %v1171
        %v1220 = vmul.f32 %v1123, %v1172
        %v1221 = vmul.f32 %v1124, %v1173
        %v1222 = vmul.f32 %v1125, %v1174
        %v1223 = vmul.f32 %v1126, %v1175
        %v1224 = vmul.f32 %v1127, %v1176
        %v1225 = vmul.f32 %v1128, %v1177
        %v1226 = vmul.f32 %v1129, %v1178
        %v1227 = vmul.f32 %v1130, %v1179
        %v1228 = vmul.f32 %v1131, %v1180
        %v1229 = vmul.f32 %v1132, %v1181
        %v1230 = vmul.f32 %v1133, %v1182
        %v1231 = vmul.f32 %v1134, %v1183
        %v1232 = vmul.f32 %v1135, %v1184
        %1233 = vrot.lane.b32.xlu0 %v1088, 17
        %v1234 = vpop.permute.xlu0 %1233
        %1235 = vrot.lane.b32.xlu0 %v1096, 17
        %v1236 = vpop.permute.xlu0 %1235
        %1237 = vrot.lane.b32.xlu0 %v1104, 17
        %v1238 = vpop.permute.xlu0 %1237
        %1239 = vrot.lane.b32.xlu0 %v1112, 17
        %v1240 = vpop.permute.xlu0 %1239
        %1241 = vrot.lane.b32.xlu0 %v1120, 17
        %v1242 = vpop.permute.xlu0 %1241
        %1243 = vrot.lane.b32.xlu0 %v1128, 17
        %v1244 = vpop.permute.xlu0 %1243
        %1245 = vrot.lane.b32.xlu0 %v1089, 17
        %v1246 = vpop.permute.xlu0 %1245
        %1247 = vrot.lane.b32.xlu0 %v1097, 17
        %v1248 = vpop.permute.xlu0 %1247
        %1249 = vrot.lane.b32.xlu0 %v1105, 17
        %v1250 = vpop.permute.xlu0 %1249
        %1251 = vrot.lane.b32.xlu0 %v1113, 17
        %v1252 = vpop.permute.xlu0 %1251
        %1253 = vrot.lane.b32.xlu0 %v1121, 17
        %v1254 = vpop.permute.xlu0 %1253
        %1255 = vrot.lane.b32.xlu0 %v1129, 17
        %v1256 = vpop.permute.xlu0 %1255
        %1257 = vrot.lane.b32.xlu0 %v1090, 17
        %v1258 = vpop.permute.xlu0 %1257
        %1259 = vrot.lane.b32.xlu0 %v1098, 17
        %v1260 = vpop.permute.xlu0 %1259
        %1261 = vrot.lane.b32.xlu0 %v1106, 17
        %v1262 = vpop.permute.xlu0 %1261
        %1263 = vrot.lane.b32.xlu0 %v1114, 17
        %v1264 = vpop.permute.xlu0 %1263
        %1265 = vrot.lane.b32.xlu0 %v1122, 17
        %v1266 = vpop.permute.xlu0 %1265
        %1267 = vrot.lane.b32.xlu0 %v1130, 17
        %v1268 = vpop.permute.xlu0 %1267
        %1269 = vrot.lane.b32.xlu0 %v1091, 17
        %v1270 = vpop.permute.xlu0 %1269
        %1271 = vrot.lane.b32.xlu0 %v1099, 17
        %v1272 = vpop.permute.xlu0 %1271
        %1273 = vrot.lane.b32.xlu0 %v1107, 17
        %v1274 = vpop.permute.xlu0 %1273
        %1275 = vrot.lane.b32.xlu0 %v1115, 17
        %v1276 = vpop.permute.xlu0 %1275
        %1277 = vrot.lane.b32.xlu0 %v1123, 17
        %v1278 = vpop.permute.xlu0 %1277
        %1279 = vrot.lane.b32.xlu0 %v1131, 17
        %v1280 = vpop.permute.xlu0 %1279
        %1281 = vrot.lane.b32.xlu0 %v1092, 17
        %v1282 = vpop.permute.xlu0 %1281
        %1283 = vrot.lane.b32.xlu0 %v1100, 17
        %v1284 = vpop.permute.xlu0 %1283
        %1285 = vrot.lane.b32.xlu0 %v1108, 17
        %v1286 = vpop.permute.xlu0 %1285
        %1287 = vrot.lane.b32.xlu0 %v1116, 17
        %v1288 = vpop.permute.xlu0 %1287
        %1289 = vrot.lane.b32.xlu0 %v1124, 17
        %v1290 = vpop.permute.xlu0 %1289
        %1291 = vrot.lane.b32.xlu0 %v1132, 17
        %v1292 = vpop.permute.xlu0 %1291
        %1293 = vrot.lane.b32.xlu0 %v1093, 17
        %v1294 = vpop.permute.xlu0 %1293
        %1295 = vrot.lane.b32.xlu0 %v1101, 17
        %v1296 = vpop.permute.xlu0 %1295
        %1297 = vrot.lane.b32.xlu0 %v1109, 17
        %v1298 = vpop.permute.xlu0 %1297
        %1299 = vrot.lane.b32.xlu0 %v1117, 17
        %v1300 = vpop.permute.xlu0 %1299
        %1301 = vrot.lane.b32.xlu0 %v1125, 17
        %v1302 = vpop.permute.xlu0 %1301
        %1303 = vrot.lane.b32.xlu0 %v1133, 17
        %v1304 = vpop.permute.xlu0 %1303
        %1305 = vrot.lane.b32.xlu0 %v1094, 17
        %v1306 = vpop.permute.xlu0 %1305
        %1307 = vrot.lane.b32.xlu0 %v1102, 17
        %v1308 = vpop.permute.xlu0 %1307
        %1309 = vrot.lane.b32.xlu0 %v1110, 17
        %v1310 = vpop.permute.xlu0 %1309
        %1311 = vrot.lane.b32.xlu0 %v1118, 17
        %v1312 = vpop.permute.xlu0 %1311
        %1313 = vrot.lane.b32.xlu0 %v1126, 17
        %v1314 = vpop.permute.xlu0 %1313
        %1315 = vrot.lane.b32.xlu0 %v1134, 17
        %v1316 = vpop.permute.xlu0 %1315
        %1317 = vrot.lane.b32.xlu0 %v1095, 17
        %v1318 = vpop.permute.xlu0 %1317
        %1319 = vrot.lane.b32.xlu0 %v1103, 17
        %v1320 = vpop.permute.xlu0 %1319
        %1321 = vrot.lane.b32.xlu0 %v1111, 17
        %v1322 = vpop.permute.xlu0 %1321
        %1323 = vrot.lane.b32.xlu0 %v1119, 17
        %v1324 = vpop.permute.xlu0 %1323
        %1325 = vrot.lane.b32.xlu0 %v1127, 17
        %v1326 = vpop.permute.xlu0 %1325
        %1327 = vrot.lane.b32.xlu0 %v1135, 17
        %v1328 = vpop.permute.xlu0 %1327
        %v1329 = vlaneseq
        %v1330 = vand.u32 %v1329, 127
        %vm1331 = vcmp.lt.s32.totalorder %v1330, 17
        %v1332 = vsel %vm1331, %v1306, %v1318
        %v1333 = vsel %vm1331, %v1308, %v1320
        %v1334 = vsel %vm1331, %v1310, %v1322
        %v1335 = vsel %vm1331, %v1312, %v1324
        %v1336 = vsel %vm1331, %v1314, %v1326
        %v1337 = vsel %vm1331, %v1316, %v1328
        %v1338 = vsel %vm1331, %v1294, %v1306
        %v1339 = vsel %vm1331, %v1296, %v1308
        %v1340 = vsel %vm1331, %v1298, %v1310
        %v1341 = vsel %vm1331, %v1300, %v1312
        %v1342 = vsel %vm1331, %v1302, %v1314
        %v1343 = vsel %vm1331, %v1304, %v1316
        %v1344 = vsel %vm1331, %v1282, %v1294
        %v1345 = vsel %vm1331, %v1284, %v1296
        %v1346 = vsel %vm1331, %v1286, %v1298
        %v1347 = vsel %vm1331, %v1288, %v1300
        %v1348 = vsel %vm1331, %v1290, %v1302
        %v1349 = vsel %vm1331, %v1292, %v1304
        %v1350 = vsel %vm1331, %v1270, %v1282
        %v1351 = vsel %vm1331, %v1272, %v1284
        %v1352 = vsel %vm1331, %v1274, %v1286
        %v1353 = vsel %vm1331, %v1276, %v1288
        %v1354 = vsel %vm1331, %v1278, %v1290
        %v1355 = vsel %vm1331, %v1280, %v1292
        %v1356 = vsel %vm1331, %v1258, %v1270
        %v1357 = vsel %vm1331, %v1260, %v1272
        %v1358 = vsel %vm1331, %v1262, %v1274
        %v1359 = vsel %vm1331, %v1264, %v1276
        %v1360 = vsel %vm1331, %v1266, %v1278
        %v1361 = vsel %vm1331, %v1268, %v1280
        %v1362 = vsel %vm1331, %v1246, %v1258
        %v1363 = vsel %vm1331, %v1248, %v1260
        %v1364 = vsel %vm1331, %v1250, %v1262
        %v1365 = vsel %vm1331, %v1252, %v1264
        %v1366 = vsel %vm1331, %v1254, %v1266
        %v1367 = vsel %vm1331, %v1256, %v1268
        %v1368 = vsel %vm1331, %v1234, %v1246
        %v1369 = vsel %vm1331, %v1236, %v1248
        %v1370 = vsel %vm1331, %v1238, %v1250
        %v1371 = vsel %vm1331, %v1240, %v1252
        %v1372 = vsel %vm1331, %v1242, %v1254
        %v1373 = vsel %vm1331, %v1244, %v1256
        %v1374 = vsel %vm1331, %v1318, %v1234
        %v1375 = vsel %vm1331, %v1320, %v1236
        %v1376 = vsel %vm1331, %v1322, %v1238
        %v1377 = vsel %vm1331, %v1324, %v1240
        %v1378 = vsel %vm1331, %v1326, %v1242
        %v1379 = vsel %vm1331, %v1328, %v1244
        %v1380 = vld [vmem:[#allocation5] sm:$0xff]
        %v1381 = vld [vmem:[#allocation5 + $0x8] sm:$0xff]
        %v1382 = vld [vmem:[#allocation5 + $0x10] sm:$0xff]
        %v1383 = vld [vmem:[#allocation5 + $0x18] sm:$0xff]
        %v1384 = vld [vmem:[#allocation5 + $0x20] sm:$0xff]
        %v1385 = vld [vmem:[#allocation5 + $0x28] sm:$0xff]
        %v1386 = vld [vmem:[#allocation5 + $0x30] sm:$0xff]
        %v1387 = vld [vmem:[#allocation5 + $0x38] sm:$0xff]
        %v1388 = vld [vmem:[#allocation5 + $0x40] sm:$0xff]
        %v1389 = vld [vmem:[#allocation5 + $0x48] sm:$0xff]
        %v1390 = vld [vmem:[#allocation5 + $0x50] sm:$0xff]
        %v1391 = vld [vmem:[#allocation5 + $0x58] sm:$0xff]
        %v1392 = vld [vmem:[#allocation5 + $0x60] sm:$0xff]
        %v1393 = vld [vmem:[#allocation5 + $0x68] sm:$0xff]
        %v1394 = vld [vmem:[#allocation5 + $0x70] sm:$0xff]
        %v1395 = vld [vmem:[#allocation5 + $0x78] sm:$0xff]
        %v1396 = vld [vmem:[#allocation5 + $0x80] sm:$0xff]
        %v1397 = vld [vmem:[#allocation5 + $0x88] sm:$0xff]
        %v1398 = vld [vmem:[#allocation5 + $0x90] sm:$0xff]
        %v1399 = vld [vmem:[#allocation5 + $0x98] sm:$0xff]
        %v1400 = vld [vmem:[#allocation5 + $0xa0] sm:$0xff]
        %v1401 = vld [vmem:[#allocation5 + $0xa8] sm:$0xff]
        %v1402 = vld [vmem:[#allocation5 + $0xb0] sm:$0xff]
        %v1403 = vld [vmem:[#allocation5 + $0xb8] sm:$0xff]
        %v1404 = vld [vmem:[#allocation5 + $0xc0] sm:$0xff]
        %v1405 = vld [vmem:[#allocation5 + $0xc8] sm:$0xff]
        %v1406 = vld [vmem:[#allocation5 + $0xd0] sm:$0xff]
        %v1407 = vld [vmem:[#allocation5 + $0xd8] sm:$0xff]
        %v1408 = vld [vmem:[#allocation5 + $0xe0] sm:$0xff]
        %v1409 = vld [vmem:[#allocation5 + $0xe8] sm:$0xff]
        %v1410 = vld [vmem:[#allocation5 + $0xf0] sm:$0xff]
        %v1411 = vld [vmem:[#allocation5 + $0xf8] sm:$0xff]
        %v1412 = vld [vmem:[#allocation5 + $0x100] sm:$0xff]
        %v1413 = vld [vmem:[#allocation5 + $0x108] sm:$0xff]
        %v1414 = vld [vmem:[#allocation5 + $0x110] sm:$0xff]
        %v1415 = vld [vmem:[#allocation5 + $0x118] sm:$0xff]
        %v1416 = vld [vmem:[#allocation5 + $0x120] sm:$0xff]
        %v1417 = vld [vmem:[#allocation5 + $0x128] sm:$0xff]
        %v1418 = vld [vmem:[#allocation5 + $0x130] sm:$0xff]
        %v1419 = vld [vmem:[#allocation5 + $0x138] sm:$0xff]
        %v1420 = vld [vmem:[#allocation5 + $0x140] sm:$0xff]
        %v1421 = vld [vmem:[#allocation5 + $0x148] sm:$0xff]
        %v1422 = vld [vmem:[#allocation5 + $0x150] sm:$0xff]
        %v1423 = vld [vmem:[#allocation5 + $0x158] sm:$0xff]
        %v1424 = vld [vmem:[#allocation5 + $0x160] sm:$0xff]
        %v1425 = vld [vmem:[#allocation5 + $0x168] sm:$0xff]
        %v1426 = vld [vmem:[#allocation5 + $0x170] sm:$0xff]
        %v1427 = vld [vmem:[#allocation5 + $0x178] sm:$0xff]
        %v1428 = vmul.f32 %v1374, %v1380
        %v1429 = vmul.f32 %v1368, %v1381
        %v1430 = vmul.f32 %v1362, %v1382
        %v1431 = vmul.f32 %v1356, %v1383
        %v1432 = vmul.f32 %v1350, %v1384
        %v1433 = vmul.f32 %v1344, %v1385
        %v1434 = vmul.f32 %v1338, %v1386
        %v1435 = vmul.f32 %v1332, %v1387
        %v1436 = vmul.f32 %v1375, %v1388
        %v1437 = vmul.f32 %v1369, %v1389
        %v1438 = vmul.f32 %v1363, %v1390
        %v1439 = vmul.f32 %v1357, %v1391
        %v1440 = vmul.f32 %v1351, %v1392
        %v1441 = vmul.f32 %v1345, %v1393
        %v1442 = vmul.f32 %v1339, %v1394
        %v1443 = vmul.f32 %v1333, %v1395
        %v1444 = vmul.f32 %v1376, %v1396
        %v1445 = vmul.f32 %v1370, %v1397
        %v1446 = vmul.f32 %v1364, %v1398
        %v1447 = vmul.f32 %v1358, %v1399
        %v1448 = vmul.f32 %v1352, %v1400
        %v1449 = vmul.f32 %v1346, %v1401
        %v1450 = vmul.f32 %v1340, %v1402
        %v1451 = vmul.f32 %v1334, %v1403
        %v1452 = vmul.f32 %v1377, %v1404
        %v1453 = vmul.f32 %v1371, %v1405
        %v1454 = vmul.f32 %v1365, %v1406
        %v1455 = vmul.f32 %v1359, %v1407
        %v1456 = vmul.f32 %v1353, %v1408
        %v1457 = vmul.f32 %v1347, %v1409
        %v1458 = vmul.f32 %v1341, %v1410
        %v1459 = vmul.f32 %v1335, %v1411
        %v1460 = vmul.f32 %v1378, %v1412
        %v1461 = vmul.f32 %v1372, %v1413
        %v1462 = vmul.f32 %v1366, %v1414
        %v1463 = vmul.f32 %v1360, %v1415
        %v1464 = vmul.f32 %v1354, %v1416
        %v1465 = vmul.f32 %v1348, %v1417
        %v1466 = vmul.f32 %v1342, %v1418
        %v1467 = vmul.f32 %v1336, %v1419
        %v1468 = vmul.f32 %v1379, %v1420
        %v1469 = vmul.f32 %v1373, %v1421
        %v1470 = vmul.f32 %v1367, %v1422
        %v1471 = vmul.f32 %v1361, %v1423
        %v1472 = vmul.f32 %v1355, %v1424
        %v1473 = vmul.f32 %v1349, %v1425
        %v1474 = vmul.f32 %v1343, %v1426
        %v1475 = vmul.f32 %v1337, %v1427
        %v1476 = vadd.f32 %v1185, %v1428
        %v1477 = vadd.f32 %v1186, %v1429
        %v1478 = vadd.f32 %v1187, %v1430
        %v1479 = vadd.f32 %v1188, %v1431
        %v1480 = vadd.f32 %v1189, %v1432
        %v1481 = vadd.f32 %v1190, %v1433
        %v1482 = vadd.f32 %v1191, %v1434
        %v1483 = vadd.f32 %v1192, %v1435
        %v1484 = vadd.f32 %v1193, %v1436
        %v1485 = vadd.f32 %v1194, %v1437
        %v1486 = vadd.f32 %v1195, %v1438
        %v1487 = vadd.f32 %v1196, %v1439
        %v1488 = vadd.f32 %v1197, %v1440
        %v1489 = vadd.f32 %v1198, %v1441
        %v1490 = vadd.f32 %v1199, %v1442
        %v1491 = vadd.f32 %v1200, %v1443
        %v1492 = vadd.f32 %v1201, %v1444
        %v1493 = vadd.f32 %v1202, %v1445
        %v1494 = vadd.f32 %v1203, %v1446
        %v1495 = vadd.f32 %v1204, %v1447
        %v1496 = vadd.f32 %v1205, %v1448
        %v1497 = vadd.f32 %v1206, %v1449
        %v1498 = vadd.f32 %v1207, %v1450
        %v1499 = vadd.f32 %v1208, %v1451
        %v1500 = vadd.f32 %v1209, %v1452
        %v1501 = vadd.f32 %v1210, %v1453
        %v1502 = vadd.f32 %v1211, %v1454
        %v1503 = vadd.f32 %v1212, %v1455
        %v1504 = vadd.f32 %v1213, %v1456
        %v1505 = vadd.f32 %v1214, %v1457
        %v1506 = vadd.f32 %v1215, %v1458
        %v1507 = vadd.f32 %v1216, %v1459
        %v1508 = vadd.f32 %v1217, %v1460
        %v1509 = vadd.f32 %v1218, %v1461
        %v1510 = vadd.f32 %v1219, %v1462
        %v1511 = vadd.f32 %v1220, %v1463
        %v1512 = vadd.f32 %v1221, %v1464
        %v1513 = vadd.f32 %v1222, %v1465
        %v1514 = vadd.f32 %v1223, %v1466
        %v1515 = vadd.f32 %v1224, %v1467
        %v1516 = vadd.f32 %v1225, %v1468
        %v1517 = vadd.f32 %v1226, %v1469
        %v1518 = vadd.f32 %v1227, %v1470
        %v1519 = vadd.f32 %v1228, %v1471
        %v1520 = vadd.f32 %v1229, %v1472
        %v1521 = vadd.f32 %v1230, %v1473
        %v1522 = vadd.f32 %v1231, %v1474
        %v1523 = vadd.f32 %v1232, %v1475
        %1524 = vrot.lane.b32.xlu0 %v1088, 16
        %v1525 = vpop.permute.xlu0 %1524
        %1526 = vrot.lane.b32.xlu0 %v1096, 16
        %v1527 = vpop.permute.xlu0 %1526
        %1528 = vrot.lane.b32.xlu0 %v1104, 16
        %v1529 = vpop.permute.xlu0 %1528
        %1530 = vrot.lane.b32.xlu0 %v1112, 16
        %v1531 = vpop.permute.xlu0 %1530
        %1532 = vrot.lane.b32.xlu0 %v1120, 16
        %v1533 = vpop.permute.xlu0 %1532
        %1534 = vrot.lane.b32.xlu0 %v1128, 16
        %v1535 = vpop.permute.xlu0 %1534
        %1536 = vrot.lane.b32.xlu0 %v1089, 16
        %v1537 = vpop.permute.xlu0 %1536
        %1538 = vrot.lane.b32.xlu0 %v1097, 16
        %v1539 = vpop.permute.xlu0 %1538
        %1540 = vrot.lane.b32.xlu0 %v1105, 16
        %v1541 = vpop.permute.xlu0 %1540
        %1542 = vrot.lane.b32.xlu0 %v1113, 16
        %v1543 = vpop.permute.xlu0 %1542
        %1544 = vrot.lane.b32.xlu0 %v1121, 16
        %v1545 = vpop.permute.xlu0 %1544
        %1546 = vrot.lane.b32.xlu0 %v1129, 16
        %v1547 = vpop.permute.xlu0 %1546
        %1548 = vrot.lane.b32.xlu0 %v1090, 16
        %v1549 = vpop.permute.xlu0 %1548
        %1550 = vrot.lane.b32.xlu0 %v1098, 16
        %v1551 = vpop.permute.xlu0 %1550
        %1552 = vrot.lane.b32.xlu0 %v1106, 16
        %v1553 = vpop.permute.xlu0 %1552
        %1554 = vrot.lane.b32.xlu0 %v1114, 16
        %v1555 = vpop.permute.xlu0 %1554
        %1556 = vrot.lane.b32.xlu0 %v1122, 16
        %v1557 = vpop.permute.xlu0 %1556
        %1558 = vrot.lane.b32.xlu0 %v1130, 16
        %v1559 = vpop.permute.xlu0 %1558
        %1560 = vrot.lane.b32.xlu0 %v1091, 16
        %v1561 = vpop.permute.xlu0 %1560
        %1562 = vrot.lane.b32.xlu0 %v1099, 16
        %v1563 = vpop.permute.xlu0 %1562
        %1564 = vrot.lane.b32.xlu0 %v1107, 16
        %v1565 = vpop.permute.xlu0 %1564
        %1566 = vrot.lane.b32.xlu0 %v1115, 16
        %v1567 = vpop.permute.xlu0 %1566
        %1568 = vrot.lane.b32.xlu0 %v1123, 16
        %v1569 = vpop.permute.xlu0 %1568
        %1570 = vrot.lane.b32.xlu0 %v1131, 16
        %v1571 = vpop.permute.xlu0 %1570
        %1572 = vrot.lane.b32.xlu0 %v1092, 16
        %v1573 = vpop.permute.xlu0 %1572
        %1574 = vrot.lane.b32.xlu0 %v1100, 16
        %v1575 = vpop.permute.xlu0 %1574
        %1576 = vrot.lane.b32.xlu0 %v1108, 16
        %v1577 = vpop.permute.xlu0 %1576
        %1578 = vrot.lane.b32.xlu0 %v1116, 16
        %v1579 = vpop.permute.xlu0 %1578
        %1580 = vrot.lane.b32.xlu0 %v1124, 16
        %v1581 = vpop.permute.xlu0 %1580
        %1582 = vrot.lane.b32.xlu0 %v1132, 16
        %v1583 = vpop.permute.xlu0 %1582
        %1584 = vrot.lane.b32.xlu0 %v1093, 16
        %v1585 = vpop.permute.xlu0 %1584
        %1586 = vrot.lane.b32.xlu0 %v1101, 16
        %v1587 = vpop.permute.xlu0 %1586
        %1588 = vrot.lane.b32.xlu0 %v1109, 16
        %v1589 = vpop.permute.xlu0 %1588
        %1590 = vrot.lane.b32.xlu0 %v1117, 16
        %v1591 = vpop.permute.xlu0 %1590
        %1592 = vrot.lane.b32.xlu0 %v1125, 16
        %v1593 = vpop.permute.xlu0 %1592
        %1594 = vrot.lane.b32.xlu0 %v1133, 16
        %v1595 = vpop.permute.xlu0 %1594
        %1596 = vrot.lane.b32.xlu0 %v1094, 16
        %v1597 = vpop.permute.xlu0 %1596
        %1598 = vrot.lane.b32.xlu0 %v1102, 16
        %v1599 = vpop.permute.xlu0 %1598
        %1600 = vrot.lane.b32.xlu0 %v1110, 16
        %v1601 = vpop.permute.xlu0 %1600
        %1602 = vrot.lane.b32.xlu0 %v1118, 16
        %v1603 = vpop.permute.xlu0 %1602
        %1604 = vrot.lane.b32.xlu0 %v1126, 16
        %v1605 = vpop.permute.xlu0 %1604
        %1606 = vrot.lane.b32.xlu0 %v1134, 16
        %v1607 = vpop.permute.xlu0 %1606
        %1608 = vrot.lane.b32.xlu0 %v1095, 16
        %v1609 = vpop.permute.xlu0 %1608
        %1610 = vrot.lane.b32.xlu0 %v1103, 16
        %v1611 = vpop.permute.xlu0 %1610
        %1612 = vrot.lane.b32.xlu0 %v1111, 16
        %v1613 = vpop.permute.xlu0 %1612
        %1614 = vrot.lane.b32.xlu0 %v1119, 16
        %v1615 = vpop.permute.xlu0 %1614
        %1616 = vrot.lane.b32.xlu0 %v1127, 16
        %v1617 = vpop.permute.xlu0 %1616
        %1618 = vrot.lane.b32.xlu0 %v1135, 16
        %v1619 = vpop.permute.xlu0 %1618
        %vm1620 = vcmp.lt.s32.totalorder %v1330, 16
        %v1621 = vsel %vm1620, %v1597, %v1609
        %v1622 = vsel %vm1620, %v1599, %v1611
        %v1623 = vsel %vm1620, %v1601, %v1613
        %v1624 = vsel %vm1620, %v1603, %v1615
        %v1625 = vsel %vm1620, %v1605, %v1617
        %v1626 = vsel %vm1620, %v1607, %v1619
        %v1627 = vsel %vm1620, %v1585, %v1597
        %v1628 = vsel %vm1620, %v1587, %v1599
        %v1629 = vsel %vm1620, %v1589, %v1601
        %v1630 = vsel %vm1620, %v1591, %v1603
        %v1631 = vsel %vm1620, %v1593, %v1605
        %v1632 = vsel %vm1620, %v1595, %v1607
        %v1633 = vsel %vm1620, %v1573, %v1585
        %v1634 = vsel %vm1620, %v1575, %v1587
        %v1635 = vsel %vm1620, %v1577, %v1589
        %v1636 = vsel %vm1620, %v1579, %v1591
        %v1637 = vsel %vm1620, %v1581, %v1593
        %v1638 = vsel %vm1620, %v1583, %v1595
        %v1639 = vsel %vm1620, %v1561, %v1573
        %v1640 = vsel %vm1620, %v1563, %v1575
        %v1641 = vsel %vm1620, %v1565, %v1577
        %v1642 = vsel %vm1620, %v1567, %v1579
        %v1643 = vsel %vm1620, %v1569, %v1581
        %v1644 = vsel %vm1620, %v1571, %v1583
        %v1645 = vsel %vm1620, %v1549, %v1561
        %v1646 = vsel %vm1620, %v1551, %v1563
        %v1647 = vsel %vm1620, %v1553, %v1565
        %v1648 = vsel %vm1620, %v1555, %v1567
        %v1649 = vsel %vm1620, %v1557, %v1569
        %v1650 = vsel %vm1620, %v1559, %v1571
        %v1651 = vsel %vm1620, %v1537, %v1549
        %v1652 = vsel %vm1620, %v1539, %v1551
        %v1653 = vsel %vm1620, %v1541, %v1553
        %v1654 = vsel %vm1620, %v1543, %v1555
        %v1655 = vsel %vm1620, %v1545, %v1557
        %v1656 = vsel %vm1620, %v1547, %v1559
        %v1657 = vsel %vm1620, %v1525, %v1537
        %v1658 = vsel %vm1620, %v1527, %v1539
        %v1659 = vsel %vm1620, %v1529, %v1541
        %v1660 = vsel %vm1620, %v1531, %v1543
        %v1661 = vsel %vm1620, %v1533, %v1545
        %v1662 = vsel %vm1620, %v1535, %v1547
        %v1663 = vsel %vm1620, %v1609, %v1525
        %v1664 = vsel %vm1620, %v1611, %v1527
        %v1665 = vsel %vm1620, %v1613, %v1529
        %v1666 = vsel %vm1620, %v1615, %v1531
        %v1667 = vsel %vm1620, %v1617, %v1533
        %v1668 = vsel %vm1620, %v1619, %v1535
        %s1669 = scalar_lea.vmem [#allocation5], 384
        %v1670 = vld [vmem:[%s1669] sm:$0xff]
        %v1671 = vld [vmem:[%s1669 + $0x8] sm:$0xff]
        %v1672 = vld [vmem:[%s1669 + $0x10] sm:$0xff]
        %v1673 = vld [vmem:[%s1669 + $0x18] sm:$0xff]
        %v1674 = vld [vmem:[%s1669 + $0x20] sm:$0xff]
        %v1675 = vld [vmem:[%s1669 + $0x28] sm:$0xff]
        %v1676 = vld [vmem:[%s1669 + $0x30] sm:$0xff]
        %v1677 = vld [vmem:[%s1669 + $0x38] sm:$0xff]
        %v1678 = vld [vmem:[%s1669 + $0x40] sm:$0xff]
        %v1679 = vld [vmem:[%s1669 + $0x48] sm:$0xff]
        %v1680 = vld [vmem:[%s1669 + $0x50] sm:$0xff]
        %v1681 = vld [vmem:[%s1669 + $0x58] sm:$0xff]
        %v1682 = vld [vmem:[%s1669 + $0x60] sm:$0xff]
        %v1683 = vld [vmem:[%s1669 + $0x68] sm:$0xff]
        %v1684 = vld [vmem:[%s1669 + $0x70] sm:$0xff]
        %v1685 = vld [vmem:[%s1669 + $0x78] sm:$0xff]
        %v1686 = vld [vmem:[%s1669 + $0x80] sm:$0xff]
        %v1687 = vld [vmem:[%s1669 + $0x88] sm:$0xff]
        %v1688 = vld [vmem:[%s1669 + $0x90] sm:$0xff]
        %v1689 = vld [vmem:[%s1669 + $0x98] sm:$0xff]
        %v1690 = vld [vmem:[%s1669 + $0xa0] sm:$0xff]
        %v1691 = vld [vmem:[%s1669 + $0xa8] sm:$0xff]
        %v1692 = vld [vmem:[%s1669 + $0xb0] sm:$0xff]
        %v1693 = vld [vmem:[%s1669 + $0xb8] sm:$0xff]
        %v1694 = vld [vmem:[%s1669 + $0xc0] sm:$0xff]
        %v1695 = vld [vmem:[%s1669 + $0xc8] sm:$0xff]
        %v1696 = vld [vmem:[%s1669 + $0xd0] sm:$0xff]
        %v1697 = vld [vmem:[%s1669 + $0xd8] sm:$0xff]
        %v1698 = vld [vmem:[%s1669 + $0xe0] sm:$0xff]
        %v1699 = vld [vmem:[%s1669 + $0xe8] sm:$0xff]
        %v1700 = vld [vmem:[%s1669 + $0xf0] sm:$0xff]
        %v1701 = vld [vmem:[%s1669 + $0xf8] sm:$0xff]
        %v1702 = vld [vmem:[%s1669 + $0x100] sm:$0xff]
        %v1703 = vld [vmem:[%s1669 + $0x108] sm:$0xff]
        %v1704 = vld [vmem:[%s1669 + $0x110] sm:$0xff]
        %v1705 = vld [vmem:[%s1669 + $0x118] sm:$0xff]
        %v1706 = vld [vmem:[%s1669 + $0x120] sm:$0xff]
        %v1707 = vld [vmem:[%s1669 + $0x128] sm:$0xff]
        %v1708 = vld [vmem:[%s1669 + $0x130] sm:$0xff]
        %v1709 = vld [vmem:[%s1669 + $0x138] sm:$0xff]
        %v1710 = vld [vmem:[%s1669 + $0x140] sm:$0xff]
        %v1711 = vld [vmem:[%s1669 + $0x148] sm:$0xff]
        %v1712 = vld [vmem:[%s1669 + $0x150] sm:$0xff]
        %v1713 = vld [vmem:[%s1669 + $0x158] sm:$0xff]
        %v1714 = vld [vmem:[%s1669 + $0x160] sm:$0xff]
        %v1715 = vld [vmem:[%s1669 + $0x168] sm:$0xff]
        %v1716 = vld [vmem:[%s1669 + $0x170] sm:$0xff]
        %v1717 = vld [vmem:[%s1669 + $0x178] sm:$0xff]
        %v1718 = vmul.f32 %v1663, %v1670
        %v1719 = vmul.f32 %v1657, %v1671
        %v1720 = vmul.f32 %v1651, %v1672
        %v1721 = vmul.f32 %v1645, %v1673
        %v1722 = vmul.f32 %v1639, %v1674
        %v1723 = vmul.f32 %v1633, %v1675
        %v1724 = vmul.f32 %v1627, %v1676
        %v1725 = vmul.f32 %v1621, %v1677
        %v1726 = vmul.f32 %v1664, %v1678
        %v1727 = vmul.f32 %v1658, %v1679
        %v1728 = vmul.f32 %v1652, %v1680
        %v1729 = vmul.f32 %v1646, %v1681
        %v1730 = vmul.f32 %v1640, %v1682
        %v1731 = vmul.f32 %v1634, %v1683
        %v1732 = vmul.f32 %v1628, %v1684
        %v1733 = vmul.f32 %v1622, %v1685
        %v1734 = vmul.f32 %v1665, %v1686
        %v1735 = vmul.f32 %v1659, %v1687
        %v1736 = vmul.f32 %v1653, %v1688
        %v1737 = vmul.f32 %v1647, %v1689
        %v1738 = vmul.f32 %v1641, %v1690
        %v1739 = vmul.f32 %v1635, %v1691
        %v1740 = vmul.f32 %v1629, %v1692
        %v1741 = vmul.f32 %v1623, %v1693
        %v1742 = vmul.f32 %v1666, %v1694
        %v1743 = vmul.f32 %v1660, %v1695
        %v1744 = vmul.f32 %v1654, %v1696
        %v1745 = vmul.f32 %v1648, %v1697
        %v1746 = vmul.f32 %v1642, %v1698
        %v1747 = vmul.f32 %v1636, %v1699
        %v1748 = vmul.f32 %v1630, %v1700
        %v1749 = vmul.f32 %v1624, %v1701
        %v1750 = vmul.f32 %v1667, %v1702
        %v1751 = vmul.f32 %v1661, %v1703
        %v1752 = vmul.f32 %v1655, %v1704
        %v1753 = vmul.f32 %v1649, %v1705
        %v1754 = vmul.f32 %v1643, %v1706
        %v1755 = vmul.f32 %v1637, %v1707
        %v1756 = vmul.f32 %v1631, %v1708
        %v1757 = vmul.f32 %v1625, %v1709
        %v1758 = vmul.f32 %v1668, %v1710
        %v1759 = vmul.f32 %v1662, %v1711
        %v1760 = vmul.f32 %v1656, %v1712
        %v1761 = vmul.f32 %v1650, %v1713
        %v1762 = vmul.f32 %v1644, %v1714
        %v1763 = vmul.f32 %v1638, %v1715
        %v1764 = vmul.f32 %v1632, %v1716
        %v1765 = vmul.f32 %v1626, %v1717
        %v1766 = vadd.f32 %v1476, %v1718
        %v1767 = vadd.f32 %v1477, %v1719
        %v1768 = vadd.f32 %v1478, %v1720
        %v1769 = vadd.f32 %v1479, %v1721
        %v1770 = vadd.f32 %v1480, %v1722
        %v1771 = vadd.f32 %v1481, %v1723
        %v1772 = vadd.f32 %v1482, %v1724
        %v1773 = vadd.f32 %v1483, %v1725
        %v1774 = vadd.f32 %v1484, %v1726
        %v1775 = vadd.f32 %v1485, %v1727
        %v1776 = vadd.f32 %v1486, %v1728
        %v1777 = vadd.f32 %v1487, %v1729
        %v1778 = vadd.f32 %v1488, %v1730
        %v1779 = vadd.f32 %v1489, %v1731
        %v1780 = vadd.f32 %v1490, %v1732
        %v1781 = vadd.f32 %v1491, %v1733
        %v1782 = vadd.f32 %v1492, %v1734
        %v1783 = vadd.f32 %v1493, %v1735
        %v1784 = vadd.f32 %v1494, %v1736
        %v1785 = vadd.f32 %v1495, %v1737
        %v1786 = vadd.f32 %v1496, %v1738
        %v1787 = vadd.f32 %v1497, %v1739
        %v1788 = vadd.f32 %v1498, %v1740
        %v1789 = vadd.f32 %v1499, %v1741
        %v1790 = vadd.f32 %v1500, %v1742
        %v1791 = vadd.f32 %v1501, %v1743
        %v1792 = vadd.f32 %v1502, %v1744
        %v1793 = vadd.f32 %v1503, %v1745
        %v1794 = vadd.f32 %v1504, %v1746
        %v1795 = vadd.f32 %v1505, %v1747
        %v1796 = vadd.f32 %v1506, %v1748
        %v1797 = vadd.f32 %v1507, %v1749
        %v1798 = vadd.f32 %v1508, %v1750
        %v1799 = vadd.f32 %v1509, %v1751
        %v1800 = vadd.f32 %v1510, %v1752
        %v1801 = vadd.f32 %v1511, %v1753
        %v1802 = vadd.f32 %v1512, %v1754
        %v1803 = vadd.f32 %v1513, %v1755
        %v1804 = vadd.f32 %v1514, %v1756
        %v1805 = vadd.f32 %v1515, %v1757
        %v1806 = vadd.f32 %v1516, %v1758
        %v1807 = vadd.f32 %v1517, %v1759
        %v1808 = vadd.f32 %v1518, %v1760
        %v1809 = vadd.f32 %v1519, %v1761
        %v1810 = vadd.f32 %v1520, %v1762
        %v1811 = vadd.f32 %v1521, %v1763
        %v1812 = vadd.f32 %v1522, %v1764
        %v1813 = vadd.f32 %v1523, %v1765
        %1814 = vrot.lane.b32.xlu0 %v1088, 15
        %v1815 = vpop.permute.xlu0 %1814
        %1816 = vrot.lane.b32.xlu0 %v1096, 15
        %v1817 = vpop.permute.xlu0 %1816
        %1818 = vrot.lane.b32.xlu0 %v1104, 15
        %v1819 = vpop.permute.xlu0 %1818
        %1820 = vrot.lane.b32.xlu0 %v1112, 15
        %v1821 = vpop.permute.xlu0 %1820
        %1822 = vrot.lane.b32.xlu0 %v1120, 15
        %v1823 = vpop.permute.xlu0 %1822
        %1824 = vrot.lane.b32.xlu0 %v1128, 15
        %v1825 = vpop.permute.xlu0 %1824
        %1826 = vrot.lane.b32.xlu0 %v1089, 15
        %v1827 = vpop.permute.xlu0 %1826
        %1828 = vrot.lane.b32.xlu0 %v1097, 15
        %v1829 = vpop.permute.xlu0 %1828
        %1830 = vrot.lane.b32.xlu0 %v1105, 15
        %v1831 = vpop.permute.xlu0 %1830
        %1832 = vrot.lane.b32.xlu0 %v1113, 15
        %v1833 = vpop.permute.xlu0 %1832
        %1834 = vrot.lane.b32.xlu0 %v1121, 15
        %v1835 = vpop.permute.xlu0 %1834
        %1836 = vrot.lane.b32.xlu0 %v1129, 15
        %v1837 = vpop.permute.xlu0 %1836
        %1838 = vrot.lane.b32.xlu0 %v1090, 15
        %v1839 = vpop.permute.xlu0 %1838
        %1840 = vrot.lane.b32.xlu0 %v1098, 15
        %v1841 = vpop.permute.xlu0 %1840
        %1842 = vrot.lane.b32.xlu0 %v1106, 15
        %v1843 = vpop.permute.xlu0 %1842
        %1844 = vrot.lane.b32.xlu0 %v1114, 15
        %v1845 = vpop.permute.xlu0 %1844
        %1846 = vrot.lane.b32.xlu0 %v1122, 15
        %v1847 = vpop.permute.xlu0 %1846
        %1848 = vrot.lane.b32.xlu0 %v1130, 15
        %v1849 = vpop.permute.xlu0 %1848
        %1850 = vrot.lane.b32.xlu0 %v1091, 15
        %v1851 = vpop.permute.xlu0 %1850
        %1852 = vrot.lane.b32.xlu0 %v1099, 15
        %v1853 = vpop.permute.xlu0 %1852
        %1854 = vrot.lane.b32.xlu0 %v1107, 15
        %v1855 = vpop.permute.xlu0 %1854
        %1856 = vrot.lane.b32.xlu0 %v1115, 15
        %v1857 = vpop.permute.xlu0 %1856
        %1858 = vrot.lane.b32.xlu0 %v1123, 15
        %v1859 = vpop.permute.xlu0 %1858
        %1860 = vrot.lane.b32.xlu0 %v1131, 15
        %v1861 = vpop.permute.xlu0 %1860
        %1862 = vrot.lane.b32.xlu0 %v1092, 15
        %v1863 = vpop.permute.xlu0 %1862
        %1864 = vrot.lane.b32.xlu0 %v1100, 15
        %v1865 = vpop.permute.xlu0 %1864
        %1866 = vrot.lane.b32.xlu0 %v1108, 15
        %v1867 = vpop.permute.xlu0 %1866
        %1868 = vrot.lane.b32.xlu0 %v1116, 15
        %v1869 = vpop.permute.xlu0 %1868
        %1870 = vrot.lane.b32.xlu0 %v1124, 15
        %v1871 = vpop.permute.xlu0 %1870
        %1872 = vrot.lane.b32.xlu0 %v1132, 15
        %v1873 = vpop.permute.xlu0 %1872
        %1874 = vrot.lane.b32.xlu0 %v1093, 15
        %v1875 = vpop.permute.xlu0 %1874
        %1876 = vrot.lane.b32.xlu0 %v1101, 15
        %v1877 = vpop.permute.xlu0 %1876
        %1878 = vrot.lane.b32.xlu0 %v1109, 15
        %v1879 = vpop.permute.xlu0 %1878
        %1880 = vrot.lane.b32.xlu0 %v1117, 15
        %v1881 = vpop.permute.xlu0 %1880
        %1882 = vrot.lane.b32.xlu0 %v1125, 15
        %v1883 = vpop.permute.xlu0 %1882
        %1884 = vrot.lane.b32.xlu0 %v1133, 15
        %v1885 = vpop.permute.xlu0 %1884
        %1886 = vrot.lane.b32.xlu0 %v1094, 15
        %v1887 = vpop.permute.xlu0 %1886
        %1888 = vrot.lane.b32.xlu0 %v1102, 15
        %v1889 = vpop.permute.xlu0 %1888
        %1890 = vrot.lane.b32.xlu0 %v1110, 15
        %v1891 = vpop.permute.xlu0 %1890
        %1892 = vrot.lane.b32.xlu0 %v1118, 15
        %v1893 = vpop.permute.xlu0 %1892
        %1894 = vrot.lane.b32.xlu0 %v1126, 15
        %v1895 = vpop.permute.xlu0 %1894
        %1896 = vrot.lane.b32.xlu0 %v1134, 15
        %v1897 = vpop.permute.xlu0 %1896
        %1898 = vrot.lane.b32.xlu0 %v1095, 15
        %v1899 = vpop.permute.xlu0 %1898
        %1900 = vrot.lane.b32.xlu0 %v1103, 15
        %v1901 = vpop.permute.xlu0 %1900
        %1902 = vrot.lane.b32.xlu0 %v1111, 15
        %v1903 = vpop.permute.xlu0 %1902
        %1904 = vrot.lane.b32.xlu0 %v1119, 15
        %v1905 = vpop.permute.xlu0 %1904
        %1906 = vrot.lane.b32.xlu0 %v1127, 15
        %v1907 = vpop.permute.xlu0 %1906
        %1908 = vrot.lane.b32.xlu0 %v1135, 15
        %v1909 = vpop.permute.xlu0 %1908
        %vm1910 = vcmp.lt.s32.totalorder %v1330, 15
        %v1911 = vsel %vm1910, %v1887, %v1899
        %v1912 = vsel %vm1910, %v1889, %v1901
        %v1913 = vsel %vm1910, %v1891, %v1903
        %v1914 = vsel %vm1910, %v1893, %v1905
        %v1915 = vsel %vm1910, %v1895, %v1907
        %v1916 = vsel %vm1910, %v1897, %v1909
        %v1917 = vsel %vm1910, %v1875, %v1887
        %v1918 = vsel %vm1910, %v1877, %v1889
        %v1919 = vsel %vm1910, %v1879, %v1891
        %v1920 = vsel %vm1910, %v1881, %v1893
        %v1921 = vsel %vm1910, %v1883, %v1895
        %v1922 = vsel %vm1910, %v1885, %v1897
        %v1923 = vsel %vm1910, %v1863, %v1875
        %v1924 = vsel %vm1910, %v1865, %v1877
        %v1925 = vsel %vm1910, %v1867, %v1879
        %v1926 = vsel %vm1910, %v1869, %v1881
        %v1927 = vsel %vm1910, %v1871, %v1883
        %v1928 = vsel %vm1910, %v1873, %v1885
        %v1929 = vsel %vm1910, %v1851, %v1863
        %v1930 = vsel %vm1910, %v1853, %v1865
        %v1931 = vsel %vm1910, %v1855, %v1867
        %v1932 = vsel %vm1910, %v1857, %v1869
        %v1933 = vsel %vm1910, %v1859, %v1871
        %v1934 = vsel %vm1910, %v1861, %v1873
        %v1935 = vsel %vm1910, %v1839, %v1851
        %v1936 = vsel %vm1910, %v1841, %v1853
        %v1937 = vsel %vm1910, %v1843, %v1855
        %v1938 = vsel %vm1910, %v1845, %v1857
        %v1939 = vsel %vm1910, %v1847, %v1859
        %v1940 = vsel %vm1910, %v1849, %v1861
        %v1941 = vsel %vm1910, %v1827, %v1839
        %v1942 = vsel %vm1910, %v1829, %v1841
        %v1943 = vsel %vm1910, %v1831, %v1843
        %v1944 = vsel %vm1910, %v1833, %v1845
        %v1945 = vsel %vm1910, %v1835, %v1847
        %v1946 = vsel %vm1910, %v1837, %v1849
        %v1947 = vsel %vm1910, %v1815, %v1827
        %v1948 = vsel %vm1910, %v1817, %v1829
        %v1949 = vsel %vm1910, %v1819, %v1831
        %v1950 = vsel %vm1910, %v1821, %v1833
        %v1951 = vsel %vm1910, %v1823, %v1835
        %v1952 = vsel %vm1910, %v1825, %v1837
        %v1953 = vsel %vm1910, %v1899, %v1815
        %v1954 = vsel %vm1910, %v1901, %v1817
        %v1955 = vsel %vm1910, %v1903, %v1819
        %v1956 = vsel %vm1910, %v1905, %v1821
        %v1957 = vsel %vm1910, %v1907, %v1823
        %v1958 = vsel %vm1910, %v1909, %v1825
        %s1959 = scalar_lea.vmem [#allocation5], 768
        %v1960 = vld [vmem:[%s1959] sm:$0xff]
        %v1961 = vld [vmem:[%s1959 + $0x8] sm:$0xff]
        %v1962 = vld [vmem:[%s1959 + $0x10] sm:$0xff]
        %v1963 = vld [vmem:[%s1959 + $0x18] sm:$0xff]
        %v1964 = vld [vmem:[%s1959 + $0x20] sm:$0xff]
        %v1965 = vld [vmem:[%s1959 + $0x28] sm:$0xff]
        %v1966 = vld [vmem:[%s1959 + $0x30] sm:$0xff]
        %v1967 = vld [vmem:[%s1959 + $0x38] sm:$0xff]
        %v1968 = vld [vmem:[%s1959 + $0x40] sm:$0xff]
        %v1969 = vld [vmem:[%s1959 + $0x48] sm:$0xff]
        %v1970 = vld [vmem:[%s1959 + $0x50] sm:$0xff]
        %v1971 = vld [vmem:[%s1959 + $0x58] sm:$0xff]
        %v1972 = vld [vmem:[%s1959 + $0x60] sm:$0xff]
        %v1973 = vld [vmem:[%s1959 + $0x68] sm:$0xff]
        %v1974 = vld [vmem:[%s1959 + $0x70] sm:$0xff]
        %v1975 = vld [vmem:[%s1959 + $0x78] sm:$0xff]
        %v1976 = vld [vmem:[%s1959 + $0x80] sm:$0xff]
        %v1977 = vld [vmem:[%s1959 + $0x88] sm:$0xff]
        %v1978 = vld [vmem:[%s1959 + $0x90] sm:$0xff]
        %v1979 = vld [vmem:[%s1959 + $0x98] sm:$0xff]
        %v1980 = vld [vmem:[%s1959 + $0xa0] sm:$0xff]
        %v1981 = vld [vmem:[%s1959 + $0xa8] sm:$0xff]
        %v1982 = vld [vmem:[%s1959 + $0xb0] sm:$0xff]
        %v1983 = vld [vmem:[%s1959 + $0xb8] sm:$0xff]
        %v1984 = vld [vmem:[%s1959 + $0xc0] sm:$0xff]
        %v1985 = vld [vmem:[%s1959 + $0xc8] sm:$0xff]
        %v1986 = vld [vmem:[%s1959 + $0xd0] sm:$0xff]
        %v1987 = vld [vmem:[%s1959 + $0xd8] sm:$0xff]
        %v1988 = vld [vmem:[%s1959 + $0xe0] sm:$0xff]
        %v1989 = vld [vmem:[%s1959 + $0xe8] sm:$0xff]
        %v1990 = vld [vmem:[%s1959 + $0xf0] sm:$0xff]
        %v1991 = vld [vmem:[%s1959 + $0xf8] sm:$0xff]
        %v1992 = vld [vmem:[%s1959 + $0x100] sm:$0xff]
        %v1993 = vld [vmem:[%s1959 + $0x108] sm:$0xff]
        %v1994 = vld [vmem:[%s1959 + $0x110] sm:$0xff]
        %v1995 = vld [vmem:[%s1959 + $0x118] sm:$0xff]
        %v1996 = vld [vmem:[%s1959 + $0x120] sm:$0xff]
        %v1997 = vld [vmem:[%s1959 + $0x128] sm:$0xff]
        %v1998 = vld [vmem:[%s1959 + $0x130] sm:$0xff]
        %v1999 = vld [vmem:[%s1959 + $0x138] sm:$0xff]
        %v2000 = vld [vmem:[%s1959 + $0x140] sm:$0xff]
        %v2001 = vld [vmem:[%s1959 + $0x148] sm:$0xff]
        %v2002 = vld [vmem:[%s1959 + $0x150] sm:$0xff]
        %v2003 = vld [vmem:[%s1959 + $0x158] sm:$0xff]
        %v2004 = vld [vmem:[%s1959 + $0x160] sm:$0xff]
        %v2005 = vld [vmem:[%s1959 + $0x168] sm:$0xff]
        %v2006 = vld [vmem:[%s1959 + $0x170] sm:$0xff]
        %v2007 = vld [vmem:[%s1959 + $0x178] sm:$0xff]
        %v2008 = vmul.f32 %v1953, %v1960
        %v2009 = vmul.f32 %v1947, %v1961
        %v2010 = vmul.f32 %v1941, %v1962
        %v2011 = vmul.f32 %v1935, %v1963
        %v2012 = vmul.f32 %v1929, %v1964
        %v2013 = vmul.f32 %v1923, %v1965
        %v2014 = vmul.f32 %v1917, %v1966
        %v2015 = vmul.f32 %v1911, %v1967
        %v2016 = vmul.f32 %v1954, %v1968
        %v2017 = vmul.f32 %v1948, %v1969
        %v2018 = vmul.f32 %v1942, %v1970
        %v2019 = vmul.f32 %v1936, %v1971
        %v2020 = vmul.f32 %v1930, %v1972
        %v2021 = vmul.f32 %v1924, %v1973
        %v2022 = vmul.f32 %v1918, %v1974
        %v2023 = vmul.f32 %v1912, %v1975
        %v2024 = vmul.f32 %v1955, %v1976
        %v2025 = vmul.f32 %v1949, %v1977
        %v2026 = vmul.f32 %v1943, %v1978
        %v2027 = vmul.f32 %v1937, %v1979
        %v2028 = vmul.f32 %v1931, %v1980
        %v2029 = vmul.f32 %v1925, %v1981
        %v2030 = vmul.f32 %v1919, %v1982
        %v2031 = vmul.f32 %v1913, %v1983
        %v2032 = vmul.f32 %v1956, %v1984
        %v2033 = vmul.f32 %v1950, %v1985
        %v2034 = vmul.f32 %v1944, %v1986
        %v2035 = vmul.f32 %v1938, %v1987
        %v2036 = vmul.f32 %v1932, %v1988
        %v2037 = vmul.f32 %v1926, %v1989
        %v2038 = vmul.f32 %v1920, %v1990
        %v2039 = vmul.f32 %v1914, %v1991
        %v2040 = vmul.f32 %v1957, %v1992
        %v2041 = vmul.f32 %v1951, %v1993
        %v2042 = vmul.f32 %v1945, %v1994
        %v2043 = vmul.f32 %v1939, %v1995
        %v2044 = vmul.f32 %v1933, %v1996
        %v2045 = vmul.f32 %v1927, %v1997
        %v2046 = vmul.f32 %v1921, %v1998
        %v2047 = vmul.f32 %v1915, %v1999
        %v2048 = vmul.f32 %v1958, %v2000
        %v2049 = vmul.f32 %v1952, %v2001
        %v2050 = vmul.f32 %v1946, %v2002
        %v2051 = vmul.f32 %v1940, %v2003
        %v2052 = vmul.f32 %v1934, %v2004
        %v2053 = vmul.f32 %v1928, %v2005
        %v2054 = vmul.f32 %v1922, %v2006
        %v2055 = vmul.f32 %v1916, %v2007
        %v2056 = vadd.f32 %v1766, %v2008
        %v2057 = vadd.f32 %v1767, %v2009
        %v2058 = vadd.f32 %v1768, %v2010
        %v2059 = vadd.f32 %v1769, %v2011
        %v2060 = vadd.f32 %v1770, %v2012
        %v2061 = vadd.f32 %v1771, %v2013
        %v2062 = vadd.f32 %v1772, %v2014
        %v2063 = vadd.f32 %v1773, %v2015
        %v2064 = vadd.f32 %v1774, %v2016
        %v2065 = vadd.f32 %v1775, %v2017
        %v2066 = vadd.f32 %v1776, %v2018
        %v2067 = vadd.f32 %v1777, %v2019
        %v2068 = vadd.f32 %v1778, %v2020
        %v2069 = vadd.f32 %v1779, %v2021
        %v2070 = vadd.f32 %v1780, %v2022
        %v2071 = vadd.f32 %v1781, %v2023
        %v2072 = vadd.f32 %v1782, %v2024
        %v2073 = vadd.f32 %v1783, %v2025
        %v2074 = vadd.f32 %v1784, %v2026
        %v2075 = vadd.f32 %v1785, %v2027
        %v2076 = vadd.f32 %v1786, %v2028
        %v2077 = vadd.f32 %v1787, %v2029
        %v2078 = vadd.f32 %v1788, %v2030
        %v2079 = vadd.f32 %v1789, %v2031
        %v2080 = vadd.f32 %v1790, %v2032
        %v2081 = vadd.f32 %v1791, %v2033
        %v2082 = vadd.f32 %v1792, %v2034
        %v2083 = vadd.f32 %v1793, %v2035
        %v2084 = vadd.f32 %v1794, %v2036
        %v2085 = vadd.f32 %v1795, %v2037
        %v2086 = vadd.f32 %v1796, %v2038
        %v2087 = vadd.f32 %v1797, %v2039
        %v2088 = vadd.f32 %v1798, %v2040
        %v2089 = vadd.f32 %v1799, %v2041
        %v2090 = vadd.f32 %v1800, %v2042
        %v2091 = vadd.f32 %v1801, %v2043
        %v2092 = vadd.f32 %v1802, %v2044
        %v2093 = vadd.f32 %v1803, %v2045
        %v2094 = vadd.f32 %v1804, %v2046
        %v2095 = vadd.f32 %v1805, %v2047
        %v2096 = vadd.f32 %v1806, %v2048
        %v2097 = vadd.f32 %v1807, %v2049
        %v2098 = vadd.f32 %v1808, %v2050
        %v2099 = vadd.f32 %v1809, %v2051
        %v2100 = vadd.f32 %v1810, %v2052
        %v2101 = vadd.f32 %v1811, %v2053
        %v2102 = vadd.f32 %v1812, %v2054
        %v2103 = vadd.f32 %v1813, %v2055
        %2104 = vrot.lane.b32.xlu0 %v1088, 1
        %v2105 = vpop.permute.xlu0 %2104
        %2106 = vrot.lane.b32.xlu0 %v1096, 1
        %v2107 = vpop.permute.xlu0 %2106
        %2108 = vrot.lane.b32.xlu0 %v1104, 1
        %v2109 = vpop.permute.xlu0 %2108
        %2110 = vrot.lane.b32.xlu0 %v1112, 1
        %v2111 = vpop.permute.xlu0 %2110
        %2112 = vrot.lane.b32.xlu0 %v1120, 1
        %v2113 = vpop.permute.xlu0 %2112
        %2114 = vrot.lane.b32.xlu0 %v1128, 1
        %v2115 = vpop.permute.xlu0 %2114
        %2116 = vrot.lane.b32.xlu0 %v1089, 1
        %v2117 = vpop.permute.xlu0 %2116
        %2118 = vrot.lane.b32.xlu0 %v1097, 1
        %v2119 = vpop.permute.xlu0 %2118
        %2120 = vrot.lane.b32.xlu0 %v1105, 1
        %v2121 = vpop.permute.xlu0 %2120
        %2122 = vrot.lane.b32.xlu0 %v1113, 1
        %v2123 = vpop.permute.xlu0 %2122
        %2124 = vrot.lane.b32.xlu0 %v1121, 1
        %v2125 = vpop.permute.xlu0 %2124
        %2126 = vrot.lane.b32.xlu0 %v1129, 1
        %v2127 = vpop.permute.xlu0 %2126
        %2128 = vrot.lane.b32.xlu0 %v1090, 1
        %v2129 = vpop.permute.xlu0 %2128
        %2130 = vrot.lane.b32.xlu0 %v1098, 1
        %v2131 = vpop.permute.xlu0 %2130
        %2132 = vrot.lane.b32.xlu0 %v1106, 1
        %v2133 = vpop.permute.xlu0 %2132
        %2134 = vrot.lane.b32.xlu0 %v1114, 1
        %v2135 = vpop.permute.xlu0 %2134
        %2136 = vrot.lane.b32.xlu0 %v1122, 1
        %v2137 = vpop.permute.xlu0 %2136
        %2138 = vrot.lane.b32.xlu0 %v1130, 1
        %v2139 = vpop.permute.xlu0 %2138
        %2140 = vrot.lane.b32.xlu0 %v1091, 1
        %v2141 = vpop.permute.xlu0 %2140
        %2142 = vrot.lane.b32.xlu0 %v1099, 1
        %v2143 = vpop.permute.xlu0 %2142
        %2144 = vrot.lane.b32.xlu0 %v1107, 1
        %v2145 = vpop.permute.xlu0 %2144
        %2146 = vrot.lane.b32.xlu0 %v1115, 1
        %v2147 = vpop.permute.xlu0 %2146
        %2148 = vrot.lane.b32.xlu0 %v1123, 1
        %v2149 = vpop.permute.xlu0 %2148
        %2150 = vrot.lane.b32.xlu0 %v1131, 1
        %v2151 = vpop.permute.xlu0 %2150
        %2152 = vrot.lane.b32.xlu0 %v1092, 1
        %v2153 = vpop.permute.xlu0 %2152
        %2154 = vrot.lane.b32.xlu0 %v1100, 1
        %v2155 = vpop.permute.xlu0 %2154
        %2156 = vrot.lane.b32.xlu0 %v1108, 1
        %v2157 = vpop.permute.xlu0 %2156
        %2158 = vrot.lane.b32.xlu0 %v1116, 1
        %v2159 = vpop.permute.xlu0 %2158
        %2160 = vrot.lane.b32.xlu0 %v1124, 1
        %v2161 = vpop.permute.xlu0 %2160
        %2162 = vrot.lane.b32.xlu0 %v1132, 1
        %v2163 = vpop.permute.xlu0 %2162
        %2164 = vrot.lane.b32.xlu0 %v1093, 1
        %v2165 = vpop.permute.xlu0 %2164
        %2166 = vrot.lane.b32.xlu0 %v1101, 1
        %v2167 = vpop.permute.xlu0 %2166
        %2168 = vrot.lane.b32.xlu0 %v1109, 1
        %v2169 = vpop.permute.xlu0 %2168
        %2170 = vrot.lane.b32.xlu0 %v1117, 1
        %v2171 = vpop.permute.xlu0 %2170
        %2172 = vrot.lane.b32.xlu0 %v1125, 1
        %v2173 = vpop.permute.xlu0 %2172
        %2174 = vrot.lane.b32.xlu0 %v1133, 1
        %v2175 = vpop.permute.xlu0 %2174
        %2176 = vrot.lane.b32.xlu0 %v1094, 1
        %v2177 = vpop.permute.xlu0 %2176
        %2178 = vrot.lane.b32.xlu0 %v1102, 1
        %v2179 = vpop.permute.xlu0 %2178
        %2180 = vrot.lane.b32.xlu0 %v1110, 1
        %v2181 = vpop.permute.xlu0 %2180
        %2182 = vrot.lane.b32.xlu0 %v1118, 1
        %v2183 = vpop.permute.xlu0 %2182
        %2184 = vrot.lane.b32.xlu0 %v1126, 1
        %v2185 = vpop.permute.xlu0 %2184
        %2186 = vrot.lane.b32.xlu0 %v1134, 1
        %v2187 = vpop.permute.xlu0 %2186
        %2188 = vrot.lane.b32.xlu0 %v1095, 1
        %v2189 = vpop.permute.xlu0 %2188
        %2190 = vrot.lane.b32.xlu0 %v1103, 1
        %v2191 = vpop.permute.xlu0 %2190
        %2192 = vrot.lane.b32.xlu0 %v1111, 1
        %v2193 = vpop.permute.xlu0 %2192
        %2194 = vrot.lane.b32.xlu0 %v1119, 1
        %v2195 = vpop.permute.xlu0 %2194
        %2196 = vrot.lane.b32.xlu0 %v1127, 1
        %v2197 = vpop.permute.xlu0 %2196
        %2198 = vrot.lane.b32.xlu0 %v1135, 1
        %v2199 = vpop.permute.xlu0 %2198
        %vm2200 = vcmp.lt.s32.totalorder %v1330, 1
        %v2201 = vsel %vm2200, %v2177, %v2189
        %v2202 = vsel %vm2200, %v2179, %v2191
        %v2203 = vsel %vm2200, %v2181, %v2193
        %v2204 = vsel %vm2200, %v2183, %v2195
        %v2205 = vsel %vm2200, %v2185, %v2197
        %v2206 = vsel %vm2200, %v2187, %v2199
        %v2207 = vsel %vm2200, %v2165, %v2177
        %v2208 = vsel %vm2200, %v2167, %v2179
        %v2209 = vsel %vm2200, %v2169, %v2181
        %v2210 = vsel %vm2200, %v2171, %v2183
        %v2211 = vsel %vm2200, %v2173, %v2185
        %v2212 = vsel %vm2200, %v2175, %v2187
        %v2213 = vsel %vm2200, %v2153, %v2165
        %v2214 = vsel %vm2200, %v2155, %v2167
        %v2215 = vsel %vm2200, %v2157, %v2169
        %v2216 = vsel %vm2200, %v2159, %v2171
        %v2217 = vsel %vm2200, %v2161, %v2173
        %v2218 = vsel %vm2200, %v2163, %v2175
        %v2219 = vsel %vm2200, %v2141, %v2153
        %v2220 = vsel %vm2200, %v2143, %v2155
        %v2221 = vsel %vm2200, %v2145, %v2157
        %v2222 = vsel %vm2200, %v2147, %v2159
        %v2223 = vsel %vm2200, %v2149, %v2161
        %v2224 = vsel %vm2200, %v2151, %v2163
        %v2225 = vsel %vm2200, %v2129, %v2141
        %v2226 = vsel %vm2200, %v2131, %v2143
        %v2227 = vsel %vm2200, %v2133, %v2145
        %v2228 = vsel %vm2200, %v2135, %v2147
        %v2229 = vsel %vm2200, %v2137, %v2149
        %v2230 = vsel %vm2200, %v2139, %v2151
        %v2231 = vsel %vm2200, %v2117, %v2129
        %v2232 = vsel %vm2200, %v2119, %v2131
        %v2233 = vsel %vm2200, %v2121, %v2133
        %v2234 = vsel %vm2200, %v2123, %v2135
        %v2235 = vsel %vm2200, %v2125, %v2137
        %v2236 = vsel %vm2200, %v2127, %v2139
        %v2237 = vsel %vm2200, %v2105, %v2117
        %v2238 = vsel %vm2200, %v2107, %v2119
        %v2239 = vsel %vm2200, %v2109, %v2121
        %v2240 = vsel %vm2200, %v2111, %v2123
        %v2241 = vsel %vm2200, %v2113, %v2125
        %v2242 = vsel %vm2200, %v2115, %v2127
        %v2243 = vsel %vm2200, %v2189, %v2105
        %v2244 = vsel %vm2200, %v2191, %v2107
        %v2245 = vsel %vm2200, %v2193, %v2109
        %v2246 = vsel %vm2200, %v2195, %v2111
        %v2247 = vsel %vm2200, %v2197, %v2113
        %v2248 = vsel %vm2200, %v2199, %v2115
        %s2249 = scalar_lea.vmem [#allocation5], 1152
        %v2250 = vld [vmem:[%s2249] sm:$0xff]
        %v2251 = vld [vmem:[%s2249 + $0x8] sm:$0xff]
        %v2252 = vld [vmem:[%s2249 + $0x10] sm:$0xff]
        %v2253 = vld [vmem:[%s2249 + $0x18] sm:$0xff]
        %v2254 = vld [vmem:[%s2249 + $0x20] sm:$0xff]
        %v2255 = vld [vmem:[%s2249 + $0x28] sm:$0xff]
        %v2256 = vld [vmem:[%s2249 + $0x30] sm:$0xff]
        %v2257 = vld [vmem:[%s2249 + $0x38] sm:$0xff]
        %v2258 = vld [vmem:[%s2249 + $0x40] sm:$0xff]
        %v2259 = vld [vmem:[%s2249 + $0x48] sm:$0xff]
        %v2260 = vld [vmem:[%s2249 + $0x50] sm:$0xff]
        %v2261 = vld [vmem:[%s2249 + $0x58] sm:$0xff]
        %v2262 = vld [vmem:[%s2249 + $0x60] sm:$0xff]
        %v2263 = vld [vmem:[%s2249 + $0x68] sm:$0xff]
        %v2264 = vld [vmem:[%s2249 + $0x70] sm:$0xff]
        %v2265 = vld [vmem:[%s2249 + $0x78] sm:$0xff]
        %v2266 = vld [vmem:[%s2249 + $0x80] sm:$0xff]
        %v2267 = vld [vmem:[%s2249 + $0x88] sm:$0xff]
        %v2268 = vld [vmem:[%s2249 + $0x90] sm:$0xff]
        %v2269 = vld [vmem:[%s2249 + $0x98] sm:$0xff]
        %v2270 = vld [vmem:[%s2249 + $0xa0] sm:$0xff]
        %v2271 = vld [vmem:[%s2249 + $0xa8] sm:$0xff]
        %v2272 = vld [vmem:[%s2249 + $0xb0] sm:$0xff]
        %v2273 = vld [vmem:[%s2249 + $0xb8] sm:$0xff]
        %v2274 = vld [vmem:[%s2249 + $0xc0] sm:$0xff]
        %v2275 = vld [vmem:[%s2249 + $0xc8] sm:$0xff]
        %v2276 = vld [vmem:[%s2249 + $0xd0] sm:$0xff]
        %v2277 = vld [vmem:[%s2249 + $0xd8] sm:$0xff]
        %v2278 = vld [vmem:[%s2249 + $0xe0] sm:$0xff]
        %v2279 = vld [vmem:[%s2249 + $0xe8] sm:$0xff]
        %v2280 = vld [vmem:[%s2249 + $0xf0] sm:$0xff]
        %v2281 = vld [vmem:[%s2249 + $0xf8] sm:$0xff]
        %v2282 = vld [vmem:[%s2249 + $0x100] sm:$0xff]
        %v2283 = vld [vmem:[%s2249 + $0x108] sm:$0xff]
        %v2284 = vld [vmem:[%s2249 + $0x110] sm:$0xff]
        %v2285 = vld [vmem:[%s2249 + $0x118] sm:$0xff]
        %v2286 = vld [vmem:[%s2249 + $0x120] sm:$0xff]
        %v2287 = vld [vmem:[%s2249 + $0x128] sm:$0xff]
        %v2288 = vld [vmem:[%s2249 + $0x130] sm:$0xff]
        %v2289 = vld [vmem:[%s2249 + $0x138] sm:$0xff]
        %v2290 = vld [vmem:[%s2249 + $0x140] sm:$0xff]
        %v2291 = vld [vmem:[%s2249 + $0x148] sm:$0xff]
        %v2292 = vld [vmem:[%s2249 + $0x150] sm:$0xff]
        %v2293 = vld [vmem:[%s2249 + $0x158] sm:$0xff]
        %v2294 = vld [vmem:[%s2249 + $0x160] sm:$0xff]
        %v2295 = vld [vmem:[%s2249 + $0x168] sm:$0xff]
        %v2296 = vld [vmem:[%s2249 + $0x170] sm:$0xff]
        %v2297 = vld [vmem:[%s2249 + $0x178] sm:$0xff]
        %v2298 = vmul.f32 %v2243, %v2250
        %v2299 = vmul.f32 %v2237, %v2251
        %v2300 = vmul.f32 %v2231, %v2252
        %v2301 = vmul.f32 %v2225, %v2253
        %v2302 = vmul.f32 %v2219, %v2254
        %v2303 = vmul.f32 %v2213, %v2255
        %v2304 = vmul.f32 %v2207, %v2256
        %v2305 = vmul.f32 %v2201, %v2257
        %v2306 = vmul.f32 %v2244, %v2258
        %v2307 = vmul.f32 %v2238, %v2259
        %v2308 = vmul.f32 %v2232, %v2260
        %v2309 = vmul.f32 %v2226, %v2261
        %v2310 = vmul.f32 %v2220, %v2262
        %v2311 = vmul.f32 %v2214, %v2263
        %v2312 = vmul.f32 %v2208, %v2264
        %v2313 = vmul.f32 %v2202, %v2265
        %v2314 = vmul.f32 %v2245, %v2266
        %v2315 = vmul.f32 %v2239, %v2267
        %v2316 = vmul.f32 %v2233, %v2268
        %v2317 = vmul.f32 %v2227, %v2269
        %v2318 = vmul.f32 %v2221, %v2270
        %v2319 = vmul.f32 %v2215, %v2271
        %v2320 = vmul.f32 %v2209, %v2272
        %v2321 = vmul.f32 %v2203, %v2273
        %v2322 = vmul.f32 %v2246, %v2274
        %v2323 = vmul.f32 %v2240, %v2275
        %v2324 = vmul.f32 %v2234, %v2276
        %v2325 = vmul.f32 %v2228, %v2277
        %v2326 = vmul.f32 %v2222, %v2278
        %v2327 = vmul.f32 %v2216, %v2279
        %v2328 = vmul.f32 %v2210, %v2280
        %v2329 = vmul.f32 %v2204, %v2281
        %v2330 = vmul.f32 %v2247, %v2282
        %v2331 = vmul.f32 %v2241, %v2283
        %v2332 = vmul.f32 %v2235, %v2284
        %v2333 = vmul.f32 %v2229, %v2285
        %v2334 = vmul.f32 %v2223, %v2286
        %v2335 = vmul.f32 %v2217, %v2287
        %v2336 = vmul.f32 %v2211, %v2288
        %v2337 = vmul.f32 %v2205, %v2289
        %v2338 = vmul.f32 %v2248, %v2290
        %v2339 = vmul.f32 %v2242, %v2291
        %v2340 = vmul.f32 %v2236, %v2292
        %v2341 = vmul.f32 %v2230, %v2293
        %v2342 = vmul.f32 %v2224, %v2294
        %v2343 = vmul.f32 %v2218, %v2295
        %v2344 = vmul.f32 %v2212, %v2296
        %v2345 = vmul.f32 %v2206, %v2297
        %v2346 = vadd.f32 %v2056, %v2298
        %v2347 = vadd.f32 %v2057, %v2299
        %v2348 = vadd.f32 %v2058, %v2300
        %v2349 = vadd.f32 %v2059, %v2301
        %v2350 = vadd.f32 %v2060, %v2302
        %v2351 = vadd.f32 %v2061, %v2303
        %v2352 = vadd.f32 %v2062, %v2304
        %v2353 = vadd.f32 %v2063, %v2305
        %v2354 = vadd.f32 %v2064, %v2306
        %v2355 = vadd.f32 %v2065, %v2307
        %v2356 = vadd.f32 %v2066, %v2308
        %v2357 = vadd.f32 %v2067, %v2309
        %v2358 = vadd.f32 %v2068, %v2310
        %v2359 = vadd.f32 %v2069, %v2311
        %v2360 = vadd.f32 %v2070, %v2312
        %v2361 = vadd.f32 %v2071, %v2313
        %v2362 = vadd.f32 %v2072, %v2314
        %v2363 = vadd.f32 %v2073, %v2315
        %v2364 = vadd.f32 %v2074, %v2316
        %v2365 = vadd.f32 %v2075, %v2317
        %v2366 = vadd.f32 %v2076, %v2318
        %v2367 = vadd.f32 %v2077, %v2319
        %v2368 = vadd.f32 %v2078, %v2320
        %v2369 = vadd.f32 %v2079, %v2321
        %v2370 = vadd.f32 %v2080, %v2322
        %v2371 = vadd.f32 %v2081, %v2323
        %v2372 = vadd.f32 %v2082, %v2324
        %v2373 = vadd.f32 %v2083, %v2325
        %v2374 = vadd.f32 %v2084, %v2326
        %v2375 = vadd.f32 %v2085, %v2327
        %v2376 = vadd.f32 %v2086, %v2328
        %v2377 = vadd.f32 %v2087, %v2329
        %v2378 = vadd.f32 %v2088, %v2330
        %v2379 = vadd.f32 %v2089, %v2331
        %v2380 = vadd.f32 %v2090, %v2332
        %v2381 = vadd.f32 %v2091, %v2333
        %v2382 = vadd.f32 %v2092, %v2334
        %v2383 = vadd.f32 %v2093, %v2335
        %v2384 = vadd.f32 %v2094, %v2336
        %v2385 = vadd.f32 %v2095, %v2337
        %v2386 = vadd.f32 %v2096, %v2338
        %v2387 = vadd.f32 %v2097, %v2339
        %v2388 = vadd.f32 %v2098, %v2340
        %v2389 = vadd.f32 %v2099, %v2341
        %v2390 = vadd.f32 %v2100, %v2342
        %v2391 = vadd.f32 %v2101, %v2343
        %v2392 = vadd.f32 %v2102, %v2344
        %v2393 = vadd.f32 %v2103, %v2345
        %2394 = vrot.lane.b32.xlu0 %v1088, 127
        %v2395 = vpop.permute.xlu0 %2394
        %2396 = vrot.lane.b32.xlu0 %v1096, 127
        %v2397 = vpop.permute.xlu0 %2396
        %2398 = vrot.lane.b32.xlu0 %v1104, 127
        %v2399 = vpop.permute.xlu0 %2398
        %2400 = vrot.lane.b32.xlu0 %v1112, 127
        %v2401 = vpop.permute.xlu0 %2400
        %2402 = vrot.lane.b32.xlu0 %v1120, 127
        %v2403 = vpop.permute.xlu0 %2402
        %2404 = vrot.lane.b32.xlu0 %v1128, 127
        %v2405 = vpop.permute.xlu0 %2404
        %2406 = vrot.lane.b32.xlu0 %v1089, 127
        %v2407 = vpop.permute.xlu0 %2406
        %2408 = vrot.lane.b32.xlu0 %v1097, 127
        %v2409 = vpop.permute.xlu0 %2408
        %2410 = vrot.lane.b32.xlu0 %v1105, 127
        %v2411 = vpop.permute.xlu0 %2410
        %2412 = vrot.lane.b32.xlu0 %v1113, 127
        %v2413 = vpop.permute.xlu0 %2412
        %2414 = vrot.lane.b32.xlu0 %v1121, 127
        %v2415 = vpop.permute.xlu0 %2414
        %2416 = vrot.lane.b32.xlu0 %v1129, 127
        %v2417 = vpop.permute.xlu0 %2416
        %2418 = vrot.lane.b32.xlu0 %v1090, 127
        %v2419 = vpop.permute.xlu0 %2418
        %2420 = vrot.lane.b32.xlu0 %v1098, 127
        %v2421 = vpop.permute.xlu0 %2420
        %2422 = vrot.lane.b32.xlu0 %v1106, 127
        %v2423 = vpop.permute.xlu0 %2422
        %2424 = vrot.lane.b32.xlu0 %v1114, 127
        %v2425 = vpop.permute.xlu0 %2424
        %2426 = vrot.lane.b32.xlu0 %v1122, 127
        %v2427 = vpop.permute.xlu0 %2426
        %2428 = vrot.lane.b32.xlu0 %v1130, 127
        %v2429 = vpop.permute.xlu0 %2428
        %2430 = vrot.lane.b32.xlu0 %v1091, 127
        %v2431 = vpop.permute.xlu0 %2430
        %2432 = vrot.lane.b32.xlu0 %v1099, 127
        %v2433 = vpop.permute.xlu0 %2432
        %2434 = vrot.lane.b32.xlu0 %v1107, 127
        %v2435 = vpop.permute.xlu0 %2434
        %2436 = vrot.lane.b32.xlu0 %v1115, 127
        %v2437 = vpop.permute.xlu0 %2436
        %2438 = vrot.lane.b32.xlu0 %v1123, 127
        %v2439 = vpop.permute.xlu0 %2438
        %2440 = vrot.lane.b32.xlu0 %v1131, 127
        %v2441 = vpop.permute.xlu0 %2440
        %2442 = vrot.lane.b32.xlu0 %v1092, 127
        %v2443 = vpop.permute.xlu0 %2442
        %2444 = vrot.lane.b32.xlu0 %v1100, 127
        %v2445 = vpop.permute.xlu0 %2444
        %2446 = vrot.lane.b32.xlu0 %v1108, 127
        %v2447 = vpop.permute.xlu0 %2446
        %2448 = vrot.lane.b32.xlu0 %v1116, 127
        %v2449 = vpop.permute.xlu0 %2448
        %2450 = vrot.lane.b32.xlu0 %v1124, 127
        %v2451 = vpop.permute.xlu0 %2450
        %2452 = vrot.lane.b32.xlu0 %v1132, 127
        %v2453 = vpop.permute.xlu0 %2452
        %2454 = vrot.lane.b32.xlu0 %v1093, 127
        %v2455 = vpop.permute.xlu0 %2454
        %2456 = vrot.lane.b32.xlu0 %v1101, 127
        %v2457 = vpop.permute.xlu0 %2456
        %2458 = vrot.lane.b32.xlu0 %v1109, 127
        %v2459 = vpop.permute.xlu0 %2458
        %2460 = vrot.lane.b32.xlu0 %v1117, 127
        %v2461 = vpop.permute.xlu0 %2460
        %2462 = vrot.lane.b32.xlu0 %v1125, 127
        %v2463 = vpop.permute.xlu0 %2462
        %2464 = vrot.lane.b32.xlu0 %v1133, 127
        %v2465 = vpop.permute.xlu0 %2464
        %2466 = vrot.lane.b32.xlu0 %v1094, 127
        %v2467 = vpop.permute.xlu0 %2466
        %2468 = vrot.lane.b32.xlu0 %v1102, 127
        %v2469 = vpop.permute.xlu0 %2468
        %2470 = vrot.lane.b32.xlu0 %v1110, 127
        %v2471 = vpop.permute.xlu0 %2470
        %2472 = vrot.lane.b32.xlu0 %v1118, 127
        %v2473 = vpop.permute.xlu0 %2472
        %2474 = vrot.lane.b32.xlu0 %v1126, 127
        %v2475 = vpop.permute.xlu0 %2474
        %2476 = vrot.lane.b32.xlu0 %v1134, 127
        %v2477 = vpop.permute.xlu0 %2476
        %2478 = vrot.lane.b32.xlu0 %v1095, 127
        %v2479 = vpop.permute.xlu0 %2478
        %2480 = vrot.lane.b32.xlu0 %v1103, 127
        %v2481 = vpop.permute.xlu0 %2480
        %2482 = vrot.lane.b32.xlu0 %v1111, 127
        %v2483 = vpop.permute.xlu0 %2482
        %2484 = vrot.lane.b32.xlu0 %v1119, 127
        %v2485 = vpop.permute.xlu0 %2484
        %2486 = vrot.lane.b32.xlu0 %v1127, 127
        %v2487 = vpop.permute.xlu0 %2486
        %2488 = vrot.lane.b32.xlu0 %v1135, 127
        %v2489 = vpop.permute.xlu0 %2488
        %vm2490 = vcmp.lt.s32.totalorder %v1330, 127
        %v2491 = vsel %vm2490, %v2467, %v2479
        %v2492 = vsel %vm2490, %v2469, %v2481
        %v2493 = vsel %vm2490, %v2471, %v2483
        %v2494 = vsel %vm2490, %v2473, %v2485
        %v2495 = vsel %vm2490, %v2475, %v2487
        %v2496 = vsel %vm2490, %v2477, %v2489
        %v2497 = vsel %vm2490, %v2455, %v2467
        %v2498 = vsel %vm2490, %v2457, %v2469
        %v2499 = vsel %vm2490, %v2459, %v2471
        %v2500 = vsel %vm2490, %v2461, %v2473
        %v2501 = vsel %vm2490, %v2463, %v2475
        %v2502 = vsel %vm2490, %v2465, %v2477
        %v2503 = vsel %vm2490, %v2443, %v2455
        %v2504 = vsel %vm2490, %v2445, %v2457
        %v2505 = vsel %vm2490, %v2447, %v2459
        %v2506 = vsel %vm2490, %v2449, %v2461
        %v2507 = vsel %vm2490, %v2451, %v2463
        %v2508 = vsel %vm2490, %v2453, %v2465
        %v2509 = vsel %vm2490, %v2431, %v2443
        %v2510 = vsel %vm2490, %v2433, %v2445
        %v2511 = vsel %vm2490, %v2435, %v2447
        %v2512 = vsel %vm2490, %v2437, %v2449
        %v2513 = vsel %vm2490, %v2439, %v2451
        %v2514 = vsel %vm2490, %v2441, %v2453
        %v2515 = vsel %vm2490, %v2419, %v2431
        %v2516 = vsel %vm2490, %v2421, %v2433
        %v2517 = vsel %vm2490, %v2423, %v2435
        %v2518 = vsel %vm2490, %v2425, %v2437
        %v2519 = vsel %vm2490, %v2427, %v2439
        %v2520 = vsel %vm2490, %v2429, %v2441
        %v2521 = vsel %vm2490, %v2407, %v2419
        %v2522 = vsel %vm2490, %v2409, %v2421
        %v2523 = vsel %vm2490, %v2411, %v2423
        %v2524 = vsel %vm2490, %v2413, %v2425
        %v2525 = vsel %vm2490, %v2415, %v2427
        %v2526 = vsel %vm2490, %v2417, %v2429
        %v2527 = vsel %vm2490, %v2395, %v2407
        %v2528 = vsel %vm2490, %v2397, %v2409
        %v2529 = vsel %vm2490, %v2399, %v2411
        %v2530 = vsel %vm2490, %v2401, %v2413
        %v2531 = vsel %vm2490, %v2403, %v2415
        %v2532 = vsel %vm2490, %v2405, %v2417
        %v2533 = vsel %vm2490, %v2479, %v2395
        %v2534 = vsel %vm2490, %v2481, %v2397
        %v2535 = vsel %vm2490, %v2483, %v2399
        %v2536 = vsel %vm2490, %v2485, %v2401
        %v2537 = vsel %vm2490, %v2487, %v2403
        %v2538 = vsel %vm2490, %v2489, %v2405
        %s2539 = scalar_lea.vmem [#allocation5], 1920
        %v2540 = vld [vmem:[%s2539] sm:$0xff]
        %v2541 = vld [vmem:[%s2539 + $0x8] sm:$0xff]
        %v2542 = vld [vmem:[%s2539 + $0x10] sm:$0xff]
        %v2543 = vld [vmem:[%s2539 + $0x18] sm:$0xff]
        %v2544 = vld [vmem:[%s2539 + $0x20] sm:$0xff]
        %v2545 = vld [vmem:[%s2539 + $0x28] sm:$0xff]
        %v2546 = vld [vmem:[%s2539 + $0x30] sm:$0xff]
        %v2547 = vld [vmem:[%s2539 + $0x38] sm:$0xff]
        %v2548 = vld [vmem:[%s2539 + $0x40] sm:$0xff]
        %v2549 = vld [vmem:[%s2539 + $0x48] sm:$0xff]
        %v2550 = vld [vmem:[%s2539 + $0x50] sm:$0xff]
        %v2551 = vld [vmem:[%s2539 + $0x58] sm:$0xff]
        %v2552 = vld [vmem:[%s2539 + $0x60] sm:$0xff]
        %v2553 = vld [vmem:[%s2539 + $0x68] sm:$0xff]
        %v2554 = vld [vmem:[%s2539 + $0x70] sm:$0xff]
        %v2555 = vld [vmem:[%s2539 + $0x78] sm:$0xff]
        %v2556 = vld [vmem:[%s2539 + $0x80] sm:$0xff]
        %v2557 = vld [vmem:[%s2539 + $0x88] sm:$0xff]
        %v2558 = vld [vmem:[%s2539 + $0x90] sm:$0xff]
        %v2559 = vld [vmem:[%s2539 + $0x98] sm:$0xff]
        %v2560 = vld [vmem:[%s2539 + $0xa0] sm:$0xff]
        %v2561 = vld [vmem:[%s2539 + $0xa8] sm:$0xff]
        %v2562 = vld [vmem:[%s2539 + $0xb0] sm:$0xff]
        %v2563 = vld [vmem:[%s2539 + $0xb8] sm:$0xff]
        %v2564 = vld [vmem:[%s2539 + $0xc0] sm:$0xff]
        %v2565 = vld [vmem:[%s2539 + $0xc8] sm:$0xff]
        %v2566 = vld [vmem:[%s2539 + $0xd0] sm:$0xff]
        %v2567 = vld [vmem:[%s2539 + $0xd8] sm:$0xff]
        %v2568 = vld [vmem:[%s2539 + $0xe0] sm:$0xff]
        %v2569 = vld [vmem:[%s2539 + $0xe8] sm:$0xff]
        %v2570 = vld [vmem:[%s2539 + $0xf0] sm:$0xff]
        %v2571 = vld [vmem:[%s2539 + $0xf8] sm:$0xff]
        %v2572 = vld [vmem:[%s2539 + $0x100] sm:$0xff]
        %v2573 = vld [vmem:[%s2539 + $0x108] sm:$0xff]
        %v2574 = vld [vmem:[%s2539 + $0x110] sm:$0xff]
        %v2575 = vld [vmem:[%s2539 + $0x118] sm:$0xff]
        %v2576 = vld [vmem:[%s2539 + $0x120] sm:$0xff]
        %v2577 = vld [vmem:[%s2539 + $0x128] sm:$0xff]
        %v2578 = vld [vmem:[%s2539 + $0x130] sm:$0xff]
        %v2579 = vld [vmem:[%s2539 + $0x138] sm:$0xff]
        %v2580 = vld [vmem:[%s2539 + $0x140] sm:$0xff]
        %v2581 = vld [vmem:[%s2539 + $0x148] sm:$0xff]
        %v2582 = vld [vmem:[%s2539 + $0x150] sm:$0xff]
        %v2583 = vld [vmem:[%s2539 + $0x158] sm:$0xff]
        %v2584 = vld [vmem:[%s2539 + $0x160] sm:$0xff]
        %v2585 = vld [vmem:[%s2539 + $0x168] sm:$0xff]
        %v2586 = vld [vmem:[%s2539 + $0x170] sm:$0xff]
        %v2587 = vld [vmem:[%s2539 + $0x178] sm:$0xff]
        %v2588 = vmul.f32 %v2527, %v2540
        %v2589 = vmul.f32 %v2521, %v2541
        %v2590 = vmul.f32 %v2515, %v2542
        %v2591 = vmul.f32 %v2509, %v2543
        %v2592 = vmul.f32 %v2503, %v2544
        %v2593 = vmul.f32 %v2497, %v2545
        %v2594 = vmul.f32 %v2491, %v2546
        %v2595 = vmul.f32 %v2533, %v2547
        %v2596 = vmul.f32 %v2528, %v2548
        %v2597 = vmul.f32 %v2522, %v2549
        %v2598 = vmul.f32 %v2516, %v2550
        %v2599 = vmul.f32 %v2510, %v2551
        %v2600 = vmul.f32 %v2504, %v2552
        %v2601 = vmul.f32 %v2498, %v2553
        %v2602 = vmul.f32 %v2492, %v2554
        %v2603 = vmul.f32 %v2534, %v2555
        %v2604 = vmul.f32 %v2529, %v2556
        %v2605 = vmul.f32 %v2523, %v2557
        %v2606 = vmul.f32 %v2517, %v2558
        %v2607 = vmul.f32 %v2511, %v2559
        %v2608 = vmul.f32 %v2505, %v2560
        %v2609 = vmul.f32 %v2499, %v2561
        %v2610 = vmul.f32 %v2493, %v2562
        %v2611 = vmul.f32 %v2535, %v2563
        %v2612 = vmul.f32 %v2530, %v2564
        %v2613 = vmul.f32 %v2524, %v2565
        %v2614 = vmul.f32 %v2518, %v2566
        %v2615 = vmul.f32 %v2512, %v2567
        %v2616 = vmul.f32 %v2506, %v2568
        %v2617 = vmul.f32 %v2500, %v2569
        %v2618 = vmul.f32 %v2494, %v2570
        %v2619 = vmul.f32 %v2536, %v2571
        %v2620 = vmul.f32 %v2531, %v2572
        %v2621 = vmul.f32 %v2525, %v2573
        %v2622 = vmul.f32 %v2519, %v2574
        %v2623 = vmul.f32 %v2513, %v2575
        %v2624 = vmul.f32 %v2507, %v2576
        %v2625 = vmul.f32 %v2501, %v2577
        %v2626 = vmul.f32 %v2495, %v2578
        %v2627 = vmul.f32 %v2537, %v2579
        %v2628 = vmul.f32 %v2532, %v2580
        %v2629 = vmul.f32 %v2526, %v2581
        %v2630 = vmul.f32 %v2520, %v2582
        %v2631 = vmul.f32 %v2514, %v2583
        %v2632 = vmul.f32 %v2508, %v2584
        %v2633 = vmul.f32 %v2502, %v2585
        %v2634 = vmul.f32 %v2496, %v2586
        %v2635 = vmul.f32 %v2538, %v2587
        %v2636 = vadd.f32 %v2346, %v2588
        %v2637 = vadd.f32 %v2347, %v2589
        %v2638 = vadd.f32 %v2348, %v2590
        %v2639 = vadd.f32 %v2349, %v2591
        %v2640 = vadd.f32 %v2350, %v2592
        %v2641 = vadd.f32 %v2351, %v2593
        %v2642 = vadd.f32 %v2352, %v2594
        %v2643 = vadd.f32 %v2353, %v2595
        %v2644 = vadd.f32 %v2354, %v2596
        %v2645 = vadd.f32 %v2355, %v2597
        %v2646 = vadd.f32 %v2356, %v2598
        %v2647 = vadd.f32 %v2357, %v2599
        %v2648 = vadd.f32 %v2358, %v2600
        %v2649 = vadd.f32 %v2359, %v2601
        %v2650 = vadd.f32 %v2360, %v2602
        %v2651 = vadd.f32 %v2361, %v2603
        %v2652 = vadd.f32 %v2362, %v2604
        %v2653 = vadd.f32 %v2363, %v2605
        %v2654 = vadd.f32 %v2364, %v2606
        %v2655 = vadd.f32 %v2365, %v2607
        %v2656 = vadd.f32 %v2366, %v2608
        %v2657 = vadd.f32 %v2367, %v2609
        %v2658 = vadd.f32 %v2368, %v2610
        %v2659 = vadd.f32 %v2369, %v2611
        %v2660 = vadd.f32 %v2370, %v2612
        %v2661 = vadd.f32 %v2371, %v2613
        %v2662 = vadd.f32 %v2372, %v2614
        %v2663 = vadd.f32 %v2373, %v2615
        %v2664 = vadd.f32 %v2374, %v2616
        %v2665 = vadd.f32 %v2375, %v2617
        %v2666 = vadd.f32 %v2376, %v2618
        %v2667 = vadd.f32 %v2377, %v2619
        %v2668 = vadd.f32 %v2378, %v2620
        %v2669 = vadd.f32 %v2379, %v2621
        %v2670 = vadd.f32 %v2380, %v2622
        %v2671 = vadd.f32 %v2381, %v2623
        %v2672 = vadd.f32 %v2382, %v2624
        %v2673 = vadd.f32 %v2383, %v2625
        %v2674 = vadd.f32 %v2384, %v2626
        %v2675 = vadd.f32 %v2385, %v2627
        %v2676 = vadd.f32 %v2386, %v2628
        %v2677 = vadd.f32 %v2387, %v2629
        %v2678 = vadd.f32 %v2388, %v2630
        %v2679 = vadd.f32 %v2389, %v2631
        %v2680 = vadd.f32 %v2390, %v2632
        %v2681 = vadd.f32 %v2391, %v2633
        %v2682 = vadd.f32 %v2392, %v2634
        %v2683 = vadd.f32 %v2393, %v2635
        %2684 = vrot.lane.b32.xlu0 %v1088, 113
        %v2685 = vpop.permute.xlu0 %2684
        %2686 = vrot.lane.b32.xlu0 %v1096, 113
        %v2687 = vpop.permute.xlu0 %2686
        %2688 = vrot.lane.b32.xlu0 %v1104, 113
        %v2689 = vpop.permute.xlu0 %2688
        %2690 = vrot.lane.b32.xlu0 %v1112, 113
        %v2691 = vpop.permute.xlu0 %2690
        %2692 = vrot.lane.b32.xlu0 %v1120, 113
        %v2693 = vpop.permute.xlu0 %2692
        %2694 = vrot.lane.b32.xlu0 %v1128, 113
        %v2695 = vpop.permute.xlu0 %2694
        %2696 = vrot.lane.b32.xlu0 %v1089, 113
        %v2697 = vpop.permute.xlu0 %2696
        %2698 = vrot.lane.b32.xlu0 %v1097, 113
        %v2699 = vpop.permute.xlu0 %2698
        %2700 = vrot.lane.b32.xlu0 %v1105, 113
        %v2701 = vpop.permute.xlu0 %2700
        %2702 = vrot.lane.b32.xlu0 %v1113, 113
        %v2703 = vpop.permute.xlu0 %2702
        %2704 = vrot.lane.b32.xlu0 %v1121, 113
        %v2705 = vpop.permute.xlu0 %2704
        %2706 = vrot.lane.b32.xlu0 %v1129, 113
        %v2707 = vpop.permute.xlu0 %2706
        %2708 = vrot.lane.b32.xlu0 %v1090, 113
        %v2709 = vpop.permute.xlu0 %2708
        %2710 = vrot.lane.b32.xlu0 %v1098, 113
        %v2711 = vpop.permute.xlu0 %2710
        %2712 = vrot.lane.b32.xlu0 %v1106, 113
        %v2713 = vpop.permute.xlu0 %2712
        %2714 = vrot.lane.b32.xlu0 %v1114, 113
        %v2715 = vpop.permute.xlu0 %2714
        %2716 = vrot.lane.b32.xlu0 %v1122, 113
        %v2717 = vpop.permute.xlu0 %2716
        %2718 = vrot.lane.b32.xlu0 %v1130, 113
        %v2719 = vpop.permute.xlu0 %2718
        %2720 = vrot.lane.b32.xlu0 %v1091, 113
        %v2721 = vpop.permute.xlu0 %2720
        %2722 = vrot.lane.b32.xlu0 %v1099, 113
        %v2723 = vpop.permute.xlu0 %2722
        %2724 = vrot.lane.b32.xlu0 %v1107, 113
        %v2725 = vpop.permute.xlu0 %2724
        %2726 = vrot.lane.b32.xlu0 %v1115, 113
        %v2727 = vpop.permute.xlu0 %2726
        %2728 = vrot.lane.b32.xlu0 %v1123, 113
        %v2729 = vpop.permute.xlu0 %2728
        %2730 = vrot.lane.b32.xlu0 %v1131, 113
        %v2731 = vpop.permute.xlu0 %2730
        %2732 = vrot.lane.b32.xlu0 %v1092, 113
        %v2733 = vpop.permute.xlu0 %2732
        %2734 = vrot.lane.b32.xlu0 %v1100, 113
        %v2735 = vpop.permute.xlu0 %2734
        %2736 = vrot.lane.b32.xlu0 %v1108, 113
        %v2737 = vpop.permute.xlu0 %2736
        %2738 = vrot.lane.b32.xlu0 %v1116, 113
        %v2739 = vpop.permute.xlu0 %2738
        %2740 = vrot.lane.b32.xlu0 %v1124, 113
        %v2741 = vpop.permute.xlu0 %2740
        %2742 = vrot.lane.b32.xlu0 %v1132, 113
        %v2743 = vpop.permute.xlu0 %2742
        %2744 = vrot.lane.b32.xlu0 %v1093, 113
        %v2745 = vpop.permute.xlu0 %2744
        %2746 = vrot.lane.b32.xlu0 %v1101, 113
        %v2747 = vpop.permute.xlu0 %2746
        %2748 = vrot.lane.b32.xlu0 %v1109, 113
        %v2749 = vpop.permute.xlu0 %2748
        %2750 = vrot.lane.b32.xlu0 %v1117, 113
        %v2751 = vpop.permute.xlu0 %2750
        %2752 = vrot.lane.b32.xlu0 %v1125, 113
        %v2753 = vpop.permute.xlu0 %2752
        %2754 = vrot.lane.b32.xlu0 %v1133, 113
        %v2755 = vpop.permute.xlu0 %2754
        %2756 = vrot.lane.b32.xlu0 %v1094, 113
        %v2757 = vpop.permute.xlu0 %2756
        %2758 = vrot.lane.b32.xlu0 %v1102, 113
        %v2759 = vpop.permute.xlu0 %2758
        %2760 = vrot.lane.b32.xlu0 %v1110, 113
        %v2761 = vpop.permute.xlu0 %2760
        %2762 = vrot.lane.b32.xlu0 %v1118, 113
        %v2763 = vpop.permute.xlu0 %2762
        %2764 = vrot.lane.b32.xlu0 %v1126, 113
        %v2765 = vpop.permute.xlu0 %2764
        %2766 = vrot.lane.b32.xlu0 %v1134, 113
        %v2767 = vpop.permute.xlu0 %2766
        %2768 = vrot.lane.b32.xlu0 %v1095, 113
        %v2769 = vpop.permute.xlu0 %2768
        %2770 = vrot.lane.b32.xlu0 %v1103, 113
        %v2771 = vpop.permute.xlu0 %2770
        %2772 = vrot.lane.b32.xlu0 %v1111, 113
        %v2773 = vpop.permute.xlu0 %2772
        %2774 = vrot.lane.b32.xlu0 %v1119, 113
        %v2775 = vpop.permute.xlu0 %2774
        %2776 = vrot.lane.b32.xlu0 %v1127, 113
        %v2777 = vpop.permute.xlu0 %2776
        %2778 = vrot.lane.b32.xlu0 %v1135, 113
        %v2779 = vpop.permute.xlu0 %2778
        %vm2780 = vcmp.lt.s32.totalorder %v1330, 113
        %v2781 = vsel %vm2780, %v2757, %v2769
        %v2782 = vsel %vm2780, %v2759, %v2771
        %v2783 = vsel %vm2780, %v2761, %v2773
        %v2784 = vsel %vm2780, %v2763, %v2775
        %v2785 = vsel %vm2780, %v2765, %v2777
        %v2786 = vsel %vm2780, %v2767, %v2779
        %v2787 = vsel %vm2780, %v2745, %v2757
        %v2788 = vsel %vm2780, %v2747, %v2759
        %v2789 = vsel %vm2780, %v2749, %v2761
        %v2790 = vsel %vm2780, %v2751, %v2763
        %v2791 = vsel %vm2780, %v2753, %v2765
        %v2792 = vsel %vm2780, %v2755, %v2767
        %v2793 = vsel %vm2780, %v2733, %v2745
        %v2794 = vsel %vm2780, %v2735, %v2747
        %v2795 = vsel %vm2780, %v2737, %v2749
        %v2796 = vsel %vm2780, %v2739, %v2751
        %v2797 = vsel %vm2780, %v2741, %v2753
        %v2798 = vsel %vm2780, %v2743, %v2755
        %v2799 = vsel %vm2780, %v2721, %v2733
        %v2800 = vsel %vm2780, %v2723, %v2735
        %v2801 = vsel %vm2780, %v2725, %v2737
        %v2802 = vsel %vm2780, %v2727, %v2739
        %v2803 = vsel %vm2780, %v2729, %v2741
        %v2804 = vsel %vm2780, %v2731, %v2743
        %v2805 = vsel %vm2780, %v2709, %v2721
        %v2806 = vsel %vm2780, %v2711, %v2723
        %v2807 = vsel %vm2780, %v2713, %v2725
        %v2808 = vsel %vm2780, %v2715, %v2727
        %v2809 = vsel %vm2780, %v2717, %v2729
        %v2810 = vsel %vm2780, %v2719, %v2731
        %v2811 = vsel %vm2780, %v2697, %v2709
        %v2812 = vsel %vm2780, %v2699, %v2711
        %v2813 = vsel %vm2780, %v2701, %v2713
        %v2814 = vsel %vm2780, %v2703, %v2715
        %v2815 = vsel %vm2780, %v2705, %v2717
        %v2816 = vsel %vm2780, %v2707, %v2719
        %v2817 = vsel %vm2780, %v2685, %v2697
        %v2818 = vsel %vm2780, %v2687, %v2699
        %v2819 = vsel %vm2780, %v2689, %v2701
        %v2820 = vsel %vm2780, %v2691, %v2703
        %v2821 = vsel %vm2780, %v2693, %v2705
        %v2822 = vsel %vm2780, %v2695, %v2707
        %v2823 = vsel %vm2780, %v2769, %v2685
        %v2824 = vsel %vm2780, %v2771, %v2687
        %v2825 = vsel %vm2780, %v2773, %v2689
        %v2826 = vsel %vm2780, %v2775, %v2691
        %v2827 = vsel %vm2780, %v2777, %v2693
        %v2828 = vsel %vm2780, %v2779, %v2695
        %s2829 = scalar_lea.vmem [#allocation5], 2304
        %v2830 = vld [vmem:[%s2829] sm:$0xff]
        %v2831 = vld [vmem:[%s2829 + $0x8] sm:$0xff]
        %v2832 = vld [vmem:[%s2829 + $0x10] sm:$0xff]
        %v2833 = vld [vmem:[%s2829 + $0x18] sm:$0xff]
        %v2834 = vld [vmem:[%s2829 + $0x20] sm:$0xff]
        %v2835 = vld [vmem:[%s2829 + $0x28] sm:$0xff]
        %v2836 = vld [vmem:[%s2829 + $0x30] sm:$0xff]
        %v2837 = vld [vmem:[%s2829 + $0x38] sm:$0xff]
        %v2838 = vld [vmem:[%s2829 + $0x40] sm:$0xff]
        %v2839 = vld [vmem:[%s2829 + $0x48] sm:$0xff]
        %v2840 = vld [vmem:[%s2829 + $0x50] sm:$0xff]
        %v2841 = vld [vmem:[%s2829 + $0x58] sm:$0xff]
        %v2842 = vld [vmem:[%s2829 + $0x60] sm:$0xff]
        %v2843 = vld [vmem:[%s2829 + $0x68] sm:$0xff]
        %v2844 = vld [vmem:[%s2829 + $0x70] sm:$0xff]
        %v2845 = vld [vmem:[%s2829 + $0x78] sm:$0xff]
        %v2846 = vld [vmem:[%s2829 + $0x80] sm:$0xff]
        %v2847 = vld [vmem:[%s2829 + $0x88] sm:$0xff]
        %v2848 = vld [vmem:[%s2829 + $0x90] sm:$0xff]
        %v2849 = vld [vmem:[%s2829 + $0x98] sm:$0xff]
        %v2850 = vld [vmem:[%s2829 + $0xa0] sm:$0xff]
        %v2851 = vld [vmem:[%s2829 + $0xa8] sm:$0xff]
        %v2852 = vld [vmem:[%s2829 + $0xb0] sm:$0xff]
        %v2853 = vld [vmem:[%s2829 + $0xb8] sm:$0xff]
        %v2854 = vld [vmem:[%s2829 + $0xc0] sm:$0xff]
        %v2855 = vld [vmem:[%s2829 + $0xc8] sm:$0xff]
        %v2856 = vld [vmem:[%s2829 + $0xd0] sm:$0xff]
        %v2857 = vld [vmem:[%s2829 + $0xd8] sm:$0xff]
        %v2858 = vld [vmem:[%s2829 + $0xe0] sm:$0xff]
        %v2859 = vld [vmem:[%s2829 + $0xe8] sm:$0xff]
        %v2860 = vld [vmem:[%s2829 + $0xf0] sm:$0xff]
        %v2861 = vld [vmem:[%s2829 + $0xf8] sm:$0xff]
        %v2862 = vld [vmem:[%s2829 + $0x100] sm:$0xff]
        %v2863 = vld [vmem:[%s2829 + $0x108] sm:$0xff]
        %v2864 = vld [vmem:[%s2829 + $0x110] sm:$0xff]
        %v2865 = vld [vmem:[%s2829 + $0x118] sm:$0xff]
        %v2866 = vld [vmem:[%s2829 + $0x120] sm:$0xff]
        %v2867 = vld [vmem:[%s2829 + $0x128] sm:$0xff]
        %v2868 = vld [vmem:[%s2829 + $0x130] sm:$0xff]
        %v2869 = vld [vmem:[%s2829 + $0x138] sm:$0xff]
        %v2870 = vld [vmem:[%s2829 + $0x140] sm:$0xff]
        %v2871 = vld [vmem:[%s2829 + $0x148] sm:$0xff]
        %v2872 = vld [vmem:[%s2829 + $0x150] sm:$0xff]
        %v2873 = vld [vmem:[%s2829 + $0x158] sm:$0xff]
        %v2874 = vld [vmem:[%s2829 + $0x160] sm:$0xff]
        %v2875 = vld [vmem:[%s2829 + $0x168] sm:$0xff]
        %v2876 = vld [vmem:[%s2829 + $0x170] sm:$0xff]
        %v2877 = vld [vmem:[%s2829 + $0x178] sm:$0xff]
        %v2878 = vmul.f32 %v2817, %v2830
        %v2879 = vmul.f32 %v2811, %v2831
        %v2880 = vmul.f32 %v2805, %v2832
        %v2881 = vmul.f32 %v2799, %v2833
        %v2882 = vmul.f32 %v2793, %v2834
        %v2883 = vmul.f32 %v2787, %v2835
        %v2884 = vmul.f32 %v2781, %v2836
        %v2885 = vmul.f32 %v2823, %v2837
        %v2886 = vmul.f32 %v2818, %v2838
        %v2887 = vmul.f32 %v2812, %v2839
        %v2888 = vmul.f32 %v2806, %v2840
        %v2889 = vmul.f32 %v2800, %v2841
        %v2890 = vmul.f32 %v2794, %v2842
        %v2891 = vmul.f32 %v2788, %v2843
        %v2892 = vmul.f32 %v2782, %v2844
        %v2893 = vmul.f32 %v2824, %v2845
        %v2894 = vmul.f32 %v2819, %v2846
        %v2895 = vmul.f32 %v2813, %v2847
        %v2896 = vmul.f32 %v2807, %v2848
        %v2897 = vmul.f32 %v2801, %v2849
        %v2898 = vmul.f32 %v2795, %v2850
        %v2899 = vmul.f32 %v2789, %v2851
        %v2900 = vmul.f32 %v2783, %v2852
        %v2901 = vmul.f32 %v2825, %v2853
        %v2902 = vmul.f32 %v2820, %v2854
        %v2903 = vmul.f32 %v2814, %v2855
        %v2904 = vmul.f32 %v2808, %v2856
        %v2905 = vmul.f32 %v2802, %v2857
        %v2906 = vmul.f32 %v2796, %v2858
        %v2907 = vmul.f32 %v2790, %v2859
        %v2908 = vmul.f32 %v2784, %v2860
        %v2909 = vmul.f32 %v2826, %v2861
        %v2910 = vmul.f32 %v2821, %v2862
        %v2911 = vmul.f32 %v2815, %v2863
        %v2912 = vmul.f32 %v2809, %v2864
        %v2913 = vmul.f32 %v2803, %v2865
        %v2914 = vmul.f32 %v2797, %v2866
        %v2915 = vmul.f32 %v2791, %v2867
        %v2916 = vmul.f32 %v2785, %v2868
        %v2917 = vmul.f32 %v2827, %v2869
        %v2918 = vmul.f32 %v2822, %v2870
        %v2919 = vmul.f32 %v2816, %v2871
        %v2920 = vmul.f32 %v2810, %v2872
        %v2921 = vmul.f32 %v2804, %v2873
        %v2922 = vmul.f32 %v2798, %v2874
        %v2923 = vmul.f32 %v2792, %v2875
        %v2924 = vmul.f32 %v2786, %v2876
        %v2925 = vmul.f32 %v2828, %v2877
        %v2926 = vadd.f32 %v2636, %v2878
        %v2927 = vadd.f32 %v2637, %v2879
        %v2928 = vadd.f32 %v2638, %v2880
        %v2929 = vadd.f32 %v2639, %v2881
        %v2930 = vadd.f32 %v2640, %v2882
        %v2931 = vadd.f32 %v2641, %v2883
        %v2932 = vadd.f32 %v2642, %v2884
        %v2933 = vadd.f32 %v2643, %v2885
        %v2934 = vadd.f32 %v2644, %v2886
        %v2935 = vadd.f32 %v2645, %v2887
        %v2936 = vadd.f32 %v2646, %v2888
        %v2937 = vadd.f32 %v2647, %v2889
        %v2938 = vadd.f32 %v2648, %v2890
        %v2939 = vadd.f32 %v2649, %v2891
        %v2940 = vadd.f32 %v2650, %v2892
        %v2941 = vadd.f32 %v2651, %v2893
        %v2942 = vadd.f32 %v2652, %v2894
        %v2943 = vadd.f32 %v2653, %v2895
        %v2944 = vadd.f32 %v2654, %v2896
        %v2945 = vadd.f32 %v2655, %v2897
        %v2946 = vadd.f32 %v2656, %v2898
        %v2947 = vadd.f32 %v2657, %v2899
        %v2948 = vadd.f32 %v2658, %v2900
        %v2949 = vadd.f32 %v2659, %v2901
        %v2950 = vadd.f32 %v2660, %v2902
        %v2951 = vadd.f32 %v2661, %v2903
        %v2952 = vadd.f32 %v2662, %v2904
        %v2953 = vadd.f32 %v2663, %v2905
        %v2954 = vadd.f32 %v2664, %v2906
        %v2955 = vadd.f32 %v2665, %v2907
        %v2956 = vadd.f32 %v2666, %v2908
        %v2957 = vadd.f32 %v2667, %v2909
        %v2958 = vadd.f32 %v2668, %v2910
        %v2959 = vadd.f32 %v2669, %v2911
        %v2960 = vadd.f32 %v2670, %v2912
        %v2961 = vadd.f32 %v2671, %v2913
        %v2962 = vadd.f32 %v2672, %v2914
        %v2963 = vadd.f32 %v2673, %v2915
        %v2964 = vadd.f32 %v2674, %v2916
        %v2965 = vadd.f32 %v2675, %v2917
        %v2966 = vadd.f32 %v2676, %v2918
        %v2967 = vadd.f32 %v2677, %v2919
        %v2968 = vadd.f32 %v2678, %v2920
        %v2969 = vadd.f32 %v2679, %v2921
        %v2970 = vadd.f32 %v2680, %v2922
        %v2971 = vadd.f32 %v2681, %v2923
        %v2972 = vadd.f32 %v2682, %v2924
        %v2973 = vadd.f32 %v2683, %v2925
        %2974 = vrot.lane.b32.xlu0 %v1088, 112
        %v2975 = vpop.permute.xlu0 %2974
        %2976 = vrot.lane.b32.xlu0 %v1096, 112
        %v2977 = vpop.permute.xlu0 %2976
        %2978 = vrot.lane.b32.xlu0 %v1104, 112
        %v2979 = vpop.permute.xlu0 %2978
        %2980 = vrot.lane.b32.xlu0 %v1112, 112
        %v2981 = vpop.permute.xlu0 %2980
        %2982 = vrot.lane.b32.xlu0 %v1120, 112
        %v2983 = vpop.permute.xlu0 %2982
        %2984 = vrot.lane.b32.xlu0 %v1128, 112
        %v2985 = vpop.permute.xlu0 %2984
        %2986 = vrot.lane.b32.xlu0 %v1089, 112
        %v2987 = vpop.permute.xlu0 %2986
        %2988 = vrot.lane.b32.xlu0 %v1097, 112
        %v2989 = vpop.permute.xlu0 %2988
        %2990 = vrot.lane.b32.xlu0 %v1105, 112
        %v2991 = vpop.permute.xlu0 %2990
        %2992 = vrot.lane.b32.xlu0 %v1113, 112
        %v2993 = vpop.permute.xlu0 %2992
        %2994 = vrot.lane.b32.xlu0 %v1121, 112
        %v2995 = vpop.permute.xlu0 %2994
        %2996 = vrot.lane.b32.xlu0 %v1129, 112
        %v2997 = vpop.permute.xlu0 %2996
        %2998 = vrot.lane.b32.xlu0 %v1090, 112
        %v2999 = vpop.permute.xlu0 %2998
        %3000 = vrot.lane.b32.xlu0 %v1098, 112
        %v3001 = vpop.permute.xlu0 %3000
        %3002 = vrot.lane.b32.xlu0 %v1106, 112
        %v3003 = vpop.permute.xlu0 %3002
        %3004 = vrot.lane.b32.xlu0 %v1114, 112
        %v3005 = vpop.permute.xlu0 %3004
        %3006 = vrot.lane.b32.xlu0 %v1122, 112
        %v3007 = vpop.permute.xlu0 %3006
        %3008 = vrot.lane.b32.xlu0 %v1130, 112
        %v3009 = vpop.permute.xlu0 %3008
        %3010 = vrot.lane.b32.xlu0 %v1091, 112
        %v3011 = vpop.permute.xlu0 %3010
        %3012 = vrot.lane.b32.xlu0 %v1099, 112
        %v3013 = vpop.permute.xlu0 %3012
        %3014 = vrot.lane.b32.xlu0 %v1107, 112
        %v3015 = vpop.permute.xlu0 %3014
        %3016 = vrot.lane.b32.xlu0 %v1115, 112
        %v3017 = vpop.permute.xlu0 %3016
        %3018 = vrot.lane.b32.xlu0 %v1123, 112
        %v3019 = vpop.permute.xlu0 %3018
        %3020 = vrot.lane.b32.xlu0 %v1131, 112
        %v3021 = vpop.permute.xlu0 %3020
        %3022 = vrot.lane.b32.xlu0 %v1092, 112
        %v3023 = vpop.permute.xlu0 %3022
        %3024 = vrot.lane.b32.xlu0 %v1100, 112
        %v3025 = vpop.permute.xlu0 %3024
        %3026 = vrot.lane.b32.xlu0 %v1108, 112
        %v3027 = vpop.permute.xlu0 %3026
        %3028 = vrot.lane.b32.xlu0 %v1116, 112
        %v3029 = vpop.permute.xlu0 %3028
        %3030 = vrot.lane.b32.xlu0 %v1124, 112
        %v3031 = vpop.permute.xlu0 %3030
        %3032 = vrot.lane.b32.xlu0 %v1132, 112
        %v3033 = vpop.permute.xlu0 %3032
        %3034 = vrot.lane.b32.xlu0 %v1093, 112
        %v3035 = vpop.permute.xlu0 %3034
        %3036 = vrot.lane.b32.xlu0 %v1101, 112
        %v3037 = vpop.permute.xlu0 %3036
        %3038 = vrot.lane.b32.xlu0 %v1109, 112
        %v3039 = vpop.permute.xlu0 %3038
        %3040 = vrot.lane.b32.xlu0 %v1117, 112
        %v3041 = vpop.permute.xlu0 %3040
        %3042 = vrot.lane.b32.xlu0 %v1125, 112
        %v3043 = vpop.permute.xlu0 %3042
        %3044 = vrot.lane.b32.xlu0 %v1133, 112
        %v3045 = vpop.permute.xlu0 %3044
        %3046 = vrot.lane.b32.xlu0 %v1094, 112
        %v3047 = vpop.permute.xlu0 %3046
        %3048 = vrot.lane.b32.xlu0 %v1102, 112
        %v3049 = vpop.permute.xlu0 %3048
        %3050 = vrot.lane.b32.xlu0 %v1110, 112
        %v3051 = vpop.permute.xlu0 %3050
        %3052 = vrot.lane.b32.xlu0 %v1118, 112
        %v3053 = vpop.permute.xlu0 %3052
        %3054 = vrot.lane.b32.xlu0 %v1126, 112
        %v3055 = vpop.permute.xlu0 %3054
        %3056 = vrot.lane.b32.xlu0 %v1134, 112
        %v3057 = vpop.permute.xlu0 %3056
        %3058 = vrot.lane.b32.xlu0 %v1095, 112
        %v3059 = vpop.permute.xlu0 %3058
        %3060 = vrot.lane.b32.xlu0 %v1103, 112
        %v3061 = vpop.permute.xlu0 %3060
        %3062 = vrot.lane.b32.xlu0 %v1111, 112
        %v3063 = vpop.permute.xlu0 %3062
        %3064 = vrot.lane.b32.xlu0 %v1119, 112
        %v3065 = vpop.permute.xlu0 %3064
        %3066 = vrot.lane.b32.xlu0 %v1127, 112
        %v3067 = vpop.permute.xlu0 %3066
        %3068 = vrot.lane.b32.xlu0 %v1135, 112
        %v3069 = vpop.permute.xlu0 %3068
        %vm3070 = vcmp.lt.s32.totalorder %v1330, 112
        %v3071 = vsel %vm3070, %v3047, %v3059
        %v3072 = vsel %vm3070, %v3049, %v3061
        %v3073 = vsel %vm3070, %v3051, %v3063
        %v3074 = vsel %vm3070, %v3053, %v3065
        %v3075 = vsel %vm3070, %v3055, %v3067
        %v3076 = vsel %vm3070, %v3057, %v3069
        %v3077 = vsel %vm3070, %v3035, %v3047
        %v3078 = vsel %vm3070, %v3037, %v3049
        %v3079 = vsel %vm3070, %v3039, %v3051
        %v3080 = vsel %vm3070, %v3041, %v3053
        %v3081 = vsel %vm3070, %v3043, %v3055
        %v3082 = vsel %vm3070, %v3045, %v3057
        %v3083 = vsel %vm3070, %v3023, %v3035
        %v3084 = vsel %vm3070, %v3025, %v3037
        %v3085 = vsel %vm3070, %v3027, %v3039
        %v3086 = vsel %vm3070, %v3029, %v3041
        %v3087 = vsel %vm3070, %v3031, %v3043
        %v3088 = vsel %vm3070, %v3033, %v3045
        %v3089 = vsel %vm3070, %v3011, %v3023
        %v3090 = vsel %vm3070, %v3013, %v3025
        %v3091 = vsel %vm3070, %v3015, %v3027
        %v3092 = vsel %vm3070, %v3017, %v3029
        %v3093 = vsel %vm3070, %v3019, %v3031
        %v3094 = vsel %vm3070, %v3021, %v3033
        %v3095 = vsel %vm3070, %v2999, %v3011
        %v3096 = vsel %vm3070, %v3001, %v3013
        %v3097 = vsel %vm3070, %v3003, %v3015
        %v3098 = vsel %vm3070, %v3005, %v3017
        %v3099 = vsel %vm3070, %v3007, %v3019
        %v3100 = vsel %vm3070, %v3009, %v3021
        %v3101 = vsel %vm3070, %v2987, %v2999
        %v3102 = vsel %vm3070, %v2989, %v3001
        %v3103 = vsel %vm3070, %v2991, %v3003
        %v3104 = vsel %vm3070, %v2993, %v3005
        %v3105 = vsel %vm3070, %v2995, %v3007
        %v3106 = vsel %vm3070, %v2997, %v3009
        %v3107 = vsel %vm3070, %v2975, %v2987
        %v3108 = vsel %vm3070, %v2977, %v2989
        %v3109 = vsel %vm3070, %v2979, %v2991
        %v3110 = vsel %vm3070, %v2981, %v2993
        %v3111 = vsel %vm3070, %v2983, %v2995
        %v3112 = vsel %vm3070, %v2985, %v2997
        %v3113 = vsel %vm3070, %v3059, %v2975
        %v3114 = vsel %vm3070, %v3061, %v2977
        %v3115 = vsel %vm3070, %v3063, %v2979
        %v3116 = vsel %vm3070, %v3065, %v2981
        %v3117 = vsel %vm3070, %v3067, %v2983
        %v3118 = vsel %vm3070, %v3069, %v2985
        %s3119 = scalar_lea.vmem [#allocation5], 2688
        %v3120 = vld [vmem:[%s3119] sm:$0xff]
        %v3121 = vld [vmem:[%s3119 + $0x8] sm:$0xff]
        %v3122 = vld [vmem:[%s3119 + $0x10] sm:$0xff]
        %v3123 = vld [vmem:[%s3119 + $0x18] sm:$0xff]
        %v3124 = vld [vmem:[%s3119 + $0x20] sm:$0xff]
        %v3125 = vld [vmem:[%s3119 + $0x28] sm:$0xff]
        %v3126 = vld [vmem:[%s3119 + $0x30] sm:$0xff]
        %v3127 = vld [vmem:[%s3119 + $0x38] sm:$0xff]
        %v3128 = vld [vmem:[%s3119 + $0x40] sm:$0xff]
        %v3129 = vld [vmem:[%s3119 + $0x48] sm:$0xff]
        %v3130 = vld [vmem:[%s3119 + $0x50] sm:$0xff]
        %v3131 = vld [vmem:[%s3119 + $0x58] sm:$0xff]
        %v3132 = vld [vmem:[%s3119 + $0x60] sm:$0xff]
        %v3133 = vld [vmem:[%s3119 + $0x68] sm:$0xff]
        %v3134 = vld [vmem:[%s3119 + $0x70] sm:$0xff]
        %v3135 = vld [vmem:[%s3119 + $0x78] sm:$0xff]
        %v3136 = vld [vmem:[%s3119 + $0x80] sm:$0xff]
        %v3137 = vld [vmem:[%s3119 + $0x88] sm:$0xff]
        %v3138 = vld [vmem:[%s3119 + $0x90] sm:$0xff]
        %v3139 = vld [vmem:[%s3119 + $0x98] sm:$0xff]
        %v3140 = vld [vmem:[%s3119 + $0xa0] sm:$0xff]
        %v3141 = vld [vmem:[%s3119 + $0xa8] sm:$0xff]
        %v3142 = vld [vmem:[%s3119 + $0xb0] sm:$0xff]
        %v3143 = vld [vmem:[%s3119 + $0xb8] sm:$0xff]
        %v3144 = vld [vmem:[%s3119 + $0xc0] sm:$0xff]
        %v3145 = vld [vmem:[%s3119 + $0xc8] sm:$0xff]
        %v3146 = vld [vmem:[%s3119 + $0xd0] sm:$0xff]
        %v3147 = vld [vmem:[%s3119 + $0xd8] sm:$0xff]
        %v3148 = vld [vmem:[%s3119 + $0xe0] sm:$0xff]
        %v3149 = vld [vmem:[%s3119 + $0xe8] sm:$0xff]
        %v3150 = vld [vmem:[%s3119 + $0xf0] sm:$0xff]
        %v3151 = vld [vmem:[%s3119 + $0xf8] sm:$0xff]
        %v3152 = vld [vmem:[%s3119 + $0x100] sm:$0xff]
        %v3153 = vld [vmem:[%s3119 + $0x108] sm:$0xff]
        %v3154 = vld [vmem:[%s3119 + $0x110] sm:$0xff]
        %v3155 = vld [vmem:[%s3119 + $0x118] sm:$0xff]
        %v3156 = vld [vmem:[%s3119 + $0x120] sm:$0xff]
        %v3157 = vld [vmem:[%s3119 + $0x128] sm:$0xff]
        %v3158 = vld [vmem:[%s3119 + $0x130] sm:$0xff]
        %v3159 = vld [vmem:[%s3119 + $0x138] sm:$0xff]
        %v3160 = vld [vmem:[%s3119 + $0x140] sm:$0xff]
        %v3161 = vld [vmem:[%s3119 + $0x148] sm:$0xff]
        %v3162 = vld [vmem:[%s3119 + $0x150] sm:$0xff]
        %v3163 = vld [vmem:[%s3119 + $0x158] sm:$0xff]
        %v3164 = vld [vmem:[%s3119 + $0x160] sm:$0xff]
        %v3165 = vld [vmem:[%s3119 + $0x168] sm:$0xff]
        %v3166 = vld [vmem:[%s3119 + $0x170] sm:$0xff]
        %v3167 = vld [vmem:[%s3119 + $0x178] sm:$0xff]
        %v3168 = vmul.f32 %v3107, %v3120
        %v3169 = vmul.f32 %v3101, %v3121
        %v3170 = vmul.f32 %v3095, %v3122
        %v3171 = vmul.f32 %v3089, %v3123
        %v3172 = vmul.f32 %v3083, %v3124
        %v3173 = vmul.f32 %v3077, %v3125
        %v3174 = vmul.f32 %v3071, %v3126
        %v3175 = vmul.f32 %v3113, %v3127
        %v3176 = vmul.f32 %v3108, %v3128
        %v3177 = vmul.f32 %v3102, %v3129
        %v3178 = vmul.f32 %v3096, %v3130
        %v3179 = vmul.f32 %v3090, %v3131
        %v3180 = vmul.f32 %v3084, %v3132
        %v3181 = vmul.f32 %v3078, %v3133
        %v3182 = vmul.f32 %v3072, %v3134
        %v3183 = vmul.f32 %v3114, %v3135
        %v3184 = vmul.f32 %v3109, %v3136
        %v3185 = vmul.f32 %v3103, %v3137
        %v3186 = vmul.f32 %v3097, %v3138
        %v3187 = vmul.f32 %v3091, %v3139
        %v3188 = vmul.f32 %v3085, %v3140
        %v3189 = vmul.f32 %v3079, %v3141
        %v3190 = vmul.f32 %v3073, %v3142
        %v3191 = vmul.f32 %v3115, %v3143
        %v3192 = vmul.f32 %v3110, %v3144
        %v3193 = vmul.f32 %v3104, %v3145
        %v3194 = vmul.f32 %v3098, %v3146
        %v3195 = vmul.f32 %v3092, %v3147
        %v3196 = vmul.f32 %v3086, %v3148
        %v3197 = vmul.f32 %v3080, %v3149
        %v3198 = vmul.f32 %v3074, %v3150
        %v3199 = vmul.f32 %v3116, %v3151
        %v3200 = vmul.f32 %v3111, %v3152
        %v3201 = vmul.f32 %v3105, %v3153
        %v3202 = vmul.f32 %v3099, %v3154
        %v3203 = vmul.f32 %v3093, %v3155
        %v3204 = vmul.f32 %v3087, %v3156
        %v3205 = vmul.f32 %v3081, %v3157
        %v3206 = vmul.f32 %v3075, %v3158
        %v3207 = vmul.f32 %v3117, %v3159
        %v3208 = vmul.f32 %v3112, %v3160
        %v3209 = vmul.f32 %v3106, %v3161
        %v3210 = vmul.f32 %v3100, %v3162
        %v3211 = vmul.f32 %v3094, %v3163
        %v3212 = vmul.f32 %v3088, %v3164
        %v3213 = vmul.f32 %v3082, %v3165
        %v3214 = vmul.f32 %v3076, %v3166
        %v3215 = vmul.f32 %v3118, %v3167
        %v3216 = vadd.f32 %v2926, %v3168
        %v3217 = vadd.f32 %v2927, %v3169
        %v3218 = vadd.f32 %v2928, %v3170
        %v3219 = vadd.f32 %v2929, %v3171
        %v3220 = vadd.f32 %v2930, %v3172
        %v3221 = vadd.f32 %v2931, %v3173
        %v3222 = vadd.f32 %v2932, %v3174
        %v3223 = vadd.f32 %v2933, %v3175
        %v3224 = vadd.f32 %v2934, %v3176
        %v3225 = vadd.f32 %v2935, %v3177
        %v3226 = vadd.f32 %v2936, %v3178
        %v3227 = vadd.f32 %v2937, %v3179
        %v3228 = vadd.f32 %v2938, %v3180
        %v3229 = vadd.f32 %v2939, %v3181
        %v3230 = vadd.f32 %v2940, %v3182
        %v3231 = vadd.f32 %v2941, %v3183
        %v3232 = vadd.f32 %v2942, %v3184
        %v3233 = vadd.f32 %v2943, %v3185
        %v3234 = vadd.f32 %v2944, %v3186
        %v3235 = vadd.f32 %v2945, %v3187
        %v3236 = vadd.f32 %v2946, %v3188
        %v3237 = vadd.f32 %v2947, %v3189
        %v3238 = vadd.f32 %v2948, %v3190
        %v3239 = vadd.f32 %v2949, %v3191
        %v3240 = vadd.f32 %v2950, %v3192
        %v3241 = vadd.f32 %v2951, %v3193
        %v3242 = vadd.f32 %v2952, %v3194
        %v3243 = vadd.f32 %v2953, %v3195
        %v3244 = vadd.f32 %v2954, %v3196
        %v3245 = vadd.f32 %v2955, %v3197
        %v3246 = vadd.f32 %v2956, %v3198
        %v3247 = vadd.f32 %v2957, %v3199
        %v3248 = vadd.f32 %v2958, %v3200
        %v3249 = vadd.f32 %v2959, %v3201
        %v3250 = vadd.f32 %v2960, %v3202
        %v3251 = vadd.f32 %v2961, %v3203
        %v3252 = vadd.f32 %v2962, %v3204
        %v3253 = vadd.f32 %v2963, %v3205
        %v3254 = vadd.f32 %v2964, %v3206
        %v3255 = vadd.f32 %v2965, %v3207
        %v3256 = vadd.f32 %v2966, %v3208
        %v3257 = vadd.f32 %v2967, %v3209
        %v3258 = vadd.f32 %v2968, %v3210
        %v3259 = vadd.f32 %v2969, %v3211
        %v3260 = vadd.f32 %v2970, %v3212
        %v3261 = vadd.f32 %v2971, %v3213
        %v3262 = vadd.f32 %v2972, %v3214
        %v3263 = vadd.f32 %v2973, %v3215
        %3264 = vrot.lane.b32.xlu0 %v1088, 111
        %v3265 = vpop.permute.xlu0 %3264
        %3266 = vrot.lane.b32.xlu0 %v1096, 111
        %v3267 = vpop.permute.xlu0 %3266
        %3268 = vrot.lane.b32.xlu0 %v1104, 111
        %v3269 = vpop.permute.xlu0 %3268
        %3270 = vrot.lane.b32.xlu0 %v1112, 111
        %v3271 = vpop.permute.xlu0 %3270
        %3272 = vrot.lane.b32.xlu0 %v1120, 111
        %v3273 = vpop.permute.xlu0 %3272
        %3274 = vrot.lane.b32.xlu0 %v1128, 111
        %v3275 = vpop.permute.xlu0 %3274
        %3276 = vrot.lane.b32.xlu0 %v1089, 111
        %v3277 = vpop.permute.xlu0 %3276
        %3278 = vrot.lane.b32.xlu0 %v1097, 111
        %v3279 = vpop.permute.xlu0 %3278
        %3280 = vrot.lane.b32.xlu0 %v1105, 111
        %v3281 = vpop.permute.xlu0 %3280
        %3282 = vrot.lane.b32.xlu0 %v1113, 111
        %v3283 = vpop.permute.xlu0 %3282
        %3284 = vrot.lane.b32.xlu0 %v1121, 111
        %v3285 = vpop.permute.xlu0 %3284
        %3286 = vrot.lane.b32.xlu0 %v1129, 111
        %v3287 = vpop.permute.xlu0 %3286
        %3288 = vrot.lane.b32.xlu0 %v1090, 111
        %v3289 = vpop.permute.xlu0 %3288
        %3290 = vrot.lane.b32.xlu0 %v1098, 111
        %v3291 = vpop.permute.xlu0 %3290
        %3292 = vrot.lane.b32.xlu0 %v1106, 111
        %v3293 = vpop.permute.xlu0 %3292
        %3294 = vrot.lane.b32.xlu0 %v1114, 111
        %v3295 = vpop.permute.xlu0 %3294
        %3296 = vrot.lane.b32.xlu0 %v1122, 111
        %v3297 = vpop.permute.xlu0 %3296
        %3298 = vrot.lane.b32.xlu0 %v1130, 111
        %v3299 = vpop.permute.xlu0 %3298
        %3300 = vrot.lane.b32.xlu0 %v1091, 111
        %v3301 = vpop.permute.xlu0 %3300
        %3302 = vrot.lane.b32.xlu0 %v1099, 111
        %v3303 = vpop.permute.xlu0 %3302
        %3304 = vrot.lane.b32.xlu0 %v1107, 111
        %v3305 = vpop.permute.xlu0 %3304
        %3306 = vrot.lane.b32.xlu0 %v1115, 111
        %v3307 = vpop.permute.xlu0 %3306
        %3308 = vrot.lane.b32.xlu0 %v1123, 111
        %v3309 = vpop.permute.xlu0 %3308
        %3310 = vrot.lane.b32.xlu0 %v1131, 111
        %v3311 = vpop.permute.xlu0 %3310
        %3312 = vrot.lane.b32.xlu0 %v1092, 111
        %v3313 = vpop.permute.xlu0 %3312
        %3314 = vrot.lane.b32.xlu0 %v1100, 111
        %v3315 = vpop.permute.xlu0 %3314
        %3316 = vrot.lane.b32.xlu0 %v1108, 111
        %v3317 = vpop.permute.xlu0 %3316
        %3318 = vrot.lane.b32.xlu0 %v1116, 111
        %v3319 = vpop.permute.xlu0 %3318
        %3320 = vrot.lane.b32.xlu0 %v1124, 111
        %v3321 = vpop.permute.xlu0 %3320
        %3322 = vrot.lane.b32.xlu0 %v1132, 111
        %v3323 = vpop.permute.xlu0 %3322
        %3324 = vrot.lane.b32.xlu0 %v1093, 111
        %v3325 = vpop.permute.xlu0 %3324
        %3326 = vrot.lane.b32.xlu0 %v1101, 111
        %v3327 = vpop.permute.xlu0 %3326
        %3328 = vrot.lane.b32.xlu0 %v1109, 111
        %v3329 = vpop.permute.xlu0 %3328
        %3330 = vrot.lane.b32.xlu0 %v1117, 111
        %v3331 = vpop.permute.xlu0 %3330
        %3332 = vrot.lane.b32.xlu0 %v1125, 111
        %v3333 = vpop.permute.xlu0 %3332
        %3334 = vrot.lane.b32.xlu0 %v1133, 111
        %v3335 = vpop.permute.xlu0 %3334
        %3336 = vrot.lane.b32.xlu0 %v1094, 111
        %v3337 = vpop.permute.xlu0 %3336
        %3338 = vrot.lane.b32.xlu0 %v1102, 111
        %v3339 = vpop.permute.xlu0 %3338
        %3340 = vrot.lane.b32.xlu0 %v1110, 111
        %v3341 = vpop.permute.xlu0 %3340
        %3342 = vrot.lane.b32.xlu0 %v1118, 111
        %v3343 = vpop.permute.xlu0 %3342
        %3344 = vrot.lane.b32.xlu0 %v1126, 111
        %v3345 = vpop.permute.xlu0 %3344
        %3346 = vrot.lane.b32.xlu0 %v1134, 111
        %v3347 = vpop.permute.xlu0 %3346
        %3348 = vrot.lane.b32.xlu0 %v1095, 111
        %v3349 = vpop.permute.xlu0 %3348
        %3350 = vrot.lane.b32.xlu0 %v1103, 111
        %v3351 = vpop.permute.xlu0 %3350
        %3352 = vrot.lane.b32.xlu0 %v1111, 111
        %v3353 = vpop.permute.xlu0 %3352
        %3354 = vrot.lane.b32.xlu0 %v1119, 111
        %v3355 = vpop.permute.xlu0 %3354
        %3356 = vrot.lane.b32.xlu0 %v1127, 111
        %v3357 = vpop.permute.xlu0 %3356
        %3358 = vrot.lane.b32.xlu0 %v1135, 111
        %v3359 = vpop.permute.xlu0 %3358
        %vm3360 = vcmp.lt.s32.totalorder %v1330, 111
        %v3361 = vsel %vm3360, %v3337, %v3349
        %v3362 = vsel %vm3360, %v3339, %v3351
        %v3363 = vsel %vm3360, %v3341, %v3353
        %v3364 = vsel %vm3360, %v3343, %v3355
        %v3365 = vsel %vm3360, %v3345, %v3357
        %v3366 = vsel %vm3360, %v3347, %v3359
        %v3367 = vsel %vm3360, %v3325, %v3337
        %v3368 = vsel %vm3360, %v3327, %v3339
        %v3369 = vsel %vm3360, %v3329, %v3341
        %v3370 = vsel %vm3360, %v3331, %v3343
        %v3371 = vsel %vm3360, %v3333, %v3345
        %v3372 = vsel %vm3360, %v3335, %v3347
        %v3373 = vsel %vm3360, %v3313, %v3325
        %v3374 = vsel %vm3360, %v3315, %v3327
        %v3375 = vsel %vm3360, %v3317, %v3329
        %v3376 = vsel %vm3360, %v3319, %v3331
        %v3377 = vsel %vm3360, %v3321, %v3333
        %v3378 = vsel %vm3360, %v3323, %v3335
        %v3379 = vsel %vm3360, %v3301, %v3313
        %v3380 = vsel %vm3360, %v3303, %v3315
        %v3381 = vsel %vm3360, %v3305, %v3317
        %v3382 = vsel %vm3360, %v3307, %v3319
        %v3383 = vsel %vm3360, %v3309, %v3321
        %v3384 = vsel %vm3360, %v3311, %v3323
        %v3385 = vsel %vm3360, %v3289, %v3301
        %v3386 = vsel %vm3360, %v3291, %v3303
        %v3387 = vsel %vm3360, %v3293, %v3305
        %v3388 = vsel %vm3360, %v3295, %v3307
        %v3389 = vsel %vm3360, %v3297, %v3309
        %v3390 = vsel %vm3360, %v3299, %v3311
        %v3391 = vsel %vm3360, %v3277, %v3289
        %v3392 = vsel %vm3360, %v3279, %v3291
        %v3393 = vsel %vm3360, %v3281, %v3293
        %v3394 = vsel %vm3360, %v3283, %v3295
        %v3395 = vsel %vm3360, %v3285, %v3297
        %v3396 = vsel %vm3360, %v3287, %v3299
        %v3397 = vsel %vm3360, %v3265, %v3277
        %v3398 = vsel %vm3360, %v3267, %v3279
        %v3399 = vsel %vm3360, %v3269, %v3281
        %v3400 = vsel %vm3360, %v3271, %v3283
        %v3401 = vsel %vm3360, %v3273, %v3285
        %v3402 = vsel %vm3360, %v3275, %v3287
        %v3403 = vsel %vm3360, %v3349, %v3265
        %v3404 = vsel %vm3360, %v3351, %v3267
        %v3405 = vsel %vm3360, %v3353, %v3269
        %v3406 = vsel %vm3360, %v3355, %v3271
        %v3407 = vsel %vm3360, %v3357, %v3273
        %v3408 = vsel %vm3360, %v3359, %v3275
        %s3409 = scalar_lea.vmem [#allocation5], 3072
        %v3410 = vld [vmem:[%s3409] sm:$0xff]
        %v3411 = vld [vmem:[%s3409 + $0x8] sm:$0xff]
        %v3412 = vld [vmem:[%s3409 + $0x10] sm:$0xff]
        %v3413 = vld [vmem:[%s3409 + $0x18] sm:$0xff]
        %v3414 = vld [vmem:[%s3409 + $0x20] sm:$0xff]
        %v3415 = vld [vmem:[%s3409 + $0x28] sm:$0xff]
        %v3416 = vld [vmem:[%s3409 + $0x30] sm:$0xff]
        %v3417 = vld [vmem:[%s3409 + $0x38] sm:$0xff]
        %v3418 = vld [vmem:[%s3409 + $0x40] sm:$0xff]
        %v3419 = vld [vmem:[%s3409 + $0x48] sm:$0xff]
        %v3420 = vld [vmem:[%s3409 + $0x50] sm:$0xff]
        %v3421 = vld [vmem:[%s3409 + $0x58] sm:$0xff]
        %v3422 = vld [vmem:[%s3409 + $0x60] sm:$0xff]
        %v3423 = vld [vmem:[%s3409 + $0x68] sm:$0xff]
        %v3424 = vld [vmem:[%s3409 + $0x70] sm:$0xff]
        %v3425 = vld [vmem:[%s3409 + $0x78] sm:$0xff]
        %v3426 = vld [vmem:[%s3409 + $0x80] sm:$0xff]
        %v3427 = vld [vmem:[%s3409 + $0x88] sm:$0xff]
        %v3428 = vld [vmem:[%s3409 + $0x90] sm:$0xff]
        %v3429 = vld [vmem:[%s3409 + $0x98] sm:$0xff]
        %v3430 = vld [vmem:[%s3409 + $0xa0] sm:$0xff]
        %v3431 = vld [vmem:[%s3409 + $0xa8] sm:$0xff]
        %v3432 = vld [vmem:[%s3409 + $0xb0] sm:$0xff]
        %v3433 = vld [vmem:[%s3409 + $0xb8] sm:$0xff]
        %v3434 = vld [vmem:[%s3409 + $0xc0] sm:$0xff]
        %v3435 = vld [vmem:[%s3409 + $0xc8] sm:$0xff]
        %v3436 = vld [vmem:[%s3409 + $0xd0] sm:$0xff]
        %v3437 = vld [vmem:[%s3409 + $0xd8] sm:$0xff]
        %v3438 = vld [vmem:[%s3409 + $0xe0] sm:$0xff]
        %v3439 = vld [vmem:[%s3409 + $0xe8] sm:$0xff]
        %v3440 = vld [vmem:[%s3409 + $0xf0] sm:$0xff]
        %v3441 = vld [vmem:[%s3409 + $0xf8] sm:$0xff]
        %v3442 = vld [vmem:[%s3409 + $0x100] sm:$0xff]
        %v3443 = vld [vmem:[%s3409 + $0x108] sm:$0xff]
        %v3444 = vld [vmem:[%s3409 + $0x110] sm:$0xff]
        %v3445 = vld [vmem:[%s3409 + $0x118] sm:$0xff]
        %v3446 = vld [vmem:[%s3409 + $0x120] sm:$0xff]
        %v3447 = vld [vmem:[%s3409 + $0x128] sm:$0xff]
        %v3448 = vld [vmem:[%s3409 + $0x130] sm:$0xff]
        %v3449 = vld [vmem:[%s3409 + $0x138] sm:$0xff]
        %v3450 = vld [vmem:[%s3409 + $0x140] sm:$0xff]
        %v3451 = vld [vmem:[%s3409 + $0x148] sm:$0xff]
        %v3452 = vld [vmem:[%s3409 + $0x150] sm:$0xff]
        %v3453 = vld [vmem:[%s3409 + $0x158] sm:$0xff]
        %v3454 = vld [vmem:[%s3409 + $0x160] sm:$0xff]
        %v3455 = vld [vmem:[%s3409 + $0x168] sm:$0xff]
        %v3456 = vld [vmem:[%s3409 + $0x170] sm:$0xff]
        %v3457 = vld [vmem:[%s3409 + $0x178] sm:$0xff]
        %v3458 = vmul.f32 %v3397, %v3410
        %v3459 = vmul.f32 %v3391, %v3411
        %v3460 = vmul.f32 %v3385, %v3412
        %v3461 = vmul.f32 %v3379, %v3413
        %v3462 = vmul.f32 %v3373, %v3414
        %v3463 = vmul.f32 %v3367, %v3415
        %v3464 = vmul.f32 %v3361, %v3416
        %v3465 = vmul.f32 %v3403, %v3417
        %v3466 = vmul.f32 %v3398, %v3418
        %v3467 = vmul.f32 %v3392, %v3419
        %v3468 = vmul.f32 %v3386, %v3420
        %v3469 = vmul.f32 %v3380, %v3421
        %v3470 = vmul.f32 %v3374, %v3422
        %v3471 = vmul.f32 %v3368, %v3423
        %v3472 = vmul.f32 %v3362, %v3424
        %v3473 = vmul.f32 %v3404, %v3425
        %v3474 = vmul.f32 %v3399, %v3426
        %v3475 = vmul.f32 %v3393, %v3427
        %v3476 = vmul.f32 %v3387, %v3428
        %v3477 = vmul.f32 %v3381, %v3429
        %v3478 = vmul.f32 %v3375, %v3430
        %v3479 = vmul.f32 %v3369, %v3431
        %v3480 = vmul.f32 %v3363, %v3432
        %v3481 = vmul.f32 %v3405, %v3433
        %v3482 = vmul.f32 %v3400, %v3434
        %v3483 = vmul.f32 %v3394, %v3435
        %v3484 = vmul.f32 %v3388, %v3436
        %v3485 = vmul.f32 %v3382, %v3437
        %v3486 = vmul.f32 %v3376, %v3438
        %v3487 = vmul.f32 %v3370, %v3439
        %v3488 = vmul.f32 %v3364, %v3440
        %v3489 = vmul.f32 %v3406, %v3441
        %v3490 = vmul.f32 %v3401, %v3442
        %v3491 = vmul.f32 %v3395, %v3443
        %v3492 = vmul.f32 %v3389, %v3444
        %v3493 = vmul.f32 %v3383, %v3445
        %v3494 = vmul.f32 %v3377, %v3446
        %v3495 = vmul.f32 %v3371, %v3447
        %v3496 = vmul.f32 %v3365, %v3448
        %v3497 = vmul.f32 %v3407, %v3449
        %v3498 = vmul.f32 %v3402, %v3450
        %v3499 = vmul.f32 %v3396, %v3451
        %v3500 = vmul.f32 %v3390, %v3452
        %v3501 = vmul.f32 %v3384, %v3453
        %v3502 = vmul.f32 %v3378, %v3454
        %v3503 = vmul.f32 %v3372, %v3455
        %v3504 = vmul.f32 %v3366, %v3456
        %v3505 = vmul.f32 %v3408, %v3457
        %v3506 = vadd.f32 %v3216, %v3458
        %v3507 = vadd.f32 %v3217, %v3459
        %v3508 = vadd.f32 %v3218, %v3460
        %v3509 = vadd.f32 %v3219, %v3461
        %v3510 = vadd.f32 %v3220, %v3462
        %v3511 = vadd.f32 %v3221, %v3463
        %v3512 = vadd.f32 %v3222, %v3464
        %v3513 = vadd.f32 %v3223, %v3465
        %v3514 = vadd.f32 %v3224, %v3466
        %v3515 = vadd.f32 %v3225, %v3467
        %v3516 = vadd.f32 %v3226, %v3468
        %v3517 = vadd.f32 %v3227, %v3469
        %v3518 = vadd.f32 %v3228, %v3470
        %v3519 = vadd.f32 %v3229, %v3471
        %v3520 = vadd.f32 %v3230, %v3472
        %v3521 = vadd.f32 %v3231, %v3473
        %v3522 = vadd.f32 %v3232, %v3474
        %v3523 = vadd.f32 %v3233, %v3475
        %v3524 = vadd.f32 %v3234, %v3476
        %v3525 = vadd.f32 %v3235, %v3477
        %v3526 = vadd.f32 %v3236, %v3478
        %v3527 = vadd.f32 %v3237, %v3479
        %v3528 = vadd.f32 %v3238, %v3480
        %v3529 = vadd.f32 %v3239, %v3481
        %v3530 = vadd.f32 %v3240, %v3482
        %v3531 = vadd.f32 %v3241, %v3483
        %v3532 = vadd.f32 %v3242, %v3484
        %v3533 = vadd.f32 %v3243, %v3485
        %v3534 = vadd.f32 %v3244, %v3486
        %v3535 = vadd.f32 %v3245, %v3487
        %v3536 = vadd.f32 %v3246, %v3488
        %v3537 = vadd.f32 %v3247, %v3489
        %v3538 = vadd.f32 %v3248, %v3490
        %v3539 = vadd.f32 %v3249, %v3491
        %v3540 = vadd.f32 %v3250, %v3492
        %v3541 = vadd.f32 %v3251, %v3493
        %v3542 = vadd.f32 %v3252, %v3494
        %v3543 = vadd.f32 %v3253, %v3495
        %v3544 = vadd.f32 %v3254, %v3496
        %v3545 = vadd.f32 %v3255, %v3497
        %v3546 = vadd.f32 %v3256, %v3498
        %v3547 = vadd.f32 %v3257, %v3499
        %v3548 = vadd.f32 %v3258, %v3500
        %v3549 = vadd.f32 %v3259, %v3501
        %v3550 = vadd.f32 %v3260, %v3502
        %v3551 = vadd.f32 %v3261, %v3503
        %v3552 = vadd.f32 %v3262, %v3504
        %v3553 = vadd.f32 %v3263, %v3505
        %s3554 = scalar_lea.vmem [#allocation5], 3456
        %v3555 = vld [vmem:[%s3554] sm:$0xff]
        %v3556 = vld [vmem:[%s3554 + $0x8] sm:$0xff]
        %v3557 = vld [vmem:[%s3554 + $0x10] sm:$0xff]
        %v3558 = vld [vmem:[%s3554 + $0x18] sm:$0xff]
        %v3559 = vld [vmem:[%s3554 + $0x20] sm:$0xff]
        %v3560 = vld [vmem:[%s3554 + $0x28] sm:$0xff]
        %v3561 = vld [vmem:[%s3554 + $0x30] sm:$0xff]
        %v3562 = vld [vmem:[%s3554 + $0x38] sm:$0xff]
        %v3563 = vld [vmem:[%s3554 + $0x40] sm:$0xff]
        %v3564 = vld [vmem:[%s3554 + $0x48] sm:$0xff]
        %v3565 = vld [vmem:[%s3554 + $0x50] sm:$0xff]
        %v3566 = vld [vmem:[%s3554 + $0x58] sm:$0xff]
        %v3567 = vld [vmem:[%s3554 + $0x60] sm:$0xff]
        %v3568 = vld [vmem:[%s3554 + $0x68] sm:$0xff]
        %v3569 = vld [vmem:[%s3554 + $0x70] sm:$0xff]
        %v3570 = vld [vmem:[%s3554 + $0x78] sm:$0xff]
        %v3571 = vld [vmem:[%s3554 + $0x80] sm:$0xff]
        %v3572 = vld [vmem:[%s3554 + $0x88] sm:$0xff]
        %v3573 = vld [vmem:[%s3554 + $0x90] sm:$0xff]
        %v3574 = vld [vmem:[%s3554 + $0x98] sm:$0xff]
        %v3575 = vld [vmem:[%s3554 + $0xa0] sm:$0xff]
        %v3576 = vld [vmem:[%s3554 + $0xa8] sm:$0xff]
        %v3577 = vld [vmem:[%s3554 + $0xb0] sm:$0xff]
        %v3578 = vld [vmem:[%s3554 + $0xb8] sm:$0xff]
        %v3579 = vld [vmem:[%s3554 + $0xc0] sm:$0xff]
        %v3580 = vld [vmem:[%s3554 + $0xc8] sm:$0xff]
        %v3581 = vld [vmem:[%s3554 + $0xd0] sm:$0xff]
        %v3582 = vld [vmem:[%s3554 + $0xd8] sm:$0xff]
        %v3583 = vld [vmem:[%s3554 + $0xe0] sm:$0xff]
        %v3584 = vld [vmem:[%s3554 + $0xe8] sm:$0xff]
        %v3585 = vld [vmem:[%s3554 + $0xf0] sm:$0xff]
        %v3586 = vld [vmem:[%s3554 + $0xf8] sm:$0xff]
        %v3587 = vld [vmem:[%s3554 + $0x100] sm:$0xff]
        %v3588 = vld [vmem:[%s3554 + $0x108] sm:$0xff]
        %v3589 = vld [vmem:[%s3554 + $0x110] sm:$0xff]
        %v3590 = vld [vmem:[%s3554 + $0x118] sm:$0xff]
        %v3591 = vld [vmem:[%s3554 + $0x120] sm:$0xff]
        %v3592 = vld [vmem:[%s3554 + $0x128] sm:$0xff]
        %v3593 = vld [vmem:[%s3554 + $0x130] sm:$0xff]
        %v3594 = vld [vmem:[%s3554 + $0x138] sm:$0xff]
        %v3595 = vld [vmem:[%s3554 + $0x140] sm:$0xff]
        %v3596 = vld [vmem:[%s3554 + $0x148] sm:$0xff]
        %v3597 = vld [vmem:[%s3554 + $0x150] sm:$0xff]
        %v3598 = vld [vmem:[%s3554 + $0x158] sm:$0xff]
        %v3599 = vld [vmem:[%s3554 + $0x160] sm:$0xff]
        %v3600 = vld [vmem:[%s3554 + $0x168] sm:$0xff]
        %v3601 = vld [vmem:[%s3554 + $0x170] sm:$0xff]
        %v3602 = vld [vmem:[%s3554 + $0x178] sm:$0xff]
        %v3603 = vadd.f32 %v3506, %v3555
        %v3604 = vadd.f32 %v3507, %v3556
        %v3605 = vadd.f32 %v3508, %v3557
        %v3606 = vadd.f32 %v3509, %v3558
        %v3607 = vadd.f32 %v3510, %v3559
        %v3608 = vadd.f32 %v3511, %v3560
        %v3609 = vadd.f32 %v3512, %v3561
        %v3610 = vadd.f32 %v3513, %v3562
        %v3611 = vadd.f32 %v3514, %v3563
        %v3612 = vadd.f32 %v3515, %v3564
        %v3613 = vadd.f32 %v3516, %v3565
        %v3614 = vadd.f32 %v3517, %v3566
        %v3615 = vadd.f32 %v3518, %v3567
        %v3616 = vadd.f32 %v3519, %v3568
        %v3617 = vadd.f32 %v3520, %v3569
        %v3618 = vadd.f32 %v3521, %v3570
        %v3619 = vadd.f32 %v3522, %v3571
        %v3620 = vadd.f32 %v3523, %v3572
        %v3621 = vadd.f32 %v3524, %v3573
        %v3622 = vadd.f32 %v3525, %v3574
        %v3623 = vadd.f32 %v3526, %v3575
        %v3624 = vadd.f32 %v3527, %v3576
        %v3625 = vadd.f32 %v3528, %v3577
        %v3626 = vadd.f32 %v3529, %v3578
        %v3627 = vadd.f32 %v3530, %v3579
        %v3628 = vadd.f32 %v3531, %v3580
        %v3629 = vadd.f32 %v3532, %v3581
        %v3630 = vadd.f32 %v3533, %v3582
        %v3631 = vadd.f32 %v3534, %v3583
        %v3632 = vadd.f32 %v3535, %v3584
        %v3633 = vadd.f32 %v3536, %v3585
        %v3634 = vadd.f32 %v3537, %v3586
        %v3635 = vadd.f32 %v3538, %v3587
        %v3636 = vadd.f32 %v3539, %v3588
        %v3637 = vadd.f32 %v3540, %v3589
        %v3638 = vadd.f32 %v3541, %v3590
        %v3639 = vadd.f32 %v3542, %v3591
        %v3640 = vadd.f32 %v3543, %v3592
        %v3641 = vadd.f32 %v3544, %v3593
        %v3642 = vadd.f32 %v3545, %v3594
        %v3643 = vadd.f32 %v3546, %v3595
        %v3644 = vadd.f32 %v3547, %v3596
        %v3645 = vadd.f32 %v3548, %v3597
        %v3646 = vadd.f32 %v3549, %v3598
        %v3647 = vadd.f32 %v3550, %v3599
        %v3648 = vadd.f32 %v3551, %v3600
        %v3649 = vadd.f32 %v3552, %v3601
        %v3650 = vadd.f32 %v3553, %v3602
        %v3651 = vsub.f32 0.0, %v3603
        %v3652 = vsub.f32 0.0, %v3604
        %v3653 = vsub.f32 0.0, %v3605
        %v3654 = vsub.f32 0.0, %v3606
        %v3655 = vsub.f32 0.0, %v3607
        %v3656 = vsub.f32 0.0, %v3608
        %v3657 = vsub.f32 0.0, %v3609
        %v3658 = vsub.f32 0.0, %v3610
        %v3659 = vsub.f32 0.0, %v3611
        %v3660 = vsub.f32 0.0, %v3612
        %v3661 = vsub.f32 0.0, %v3613
        %v3662 = vsub.f32 0.0, %v3614
        %v3663 = vsub.f32 0.0, %v3615
        %v3664 = vsub.f32 0.0, %v3616
        %v3665 = vsub.f32 0.0, %v3617
        %v3666 = vsub.f32 0.0, %v3618
        %v3667 = vsub.f32 0.0, %v3619
        %v3668 = vsub.f32 0.0, %v3620
        %v3669 = vsub.f32 0.0, %v3621
        %v3670 = vsub.f32 0.0, %v3622
        %v3671 = vsub.f32 0.0, %v3623
        %v3672 = vsub.f32 0.0, %v3624
        %v3673 = vsub.f32 0.0, %v3625
        %v3674 = vsub.f32 0.0, %v3626
        %v3675 = vsub.f32 0.0, %v3627
        %v3676 = vsub.f32 0.0, %v3628
        %v3677 = vsub.f32 0.0, %v3629
        %v3678 = vsub.f32 0.0, %v3630
        %v3679 = vsub.f32 0.0, %v3631
        %v3680 = vsub.f32 0.0, %v3632
        %v3681 = vsub.f32 0.0, %v3633
        %v3682 = vsub.f32 0.0, %v3634
        %v3683 = vsub.f32 0.0, %v3635
        %v3684 = vsub.f32 0.0, %v3636
        %v3685 = vsub.f32 0.0, %v3637
        %v3686 = vsub.f32 0.0, %v3638
        %v3687 = vsub.f32 0.0, %v3639
        %v3688 = vsub.f32 0.0, %v3640
        %v3689 = vsub.f32 0.0, %v3641
        %v3690 = vsub.f32 0.0, %v3642
        %v3691 = vsub.f32 0.0, %v3643
        %v3692 = vsub.f32 0.0, %v3644
        %v3693 = vsub.f32 0.0, %v3645
        %v3694 = vsub.f32 0.0, %v3646
        %v3695 = vsub.f32 0.0, %v3647
        %v3696 = vsub.f32 0.0, %v3648
        %v3697 = vsub.f32 0.0, %v3649
        %v3698 = vsub.f32 0.0, %v3650
        %v3699 = vmul.f32 %v3651, 1.442695
        %v3700 = vpow.pop %v3699
        %v3701 = vmul.f32 %v3652, 1.442695
        %v3702 = vpow.pop %v3701
        %v3703 = vmul.f32 %v3653, 1.442695
        %v3704 = vpow.pop %v3703
        %v3705 = vmul.f32 %v3654, 1.442695
        %v3706 = vpow.pop %v3705
        %v3707 = vmul.f32 %v3655, 1.442695
        %v3708 = vpow.pop %v3707
        %v3709 = vmul.f32 %v3656, 1.442695
        %v3710 = vpow.pop %v3709
        %v3711 = vmul.f32 %v3657, 1.442695
        %v3712 = vpow.pop %v3711
        %v3713 = vmul.f32 %v3658, 1.442695
        %v3714 = vpow.pop %v3713
        %v3715 = vmul.f32 %v3659, 1.442695
        %v3716 = vpow.pop %v3715
        %v3717 = vmul.f32 %v3660, 1.442695
        %v3718 = vpow.pop %v3717
        %v3719 = vmul.f32 %v3661, 1.442695
        %v3720 = vpow.pop %v3719
        %v3721 = vmul.f32 %v3662, 1.442695
        %v3722 = vpow.pop %v3721
        %v3723 = vmul.f32 %v3663, 1.442695
        %v3724 = vpow.pop %v3723
        %v3725 = vmul.f32 %v3664, 1.442695
        %v3726 = vpow.pop %v3725
        %v3727 = vmul.f32 %v3665, 1.442695
        %v3728 = vpow.pop %v3727
        %v3729 = vmul.f32 %v3666, 1.442695
        %v3730 = vpow.pop %v3729
        %v3731 = vmul.f32 %v3667, 1.442695
        %v3732 = vpow.pop %v3731
        %v3733 = vmul.f32 %v3668, 1.442695
        %v3734 = vpow.pop %v3733
        %v3735 = vmul.f32 %v3669, 1.442695
        %v3736 = vpow.pop %v3735
        %v3737 = vmul.f32 %v3670, 1.442695
        %v3738 = vpow.pop %v3737
        %v3739 = vmul.f32 %v3671, 1.442695
        %v3740 = vpow.pop %v3739
        %v3741 = vmul.f32 %v3672, 1.442695
        %v3742 = vpow.pop %v3741
        %v3743 = vmul.f32 %v3673, 1.442695
        %v3744 = vpow.pop %v3743
        %v3745 = vmul.f32 %v3674, 1.442695
        %v3746 = vpow.pop %v3745
        %v3747 = vmul.f32 %v3675, 1.442695
        %v3748 = vpow.pop %v3747
        %v3749 = vmul.f32 %v3676, 1.442695
        %v3750 = vpow.pop %v3749
        %v3751 = vmul.f32 %v3677, 1.442695
        %v3752 = vpow.pop %v3751
        %v3753 = vmul.f32 %v3678, 1.442695
        %v3754 = vpow.pop %v3753
        %v3755 = vmul.f32 %v3679, 1.442695
        %v3756 = vpow.pop %v3755
        %v3757 = vmul.f32 %v3680, 1.442695
        %v3758 = vpow.pop %v3757
        %v3759 = vmul.f32 %v3681, 1.442695
        %v3760 = vpow.pop %v3759
        %v3761 = vmul.f32 %v3682, 1.442695
        %v3762 = vpow.pop %v3761
        %v3763 = vmul.f32 %v3683, 1.442695
        %v3764 = vpow.pop %v3763
        %v3765 = vmul.f32 %v3684, 1.442695
        %v3766 = vpow.pop %v3765
        %v3767 = vmul.f32 %v3685, 1.442695
        %v3768 = vpow.pop %v3767
        %v3769 = vmul.f32 %v3686, 1.442695
        %v3770 = vpow.pop %v3769
        %v3771 = vmul.f32 %v3687, 1.442695
        %v3772 = vpow.pop %v3771
        %v3773 = vmul.f32 %v3688, 1.442695
        %v3774 = vpow.pop %v3773
        %v3775 = vmul.f32 %v3689, 1.442695
        %v3776 = vpow.pop %v3775
        %v3777 = vmul.f32 %v3690, 1.442695
        %v3778 = vpow.pop %v3777
        %v3779 = vmul.f32 %v3691, 1.442695
        %v3780 = vpow.pop %v3779
        %v3781 = vmul.f32 %v3692, 1.442695
        %v3782 = vpow.pop %v3781
        %v3783 = vmul.f32 %v3693, 1.442695
        %v3784 = vpow.pop %v3783
        %v3785 = vmul.f32 %v3694, 1.442695
        %v3786 = vpow.pop %v3785
        %v3787 = vmul.f32 %v3695, 1.442695
        %v3788 = vpow.pop %v3787
        %v3789 = vmul.f32 %v3696, 1.442695
        %v3790 = vpow.pop %v3789
        %v3791 = vmul.f32 %v3697, 1.442695
        %v3792 = vpow.pop %v3791
        %v3793 = vmul.f32 %v3698, 1.442695
        %v3794 = vpow.pop %v3793
        %v3795 = vadd.f32 %v3700, 1.0
        %v3796 = vadd.f32 %v3702, 1.0
        %v3797 = vadd.f32 %v3704, 1.0
        %v3798 = vadd.f32 %v3706, 1.0
        %v3799 = vadd.f32 %v3708, 1.0
        %v3800 = vadd.f32 %v3710, 1.0
        %v3801 = vadd.f32 %v3712, 1.0
        %v3802 = vadd.f32 %v3714, 1.0
        %v3803 = vadd.f32 %v3716, 1.0
        %v3804 = vadd.f32 %v3718, 1.0
        %v3805 = vadd.f32 %v3720, 1.0
        %v3806 = vadd.f32 %v3722, 1.0
        %v3807 = vadd.f32 %v3724, 1.0
        %v3808 = vadd.f32 %v3726, 1.0
        %v3809 = vadd.f32 %v3728, 1.0
        %v3810 = vadd.f32 %v3730, 1.0
        %v3811 = vadd.f32 %v3732, 1.0
        %v3812 = vadd.f32 %v3734, 1.0
        %v3813 = vadd.f32 %v3736, 1.0
        %v3814 = vadd.f32 %v3738, 1.0
        %v3815 = vadd.f32 %v3740, 1.0
        %v3816 = vadd.f32 %v3742, 1.0
        %v3817 = vadd.f32 %v3744, 1.0
        %v3818 = vadd.f32 %v3746, 1.0
        %v3819 = vadd.f32 %v3748, 1.0
        %v3820 = vadd.f32 %v3750, 1.0
        %v3821 = vadd.f32 %v3752, 1.0
        %v3822 = vadd.f32 %v3754, 1.0
        %v3823 = vadd.f32 %v3756, 1.0
        %v3824 = vadd.f32 %v3758, 1.0
        %v3825 = vadd.f32 %v3760, 1.0
        %v3826 = vadd.f32 %v3762, 1.0
        %v3827 = vadd.f32 %v3764, 1.0
        %v3828 = vadd.f32 %v3766, 1.0
        %v3829 = vadd.f32 %v3768, 1.0
        %v3830 = vadd.f32 %v3770, 1.0
        %v3831 = vadd.f32 %v3772, 1.0
        %v3832 = vadd.f32 %v3774, 1.0
        %v3833 = vadd.f32 %v3776, 1.0
        %v3834 = vadd.f32 %v3778, 1.0
        %v3835 = vadd.f32 %v3780, 1.0
        %v3836 = vadd.f32 %v3782, 1.0
        %v3837 = vadd.f32 %v3784, 1.0
        %v3838 = vadd.f32 %v3786, 1.0
        %v3839 = vadd.f32 %v3788, 1.0
        %v3840 = vadd.f32 %v3790, 1.0
        %v3841 = vadd.f32 %v3792, 1.0
        %v3842 = vadd.f32 %v3794, 1.0
        %v3843 = vrcp.pop %v3795
        %v3844 = vrcp.pop %v3796
        %v3845 = vrcp.pop %v3797
        %v3846 = vrcp.pop %v3798
        %v3847 = vrcp.pop %v3799
        %v3848 = vrcp.pop %v3800
        %v3849 = vrcp.pop %v3801
        %v3850 = vrcp.pop %v3802
        %v3851 = vrcp.pop %v3803
        %v3852 = vrcp.pop %v3804
        %v3853 = vrcp.pop %v3805
        %v3854 = vrcp.pop %v3806
        %v3855 = vrcp.pop %v3807
        %v3856 = vrcp.pop %v3808
        %v3857 = vrcp.pop %v3809
        %v3858 = vrcp.pop %v3810
        %v3859 = vrcp.pop %v3811
        %v3860 = vrcp.pop %v3812
        %v3861 = vrcp.pop %v3813
        %v3862 = vrcp.pop %v3814
        %v3863 = vrcp.pop %v3815
        %v3864 = vrcp.pop %v3816
        %v3865 = vrcp.pop %v3817
        %v3866 = vrcp.pop %v3818
        %v3867 = vrcp.pop %v3819
        %v3868 = vrcp.pop %v3820
        %v3869 = vrcp.pop %v3821
        %v3870 = vrcp.pop %v3822
        %v3871 = vrcp.pop %v3823
        %v3872 = vrcp.pop %v3824
        %v3873 = vrcp.pop %v3825
        %v3874 = vrcp.pop %v3826
        %v3875 = vrcp.pop %v3827
        %v3876 = vrcp.pop %v3828
        %v3877 = vrcp.pop %v3829
        %v3878 = vrcp.pop %v3830
        %v3879 = vrcp.pop %v3831
        %v3880 = vrcp.pop %v3832
        %v3881 = vrcp.pop %v3833
        %v3882 = vrcp.pop %v3834
        %v3883 = vrcp.pop %v3835
        %v3884 = vrcp.pop %v3836
        %v3885 = vrcp.pop %v3837
        %v3886 = vrcp.pop %v3838
        %v3887 = vrcp.pop %v3839
        %v3888 = vrcp.pop %v3840
        %v3889 = vrcp.pop %v3841
        %v3890 = vrcp.pop %v3842
        %v3891 = vmul.f32 %v3603, %v3843
        %v3892 = vmul.f32 %v3604, %v3844
        %v3893 = vmul.f32 %v3605, %v3845
        %v3894 = vmul.f32 %v3606, %v3846
        %v3895 = vmul.f32 %v3607, %v3847
        %v3896 = vmul.f32 %v3608, %v3848
        %v3897 = vmul.f32 %v3609, %v3849
        %v3898 = vmul.f32 %v3610, %v3850
        %v3899 = vmul.f32 %v3611, %v3851
        %v3900 = vmul.f32 %v3612, %v3852
        %v3901 = vmul.f32 %v3613, %v3853
        %v3902 = vmul.f32 %v3614, %v3854
        %v3903 = vmul.f32 %v3615, %v3855
        %v3904 = vmul.f32 %v3616, %v3856
        %v3905 = vmul.f32 %v3617, %v3857
        %v3906 = vmul.f32 %v3618, %v3858
        %v3907 = vmul.f32 %v3619, %v3859
        %v3908 = vmul.f32 %v3620, %v3860
        %v3909 = vmul.f32 %v3621, %v3861
        %v3910 = vmul.f32 %v3622, %v3862
        %v3911 = vmul.f32 %v3623, %v3863
        %v3912 = vmul.f32 %v3624, %v3864
        %v3913 = vmul.f32 %v3625, %v3865
        %v3914 = vmul.f32 %v3626, %v3866
        %v3915 = vmul.f32 %v3627, %v3867
        %v3916 = vmul.f32 %v3628, %v3868
        %v3917 = vmul.f32 %v3629, %v3869
        %v3918 = vmul.f32 %v3630, %v3870
        %v3919 = vmul.f32 %v3631, %v3871
        %v3920 = vmul.f32 %v3632, %v3872
        %v3921 = vmul.f32 %v3633, %v3873
        %v3922 = vmul.f32 %v3634, %v3874
        %v3923 = vmul.f32 %v3635, %v3875
        %v3924 = vmul.f32 %v3636, %v3876
        %v3925 = vmul.f32 %v3637, %v3877
        %v3926 = vmul.f32 %v3638, %v3878
        %v3927 = vmul.f32 %v3639, %v3879
        %v3928 = vmul.f32 %v3640, %v3880
        %v3929 = vmul.f32 %v3641, %v3881
        %v3930 = vmul.f32 %v3642, %v3882
        %v3931 = vmul.f32 %v3643, %v3883
        %v3932 = vmul.f32 %v3644, %v3884
        %v3933 = vmul.f32 %v3645, %v3885
        %v3934 = vmul.f32 %v3646, %v3886
        %v3935 = vmul.f32 %v3647, %v3887
        %v3936 = vmul.f32 %v3648, %v3888
        %v3937 = vmul.f32 %v3649, %v3889
        %v3938 = vmul.f32 %v3650, %v3890
        %v3939 = vld [vmem:[%s6] sm:$0xff]
        %v3940 = vld [vmem:[%s6 + $0x8] sm:$0xff]
        %v3941 = vld [vmem:[%s6 + $0x10] sm:$0xff]
        %v3942 = vld [vmem:[%s6 + $0x18] sm:$0xff]
        %v3943 = vld [vmem:[%s6 + $0x20] sm:$0xff]
        %v3944 = vld [vmem:[%s6 + $0x28] sm:$0xff]
        %v3945 = vld [vmem:[%s6 + $0x30] sm:$0xff]
        %v3946 = vld [vmem:[%s6 + $0x38] sm:$0xff]
        %v3947 = vld [vmem:[%s6 + $0x40] sm:$0xff]
        %v3948 = vld [vmem:[%s6 + $0x48] sm:$0xff]
        %v3949 = vld [vmem:[%s6 + $0x50] sm:$0xff]
        %v3950 = vld [vmem:[%s6 + $0x58] sm:$0xff]
        %v3951 = vld [vmem:[%s6 + $0x60] sm:$0xff]
        %v3952 = vld [vmem:[%s6 + $0x68] sm:$0xff]
        %v3953 = vld [vmem:[%s6 + $0x70] sm:$0xff]
        %v3954 = vld [vmem:[%s6 + $0x78] sm:$0xff]
        %v3955 = vld [vmem:[%s6 + $0x80] sm:$0xff]
        %v3956 = vld [vmem:[%s6 + $0x88] sm:$0xff]
        %v3957 = vld [vmem:[%s6 + $0x90] sm:$0xff]
        %v3958 = vld [vmem:[%s6 + $0x98] sm:$0xff]
        %v3959 = vld [vmem:[%s6 + $0xa0] sm:$0xff]
        %v3960 = vld [vmem:[%s6 + $0xa8] sm:$0xff]
        %v3961 = vld [vmem:[%s6 + $0xb0] sm:$0xff]
        %v3962 = vld [vmem:[%s6 + $0xb8] sm:$0xff]
        %v3963 = vld [vmem:[%s6 + $0xc0] sm:$0xff]
        %v3964 = vld [vmem:[%s6 + $0xc8] sm:$0xff]
        %v3965 = vld [vmem:[%s6 + $0xd0] sm:$0xff]
        %v3966 = vld [vmem:[%s6 + $0xd8] sm:$0xff]
        %v3967 = vld [vmem:[%s6 + $0xe0] sm:$0xff]
        %v3968 = vld [vmem:[%s6 + $0xe8] sm:$0xff]
        %v3969 = vld [vmem:[%s6 + $0xf0] sm:$0xff]
        %v3970 = vld [vmem:[%s6 + $0xf8] sm:$0xff]
        %v3971 = vld [vmem:[%s6 + $0x100] sm:$0xff]
        %v3972 = vld [vmem:[%s6 + $0x108] sm:$0xff]
        %v3973 = vld [vmem:[%s6 + $0x110] sm:$0xff]
        %v3974 = vld [vmem:[%s6 + $0x118] sm:$0xff]
        %v3975 = vld [vmem:[%s6 + $0x120] sm:$0xff]
        %v3976 = vld [vmem:[%s6 + $0x128] sm:$0xff]
        %v3977 = vld [vmem:[%s6 + $0x130] sm:$0xff]
        %v3978 = vld [vmem:[%s6 + $0x138] sm:$0xff]
        %v3979 = vld [vmem:[%s6 + $0x140] sm:$0xff]
        %v3980 = vld [vmem:[%s6 + $0x148] sm:$0xff]
        %v3981 = vld [vmem:[%s6 + $0x150] sm:$0xff]
        %v3982 = vld [vmem:[%s6 + $0x158] sm:$0xff]
        %v3983 = vld [vmem:[%s6 + $0x160] sm:$0xff]
        %v3984 = vld [vmem:[%s6 + $0x168] sm:$0xff]
        %v3985 = vld [vmem:[%s6 + $0x170] sm:$0xff]
        %v3986 = vld [vmem:[%s6 + $0x178] sm:$0xff]
        %v3987 = vld [vmem:[%s6 + $0x180] sm:$0xff]
        %v3988 = vld [vmem:[%s6 + $0x188] sm:$0xff]
        %v3989 = vld [vmem:[%s6 + $0x190] sm:$0xff]
        %v3990 = vld [vmem:[%s6 + $0x198] sm:$0xff]
        %v3991 = vld [vmem:[%s6 + $0x1a0] sm:$0xff]
        %v3992 = vld [vmem:[%s6 + $0x1a8] sm:$0xff]
        %v3993 = vld [vmem:[%s6 + $0x1b0] sm:$0xff]
        %v3994 = vld [vmem:[%s6 + $0x1b8] sm:$0xff]
        %v3995 = vld [vmem:[%s6 + $0x1c0] sm:$0xff]
        %v3996 = vld [vmem:[%s6 + $0x1c8] sm:$0xff]
        %v3997 = vld [vmem:[%s6 + $0x1d0] sm:$0xff]
        %v3998 = vld [vmem:[%s6 + $0x1d8] sm:$0xff]
        %v3999 = vld [vmem:[%s6 + $0x1e0] sm:$0xff]
        %v4000 = vld [vmem:[%s6 + $0x1e8] sm:$0xff]
        %v4001 = vld [vmem:[%s6 + $0x1f0] sm:$0xff]
        %v4002 = vld [vmem:[%s6 + $0x1f8] sm:$0xff]
        %v4003 = vld [vmem:[%s6 + $0x200] sm:$0xff]
        %v4004 = vld [vmem:[%s6 + $0x208] sm:$0xff]
        %v4005 = vld [vmem:[%s6 + $0x210] sm:$0xff]
        %v4006 = vld [vmem:[%s6 + $0x218] sm:$0xff]
        %v4007 = vld [vmem:[%s6 + $0x220] sm:$0xff]
        %v4008 = vld [vmem:[%s6 + $0x228] sm:$0xff]
        %v4009 = vld [vmem:[%s6 + $0x230] sm:$0xff]
        %v4010 = vld [vmem:[%s6 + $0x238] sm:$0xff]
        %v4011 = vld [vmem:[%s6 + $0x240] sm:$0xff]
        %v4012 = vld [vmem:[%s6 + $0x248] sm:$0xff]
        %v4013 = vld [vmem:[%s6 + $0x250] sm:$0xff]
        %v4014 = vld [vmem:[%s6 + $0x258] sm:$0xff]
        %v4015 = vld [vmem:[%s6 + $0x260] sm:$0xff]
        %v4016 = vld [vmem:[%s6 + $0x268] sm:$0xff]
        %v4017 = vld [vmem:[%s6 + $0x270] sm:$0xff]
        %v4018 = vld [vmem:[%s6 + $0x278] sm:$0xff]
        %v4019 = vld [vmem:[%s6 + $0x280] sm:$0xff]
        %v4020 = vld [vmem:[%s6 + $0x288] sm:$0xff]
        %v4021 = vld [vmem:[%s6 + $0x290] sm:$0xff]
        %v4022 = vld [vmem:[%s6 + $0x298] sm:$0xff]
        %v4023 = vld [vmem:[%s6 + $0x2a0] sm:$0xff]
        %v4024 = vld [vmem:[%s6 + $0x2a8] sm:$0xff]
        %v4025 = vld [vmem:[%s6 + $0x2b0] sm:$0xff]
        %v4026 = vld [vmem:[%s6 + $0x2b8] sm:$0xff]
        %v4027 = vld [vmem:[%s6 + $0x2c0] sm:$0xff]
        %v4028 = vld [vmem:[%s6 + $0x2c8] sm:$0xff]
        %v4029 = vld [vmem:[%s6 + $0x2d0] sm:$0xff]
        %v4030 = vld [vmem:[%s6 + $0x2d8] sm:$0xff]
        %v4031 = vld [vmem:[%s6 + $0x2e0] sm:$0xff]
        %v4032 = vld [vmem:[%s6 + $0x2e8] sm:$0xff]
        %v4033 = vld [vmem:[%s6 + $0x2f0] sm:$0xff]
        %v4034 = vld [vmem:[%s6 + $0x2f8] sm:$0xff]
        %v4035 = vld [vmem:[%s6 + $0x300] sm:$0xff]
        %v4036 = vld [vmem:[%s6 + $0x308] sm:$0xff]
        %v4037 = vld [vmem:[%s6 + $0x310] sm:$0xff]
        %v4038 = vld [vmem:[%s6 + $0x318] sm:$0xff]
        %v4039 = vld [vmem:[%s6 + $0x320] sm:$0xff]
        %v4040 = vld [vmem:[%s6 + $0x328] sm:$0xff]
        %v4041 = vld [vmem:[%s6 + $0x330] sm:$0xff]
        %v4042 = vld [vmem:[%s6 + $0x338] sm:$0xff]
        %v4043 = vld [vmem:[%s6 + $0x340] sm:$0xff]
        %v4044 = vld [vmem:[%s6 + $0x348] sm:$0xff]
        %v4045 = vld [vmem:[%s6 + $0x350] sm:$0xff]
        %v4046 = vld [vmem:[%s6 + $0x358] sm:$0xff]
        %v4047 = vld [vmem:[%s6 + $0x360] sm:$0xff]
        %v4048 = vld [vmem:[%s6 + $0x368] sm:$0xff]
        %v4049 = vld [vmem:[%s6 + $0x370] sm:$0xff]
        %v4050 = vld [vmem:[%s6 + $0x378] sm:$0xff]
        %v4051 = vld [vmem:[%s6 + $0x380] sm:$0xff]
        %v4052 = vld [vmem:[%s6 + $0x388] sm:$0xff]
        %v4053 = vld [vmem:[%s6 + $0x390] sm:$0xff]
        %v4054 = vld [vmem:[%s6 + $0x398] sm:$0xff]
        %v4055 = vld [vmem:[%s6 + $0x3a0] sm:$0xff]
        %v4056 = vld [vmem:[%s6 + $0x3a8] sm:$0xff]
        %v4057 = vld [vmem:[%s6 + $0x3b0] sm:$0xff]
        %v4058 = vld [vmem:[%s6 + $0x3b8] sm:$0xff]
        %v4059 = vld [vmem:[%s6 + $0x3c0] sm:$0xff]
        %v4060 = vld [vmem:[%s6 + $0x3c8] sm:$0xff]
        %v4061 = vld [vmem:[%s6 + $0x3d0] sm:$0xff]
        %v4062 = vld [vmem:[%s6 + $0x3d8] sm:$0xff]
        %v4063 = vld [vmem:[%s6 + $0x3e0] sm:$0xff]
        %v4064 = vld [vmem:[%s6 + $0x3e8] sm:$0xff]
        %v4065 = vld [vmem:[%s6 + $0x3f0] sm:$0xff]
        %v4066 = vld [vmem:[%s6 + $0x3f8] sm:$0xff]
        %4067 = vmatprep.subr.mxu0 0.0
        %4068 = vmatpush1.msra.mxu0 %v3939
        %4069 = vmatprep.subr.mxu0 0.0
        %4070 = vmatpush1.msra.mxu0 %v3940
        %4071 = vmatprep.subr.mxu0 0.0
        %4072 = vmatpush1.msra.mxu0 %v3941
        %4073 = vmatprep.subr.mxu0 0.0
        %4074 = vmatpush1.msra.mxu0 %v3942
        %4075 = vmatprep.subr.mxu0 0.0
        %4076 = vmatpush1.msra.mxu0 %v3943
        %4077 = vmatprep.subr.mxu0 0.0
        %4078 = vmatpush1.msra.mxu0 %v3944
        %4079 = vmatprep.subr.mxu0 0.0
        %4080 = vmatpush1.msra.mxu0 %v3945
        %4081 = vmatprep.subr.mxu0 0.0
        %4082 = vmatpush1.msra.mxu0 %v3946
        %4083 = vmatprep.subr.mxu0 0.0
        %4084 = vmatpush1.msra.mxu0 %v3947
        %4085 = vmatprep.subr.mxu0 0.0
        %4086 = vmatpush1.msra.mxu0 %v3948
        %4087 = vmatprep.subr.mxu0 0.0
        %4088 = vmatpush1.msra.mxu0 %v3949
        %4089 = vmatprep.subr.mxu0 0.0
        %4090 = vmatpush1.msra.mxu0 %v3950
        %4091 = vmatprep.subr.mxu0 0.0
        %4092 = vmatpush1.msra.mxu0 %v3951
        %4093 = vmatprep.subr.mxu0 0.0
        %4094 = vmatpush1.msra.mxu0 %v3952
        %4095 = vmatprep.subr.mxu0 0.0
        %4096 = vmatpush1.msra.mxu0 %v3953
        %4097 = vmatprep.subr.mxu0 0.0
        %4098 = vmatpush1.msra.mxu0 %v3954
        %4099 = vmatprep.subr.mxu0 0.0
        %4100 = vmatpush1.msra.mxu0 %v3955
        %4101 = vmatprep.subr.mxu0 0.0
        %4102 = vmatpush1.msra.mxu0 %v3956
        %4103 = vmatprep.subr.mxu0 0.0
        %4104 = vmatpush1.msra.mxu0 %v3957
        %4105 = vmatprep.subr.mxu0 0.0
        %4106 = vmatpush1.msra.mxu0 %v3958
        %4107 = vmatprep.subr.mxu0 0.0
        %4108 = vmatpush1.msra.mxu0 %v3959
        %4109 = vmatprep.subr.mxu0 0.0
        %4110 = vmatpush1.msra.mxu0 %v3960
        %4111 = vmatprep.subr.mxu0 0.0
        %4112 = vmatpush1.msra.mxu0 %v3961
        %4113 = vmatprep.subr.mxu0 0.0
        %4114 = vmatpush1.msra.mxu0 %v3962
        %4115 = vmatprep.subr.mxu0 0.0
        %4116 = vmatpush1.msra.mxu0 %v3963
        %4117 = vmatprep.subr.mxu0 0.0
        %4118 = vmatpush1.msra.mxu0 %v3964
        %4119 = vmatprep.subr.mxu0 0.0
        %4120 = vmatpush1.msra.mxu0 %v3965
        %4121 = vmatprep.subr.mxu0 0.0
        %4122 = vmatpush1.msra.mxu0 %v3966
        %4123 = vmatprep.subr.mxu0 0.0
        %4124 = vmatpush1.msra.mxu0 %v3967
        %4125 = vmatprep.subr.mxu0 0.0
        %4126 = vmatpush1.msra.mxu0 %v3968
        %4127 = vmatprep.subr.mxu0 0.0
        %4128 = vmatpush1.msra.mxu0 %v3969
        %4129 = vmatprep.subr.mxu0 0.0
        %4130 = vmatpush1.msra.mxu0 %v3970
        %4131 = vmatprep.mubr.f32.mxu0 %v3892
        %4132 = vmatmul.mubr.f32.gmra.mrb[0].mxu0 %v3891
        %v4133 = vpop.f32.mrb[0].mxu0
        %v4134 = vadd.f32 0.0, %v4133
        %v4135 = vpop.f32.mrb[0].mxu0
        %4136 = vmatprep.mubr.f32.mxu0 %v3900
        %4137 = vmatmul.mubr.f32.gmra.mrb[0].mxu0 %v3899
        %v4138 = vpop.f32.mrb[0].mxu0
        %v4139 = vadd.f32 0.0, %v4138
        %v4140 = vpop.f32.mrb[0].mxu0
        %4141 = vmatprep.mubr.f32.mxu0 %v3908
        %4142 = vmatmul.mubr.f32.gmra.mrb[0].mxu0 %v3907
        %v4143 = vpop.f32.mrb[0].mxu0
        %v4144 = vadd.f32 0.0, %v4143
        %v4145 = vpop.f32.mrb[0].mxu0
        %4146 = vmatprep.mubr.f32.mxu0 %v3916
        %4147 = vmatmul.mubr.f32.gmra.mrb[0].mxu0 %v3915
        %v4148 = vpop.f32.mrb[0].mxu0
        %v4149 = vadd.f32 0.0, %v4148
        %v4150 = vpop.f32.mrb[0].mxu0
        %4151 = vmatprep.mubr.f32.mxu0 %v3924
        %4152 = vmatmul.mubr.f32.gmra.mrb[0].mxu0 %v3923
        %v4153 = vpop.f32.mrb[0].mxu0
        %v4154 = vadd.f32 0.0, %v4153
        %v4155 = vpop.f32.mrb[0].mxu0
        %4156 = vmatprep.mubr.f32.mxu0 %v3932
        %4157 = vmatmul.mubr.f32.gmra.mrb[0].mxu0 %v3931
        %v4158 = vpop.f32.mrb[0].mxu0
        %v4159 = vadd.f32 0.0, %v4158
        %v4160 = vpop.f32.mrb[0].mxu0
        %4161 = vdwg.mxu0
        %4162 = vmatprep.subr.mxu0 0.0
        %4163 = vmatpush1.msra.mxu0 %v3971
        %4164 = vmatprep.subr.mxu0 0.0
        %4165 = vmatpush1.msra.mxu0 %v3972
        %4166 = vmatprep.subr.mxu0 0.0
        %4167 = vmatpush1.msra.mxu0 %v3973
        %4168 = vmatprep.subr.mxu0 0.0
        %4169 = vmatpush1.msra.mxu0 %v3974
        %4170 = vmatprep.subr.mxu0 0.0
        %4171 = vmatpush1.msra.mxu0 %v3975
        %4172 = vmatprep.subr.mxu0 0.0
        %4173 = vmatpush1.msra.mxu0 %v3976
        %4174 = vmatprep.subr.mxu0 0.0
        %4175 = vmatpush1.msra.mxu0 %v3977
        %4176 = vmatprep.subr.mxu0 0.0
        %4177 = vmatpush1.msra.mxu0 %v3978
        %4178 = vmatprep.subr.mxu0 0.0
        %4179 = vmatpush1.msra.mxu0 %v3979
        %4180 = vmatprep.subr.mxu0 0.0
        %4181 = vmatpush1.msra.mxu0 %v3980
        %4182 = vmatprep.subr.mxu0 0.0
        %4183 = vmatpush1.msra.mxu0 %v3981
        %4184 = vmatprep.subr.mxu0 0.0
        %4185 = vmatpush1.msra.mxu0 %v3982
        %4186 = vmatprep.subr.mxu0 0.0
        %4187 = vmatpush1.msra.mxu0 %v3983
        %4188 = vmatprep.subr.mxu0 0.0
        %4189 = vmatpush1.msra.mxu0 %v3984
        %4190 = vmatprep.subr.mxu0 0.0
        %4191 = vmatpush1.msra.mxu0 %v3985
        %4192 = vmatprep.subr.mxu0 0.0
        %4193 = vmatpush1.msra.mxu0 %v3986
        %4194 = vmatprep.subr.mxu0 0.0
        %4195 = vmatpush1.msra.mxu0 %v3987
        %4196 = vmatprep.subr.mxu0 0.0
        %4197 = vmatpush1.msra.mxu0 %v3988
        %4198 = vmatprep.subr.mxu0 0.0
        %4199 = vmatpush1.msra.mxu0 %v3989
        %4200 = vmatprep.subr.mxu0 0.0
        %4201 = vmatpush1.msra.mxu0 %v3990
        %4202 = vmatprep.subr.mxu0 0.0
        %4203 = vmatpush1.msra.mxu0 %v3991
        %4204 = vmatprep.subr.mxu0 0.0
        %4205 = vmatpush1.msra.mxu0 %v3992
        %4206 = vmatprep.subr.mxu0 0.0
        %4207 = vmatpush1.msra.mxu0 %v3993
        %4208 = vmatprep.subr.mxu0 0.0
        %4209 = vmatpush1.msra.mxu0 %v3994
        %4210 = vmatprep.subr.mxu0 0.0
        %4211 = vmatpush1.msra.mxu0 %v3995
        %4212 = vmatprep.subr.mxu0 0.0
        %4213 = vmatpush1.msra.mxu0 %v3996
        %4214 = vmatprep.subr.mxu0 0.0
        %4215 = vmatpush1.msra.mxu0 %v3997
        %4216 = vmatprep.subr.mxu0 0.0
        %4217 = vmatpush1.msra.mxu0 %v3998
        %4218 = vmatprep.subr.mxu0 0.0
        %4219 = vmatpush1.msra.mxu0 %v3999
        %4220 = vmatprep.subr.mxu0 0.0
        %4221 = vmatpush1.msra.mxu0 %v4000
        %4222 = vmatprep.subr.mxu0 0.0
        %4223 = vmatpush1.msra.mxu0 %v4001
        %4224 = vmatprep.subr.mxu0 0.0
        %4225 = vmatpush1.msra.mxu0 %v4002
        %4226 = vmatprep.mubr.f32.mxu0 %v3894
        %4227 = vmatmul.mubr.f32.gmra.mrb[0].mxu0 %v3893
        %v4228 = vpop.f32.mrb[0].mxu0
        %v4229 = vadd.f32 %v4134, %v4228
        %v4230 = vpop.f32.mrb[0].mxu0
        %4231 = vmatprep.mubr.f32.mxu0 %v3902
        %4232 = vmatmul.mubr.f32.gmra.mrb[0].mxu0 %v3901
        %v4233 = vpop.f32.mrb[0].mxu0
        %v4234 = vadd.f32 %v4139, %v4233
        %v4235 = vpop.f32.mrb[0].mxu0
        %4236 = vmatprep.mubr.f32.mxu0 %v3910
        %4237 = vmatmul.mubr.f32.gmra.mrb[0].mxu0 %v3909
        %v4238 = vpop.f32.mrb[0].mxu0
        %v4239 = vadd.f32 %v4144, %v4238
        %v4240 = vpop.f32.mrb[0].mxu0
        %4241 = vmatprep.mubr.f32.mxu0 %v3918
        %4242 = vmatmul.mubr.f32.gmra.mrb[0].mxu0 %v3917
        %v4243 = vpop.f32.mrb[0].mxu0
        %v4244 = vadd.f32 %v4149, %v4243
        %v4245 = vpop.f32.mrb[0].mxu0
        %4246 = vmatprep.mubr.f32.mxu0 %v3926
        %4247 = vmatmul.mubr.f32.gmra.mrb[0].mxu0 %v3925
        %v4248 = vpop.f32.mrb[0].mxu0
        %v4249 = vadd.f32 %v4154, %v4248
        %v4250 = vpop.f32.mrb[0].mxu0
        %4251 = vmatprep.mubr.f32.mxu0 %v3934
        %4252 = vmatmul.mubr.f32.gmra.mrb[0].mxu0 %v3933
        %v4253 = vpop.f32.mrb[0].mxu0
        %v4254 = vadd.f32 %v4159, %v4253
        %v4255 = vpop.f32.mrb[0].mxu0
        %4256 = vdwg.mxu0
        %4257 = vmatprep.subr.mxu0 0.0
        %4258 = vmatpush1.msra.mxu0 %v4003
        %4259 = vmatprep.subr.mxu0 0.0
        %4260 = vmatpush1.msra.mxu0 %v4004
        %4261 = vmatprep.subr.mxu0 0.0
        %4262 = vmatpush1.msra.mxu0 %v4005
        %4263 = vmatprep.subr.mxu0 0.0
        %4264 = vmatpush1.msra.mxu0 %v4006
        %4265 = vmatprep.subr.mxu0 0.0
        %4266 = vmatpush1.msra.mxu0 %v4007
        %4267 = vmatprep.subr.mxu0 0.0
        %4268 = vmatpush1.msra.mxu0 %v4008
        %4269 = vmatprep.subr.mxu0 0.0
        %4270 = vmatpush1.msra.mxu0 %v4009
        %4271 = vmatprep.subr.mxu0 0.0
        %4272 = vmatpush1.msra.mxu0 %v4010
        %4273 = vmatprep.subr.mxu0 0.0
        %4274 = vmatpush1.msra.mxu0 %v4011
        %4275 = vmatprep.subr.mxu0 0.0
        %4276 = vmatpush1.msra.mxu0 %v4012
        %4277 = vmatprep.subr.mxu0 0.0
        %4278 = vmatpush1.msra.mxu0 %v4013
        %4279 = vmatprep.subr.mxu0 0.0
        %4280 = vmatpush1.msra.mxu0 %v4014
        %4281 = vmatprep.subr.mxu0 0.0
        %4282 = vmatpush1.msra.mxu0 %v4015
        %4283 = vmatprep.subr.mxu0 0.0
        %4284 = vmatpush1.msra.mxu0 %v4016
        %4285 = vmatprep.subr.mxu0 0.0
        %4286 = vmatpush1.msra.mxu0 %v4017
        %4287 = vmatprep.subr.mxu0 0.0
        %4288 = vmatpush1.msra.mxu0 %v4018
        %4289 = vmatprep.subr.mxu0 0.0
        %4290 = vmatpush1.msra.mxu0 %v4019
        %4291 = vmatprep.subr.mxu0 0.0
        %4292 = vmatpush1.msra.mxu0 %v4020
        %4293 = vmatprep.subr.mxu0 0.0
        %4294 = vmatpush1.msra.mxu0 %v4021
        %4295 = vmatprep.subr.mxu0 0.0
        %4296 = vmatpush1.msra.mxu0 %v4022
        %4297 = vmatprep.subr.mxu0 0.0
        %4298 = vmatpush1.msra.mxu0 %v4023
        %4299 = vmatprep.subr.mxu0 0.0
        %4300 = vmatpush1.msra.mxu0 %v4024
        %4301 = vmatprep.subr.mxu0 0.0
        %4302 = vmatpush1.msra.mxu0 %v4025
        %4303 = vmatprep.subr.mxu0 0.0
        %4304 = vmatpush1.msra.mxu0 %v4026
        %4305 = vmatprep.subr.mxu0 0.0
        %4306 = vmatpush1.msra.mxu0 %v4027
        %4307 = vmatprep.subr.mxu0 0.0
        %4308 = vmatpush1.msra.mxu0 %v4028
        %4309 = vmatprep.subr.mxu0 0.0
        %4310 = vmatpush1.msra.mxu0 %v4029
        %4311 = vmatprep.subr.mxu0 0.0
        %4312 = vmatpush1.msra.mxu0 %v4030
        %4313 = vmatprep.subr.mxu0 0.0
        %4314 = vmatpush1.msra.mxu0 %v4031
        %4315 = vmatprep.subr.mxu0 0.0
        %4316 = vmatpush1.msra.mxu0 %v4032
        %4317 = vmatprep.subr.mxu0 0.0
        %4318 = vmatpush1.msra.mxu0 %v4033
        %4319 = vmatprep.subr.mxu0 0.0
        %4320 = vmatpush1.msra.mxu0 %v4034
        %4321 = vmatprep.mubr.f32.mxu0 %v3896
        %4322 = vmatmul.mubr.f32.gmra.mrb[0].mxu0 %v3895
        %v4323 = vpop.f32.mrb[0].mxu0
        %v4324 = vadd.f32 %v4229, %v4323
        %v4325 = vpop.f32.mrb[0].mxu0
        %4326 = vmatprep.mubr.f32.mxu0 %v3904
        %4327 = vmatmul.mubr.f32.gmra.mrb[0].mxu0 %v3903
        %v4328 = vpop.f32.mrb[0].mxu0
        %v4329 = vadd.f32 %v4234, %v4328
        %v4330 = vpop.f32.mrb[0].mxu0
        %4331 = vmatprep.mubr.f32.mxu0 %v3912
        %4332 = vmatmul.mubr.f32.gmra.mrb[0].mxu0 %v3911
        %v4333 = vpop.f32.mrb[0].mxu0
        %v4334 = vadd.f32 %v4239, %v4333
        %v4335 = vpop.f32.mrb[0].mxu0
        %4336 = vmatprep.mubr.f32.mxu0 %v3920
        %4337 = vmatmul.mubr.f32.gmra.mrb[0].mxu0 %v3919
        %v4338 = vpop.f32.mrb[0].mxu0
        %v4339 = vadd.f32 %v4244, %v4338
        %v4340 = vpop.f32.mrb[0].mxu0
        %4341 = vmatprep.mubr.f32.mxu0 %v3928
        %4342 = vmatmul.mubr.f32.gmra.mrb[0].mxu0 %v3927
        %v4343 = vpop.f32.mrb[0].mxu0
        %v4344 = vadd.f32 %v4249, %v4343
        %v4345 = vpop.f32.mrb[0].mxu0
        %4346 = vmatprep.mubr.f32.mxu0 %v3936
        %4347 = vmatmul.mubr.f32.gmra.mrb[0].mxu0 %v3935
        %v4348 = vpop.f32.mrb[0].mxu0
        %v4349 = vadd.f32 %v4254, %v4348
        %v4350 = vpop.f32.mrb[0].mxu0
        %4351 = vdwg.mxu0
        %4352 = vmatprep.subr.mxu0 0.0
        %4353 = vmatpush1.msra.mxu0 %v4035
        %4354 = vmatprep.subr.mxu0 0.0
        %4355 = vmatpush1.msra.mxu0 %v4036
        %4356 = vmatprep.subr.mxu0 0.0
        %4357 = vmatpush1.msra.mxu0 %v4037
        %4358 = vmatprep.subr.mxu0 0.0
        %4359 = vmatpush1.msra.mxu0 %v4038
        %4360 = vmatprep.subr.mxu0 0.0
        %4361 = vmatpush1.msra.mxu0 %v4039
        %4362 = vmatprep.subr.mxu0 0.0
        %4363 = vmatpush1.msra.mxu0 %v4040
        %4364 = vmatprep.subr.mxu0 0.0
        %4365 = vmatpush1.msra.mxu0 %v4041
        %4366 = vmatprep.subr.mxu0 0.0
        %4367 = vmatpush1.msra.mxu0 %v4042
        %4368 = vmatprep.subr.mxu0 0.0
        %4369 = vmatpush1.msra.mxu0 %v4043
        %4370 = vmatprep.subr.mxu0 0.0
        %4371 = vmatpush1.msra.mxu0 %v4044
        %4372 = vmatprep.subr.mxu0 0.0
        %4373 = vmatpush1.msra.mxu0 %v4045
        %4374 = vmatprep.subr.mxu0 0.0
        %4375 = vmatpush1.msra.mxu0 %v4046
        %4376 = vmatprep.subr.mxu0 0.0
        %4377 = vmatpush1.msra.mxu0 %v4047
        %4378 = vmatprep.subr.mxu0 0.0
        %4379 = vmatpush1.msra.mxu0 %v4048
        %4380 = vmatprep.subr.mxu0 0.0
        %4381 = vmatpush1.msra.mxu0 %v4049
        %4382 = vmatprep.subr.mxu0 0.0
        %4383 = vmatpush1.msra.mxu0 %v4050
        %4384 = vmatprep.subr.mxu0 0.0
        %4385 = vmatpush1.msra.mxu0 %v4051
        %4386 = vmatprep.subr.mxu0 0.0
        %4387 = vmatpush1.msra.mxu0 %v4052
        %4388 = vmatprep.subr.mxu0 0.0
        %4389 = vmatpush1.msra.mxu0 %v4053
        %4390 = vmatprep.subr.mxu0 0.0
        %4391 = vmatpush1.msra.mxu0 %v4054
        %4392 = vmatprep.subr.mxu0 0.0
        %4393 = vmatpush1.msra.mxu0 %v4055
        %4394 = vmatprep.subr.mxu0 0.0
        %4395 = vmatpush1.msra.mxu0 %v4056
        %4396 = vmatprep.subr.mxu0 0.0
        %4397 = vmatpush1.msra.mxu0 %v4057
        %4398 = vmatprep.subr.mxu0 0.0
        %4399 = vmatpush1.msra.mxu0 %v4058
        %4400 = vmatprep.subr.mxu0 0.0
        %4401 = vmatpush1.msra.mxu0 %v4059
        %4402 = vmatprep.subr.mxu0 0.0
        %4403 = vmatpush1.msra.mxu0 %v4060
        %4404 = vmatprep.subr.mxu0 0.0
        %4405 = vmatpush1.msra.mxu0 %v4061
        %4406 = vmatprep.subr.mxu0 0.0
        %4407 = vmatpush1.msra.mxu0 %v4062
        %4408 = vmatprep.subr.mxu0 0.0
        %4409 = vmatpush1.msra.mxu0 %v4063
        %4410 = vmatprep.subr.mxu0 0.0
        %4411 = vmatpush1.msra.mxu0 %v4064
        %4412 = vmatprep.subr.mxu0 0.0
        %4413 = vmatpush1.msra.mxu0 %v4065
        %4414 = vmatprep.subr.mxu0 0.0
        %4415 = vmatpush1.msra.mxu0 %v4066
        %4416 = vmatprep.mubr.f32.mxu0 %v3898
        %4417 = vmatmul.mubr.f32.gmra.mrb[0].mxu0 %v3897
        %v4418 = vpop.f32.mrb[0].mxu0
        %v4419 = vadd.f32 %v4324, %v4418
        %v4420 = vpop.f32.mrb[0].mxu0
        %4421 = vmatprep.mubr.f32.mxu0 %v3906
        %4422 = vmatmul.mubr.f32.gmra.mrb[0].mxu0 %v3905
        %v4423 = vpop.f32.mrb[0].mxu0
        %v4424 = vadd.f32 %v4329, %v4423
        %v4425 = vpop.f32.mrb[0].mxu0
        %4426 = vmatprep.mubr.f32.mxu0 %v3914
        %4427 = vmatmul.mubr.f32.gmra.mrb[0].mxu0 %v3913
        %v4428 = vpop.f32.mrb[0].mxu0
        %v4429 = vadd.f32 %v4334, %v4428
        %v4430 = vpop.f32.mrb[0].mxu0
        %4431 = vmatprep.mubr.f32.mxu0 %v3922
        %4432 = vmatmul.mubr.f32.gmra.mrb[0].mxu0 %v3921
        %v4433 = vpop.f32.mrb[0].mxu0
        %v4434 = vadd.f32 %v4339, %v4433
        %v4435 = vpop.f32.mrb[0].mxu0
        %4436 = vmatprep.mubr.f32.mxu0 %v3930
        %4437 = vmatmul.mubr.f32.gmra.mrb[0].mxu0 %v3929
        %v4438 = vpop.f32.mrb[0].mxu0
        %v4439 = vadd.f32 %v4344, %v4438
        %v4440 = vpop.f32.mrb[0].mxu0
        %4441 = vmatprep.mubr.f32.mxu0 %v3938
        %4442 = vmatmul.mubr.f32.gmra.mrb[0].mxu0 %v3937
        %v4443 = vpop.f32.mrb[0].mxu0
        %v4444 = vadd.f32 %v4349, %v4443
        %v4445 = vpop.f32.mrb[0].mxu0
        %4446 = vdwg.mxu0
        %v4447 = vld [vmem:[#allocation7] sm:$0x3]
        %4449 = vset.pattern.permute.xlu0 48
        %4450 = vperm.xlu0 %4449, %v4447
        %v4451 = vpop.permute.xlu0 %4450
        %vm4453 = vcmask 392192
        %v4454 = vsel %vm4453, %v4447, 0
        %4456 = vmatprep.subr.mxu0 0.0
        %4457 = vmatpush1.msra.mxu0 %v4419
        %4458 = vmatprep.subr.mxu0 0.0
        %4459 = vmatpush1.msra.mxu0 %v4424
        %4460 = vmatprep.subr.mxu0 0.0
        %4461 = vmatpush1.msra.mxu0 %v4429
        %4462 = vmatprep.subr.mxu0 0.0
        %4463 = vmatpush1.msra.mxu0 %v4434
        %4464 = vmatprep.subr.mxu0 0.0
        %4465 = vmatpush1.msra.mxu0 %v4439
        %4466 = vmatprep.subr.mxu0 0.0
        %4467 = vmatpush1.msra.mxu0 %v4444
        %4468 = vmatprep.subr.mxu0 0.0
        %4469 = vmatpush1.msra.mxu0 0.0
        %4470 = vmatprep.subr.mxu0 0.0
        %4471 = vmatpush1.msra.mxu0 0.0
        %4472 = vmatprep.subr.mxu0 0.0
        %4473 = vmatpush1.msra.mxu0 0.0
        %4474 = vmatprep.subr.mxu0 0.0
        %4475 = vmatpush1.msra.mxu0 0.0
        %4476 = vmatprep.subr.mxu0 0.0
        %4477 = vmatpush1.msra.mxu0 0.0
        %4478 = vmatprep.subr.mxu0 0.0
        %4479 = vmatpush1.msra.mxu0 0.0
        %4480 = vmatprep.subr.mxu0 0.0
        %4481 = vmatpush1.msra.mxu0 0.0
        %4482 = vmatprep.subr.mxu0 0.0
        %4483 = vmatpush1.msra.mxu0 0.0
        %4484 = vmatprep.subr.mxu0 0.0
        %4485 = vmatpush1.msra.mxu0 0.0
        %4486 = vmatprep.subr.mxu0 0.0
        %4487 = vmatpush1.msra.mxu0 0.0
        %4488 = vmatprep.subr.mxu0 0.0
        %4489 = vmatpush1.msra.mxu0 0.0
        %4490 = vmatprep.subr.mxu0 0.0
        %4491 = vmatpush1.msra.mxu0 0.0
        %4492 = vmatprep.subr.mxu0 0.0
        %4493 = vmatpush1.msra.mxu0 0.0
        %4494 = vmatprep.subr.mxu0 0.0
        %4495 = vmatpush1.msra.mxu0 0.0
        %4496 = vmatprep.subr.mxu0 0.0
        %4497 = vmatpush1.msra.mxu0 0.0
        %4498 = vmatprep.subr.mxu0 0.0
        %4499 = vmatpush1.msra.mxu0 0.0
        %4500 = vmatprep.subr.mxu0 0.0
        %4501 = vmatpush1.msra.mxu0 0.0
        %4502 = vmatprep.subr.mxu0 0.0
        %4503 = vmatpush1.msra.mxu0 0.0
        %4504 = vmatprep.subr.mxu0 0.0
        %4505 = vmatpush1.msra.mxu0 0.0
        %4506 = vmatprep.subr.mxu0 0.0
        %4507 = vmatpush1.msra.mxu0 0.0
        %4508 = vmatprep.subr.mxu0 0.0
        %4509 = vmatpush1.msra.mxu0 0.0
        %4510 = vmatprep.subr.mxu0 0.0
        %4511 = vmatpush1.msra.mxu0 0.0
        %4512 = vmatprep.subr.mxu0 0.0
        %4513 = vmatpush1.msra.mxu0 0.0
        %4514 = vmatprep.subr.mxu0 0.0
        %4515 = vmatpush1.msra.mxu0 0.0
        %4516 = vmatprep.subr.mxu0 0.0
        %4517 = vmatpush1.msra.mxu0 0.0
        %4518 = vmatprep.subr.mxu0 0.0
        %4519 = vmatpush1.msra.mxu0 0.0
        %4520 = vmatprep.mubr.f32.mxu0 0.0
        %4521 = vmatmul.mubr.f32.gmra.mrb[0].mxu0 %v4454
        %v4522 = vpop.f32.mrb[0].mxu0
        %v4523 = vadd.f32 %v4451, %v4522
        %v4524 = vpop.f32.mrb[0].mxu0
        %4525 = vdwg.mxu0
        %v4526 = vsub.f32 0.0, %v4523
        %v4527 = vmul.f32 %v4526, 1.442695
        %v4528 = vpow.pop %v4527
        %v4529 = vadd.f32 %v4528, 1.0
        %v4530 = vrcp.pop %v4529
        %v4531 = vmul.f32 %v4523, %v4530
        %v4532 = vld [vmem:[%s4] sm:$0xff]
        %v4533 = vld [vmem:[%s4 + $0x8] sm:$0xff]
        %v4534 = vld [vmem:[%s4 + $0x10] sm:$0xff]
        %v4535 = vld [vmem:[%s4 + $0x18] sm:$0xff]
        %v4536 = vld [vmem:[%s4 + $0x20] sm:$0xff]
        %v4537 = vld [vmem:[%s4 + $0x28] sm:$0xff]
        %4539 = vset.pattern.permute.xlu0 0
        %4540 = vperm.xlu0 %4539, %v4532
        %v4541 = vpop.permute.xlu0 %4540
        %4544 = vset.pattern.permute.xlu0 0
        %4545 = vperm.xlu0 %4544, %v4533
        %v4546 = vpop.permute.xlu0 %4545
        %4549 = vset.pattern.permute.xlu0 0
        %4550 = vperm.xlu0 %4549, %v4534
        %v4551 = vpop.permute.xlu0 %4550
        %4554 = vset.pattern.permute.xlu0 0
        %4555 = vperm.xlu0 %4554, %v4535
        %v4556 = vpop.permute.xlu0 %4555
        %4559 = vset.pattern.permute.xlu0 0
        %4560 = vperm.xlu0 %4559, %v4536
        %v4561 = vpop.permute.xlu0 %4560
        %4564 = vset.pattern.permute.xlu0 0
        %4565 = vperm.xlu0 %4564, %v4537
        %v4566 = vpop.permute.xlu0 %4565
        %4568 = vrot.lane.b32.xlu0 %v4532, 127
        %v4569 = vpop.permute.xlu0 %4568
        %4570 = vrot.lane.b32.xlu0 %v4533, 127
        %v4571 = vpop.permute.xlu0 %4570
        %4572 = vrot.lane.b32.xlu0 %v4534, 127
        %v4573 = vpop.permute.xlu0 %4572
        %4574 = vrot.lane.b32.xlu0 %v4535, 127
        %v4575 = vpop.permute.xlu0 %4574
        %4576 = vrot.lane.b32.xlu0 %v4536, 127
        %v4577 = vpop.permute.xlu0 %4576
        %4578 = vrot.lane.b32.xlu0 %v4537, 127
        %v4579 = vpop.permute.xlu0 %4578
        %vm4580 = vcmask 15360
        %v4581 = vsel %vm4580, %v4569, 0
        %v4583 = vsel %vm4580, %v4571, 0
        %v4585 = vsel %vm4580, %v4573, 0
        %v4587 = vsel %vm4580, %v4575, 0
        %v4589 = vsel %vm4580, %v4577, 0
        %v4591 = vsel %vm4580, %v4579, 0
        %vm4593 = vcmask 1041408
        %v4595 = vsel %vm4593, %v4531, 0
        %4597 = vmatprep.subr.mxu0 0.0
        %4598 = vmatpush1.msra.mxu0 %v4595
        %4599 = vmatprep.subr.mxu0 0.0
        %4600 = vmatpush1.msra.mxu0 0.0
        %4601 = vmatprep.subr.mxu0 0.0
        %4602 = vmatpush1.msra.mxu0 0.0
        %4603 = vmatprep.subr.mxu0 0.0
        %4604 = vmatpush1.msra.mxu0 0.0
        %4605 = vmatprep.subr.mxu0 0.0
        %4606 = vmatpush1.msra.mxu0 0.0
        %4607 = vmatprep.subr.mxu0 0.0
        %4608 = vmatpush1.msra.mxu0 0.0
        %4609 = vmatprep.subr.mxu0 0.0
        %4610 = vmatpush1.msra.mxu0 0.0
        %4611 = vmatprep.subr.mxu0 0.0
        %4612 = vmatpush1.msra.mxu0 0.0
        %4613 = vmatprep.subr.mxu0 0.0
        %4614 = vmatpush1.msra.mxu0 0.0
        %4615 = vmatprep.subr.mxu0 0.0
        %4616 = vmatpush1.msra.mxu0 0.0
        %4617 = vmatprep.subr.mxu0 0.0
        %4618 = vmatpush1.msra.mxu0 0.0
        %4619 = vmatprep.subr.mxu0 0.0
        %4620 = vmatpush1.msra.mxu0 0.0
        %4621 = vmatprep.subr.mxu0 0.0
        %4622 = vmatpush1.msra.mxu0 0.0
        %4623 = vmatprep.subr.mxu0 0.0
        %4624 = vmatpush1.msra.mxu0 0.0
        %4625 = vmatprep.subr.mxu0 0.0
        %4626 = vmatpush1.msra.mxu0 0.0
        %4627 = vmatprep.subr.mxu0 0.0
        %4628 = vmatpush1.msra.mxu0 0.0
        %4629 = vmatprep.subr.mxu0 0.0
        %4630 = vmatpush1.msra.mxu0 0.0
        %4631 = vmatprep.subr.mxu0 0.0
        %4632 = vmatpush1.msra.mxu0 0.0
        %4633 = vmatprep.subr.mxu0 0.0
        %4634 = vmatpush1.msra.mxu0 0.0
        %4635 = vmatprep.subr.mxu0 0.0
        %4636 = vmatpush1.msra.mxu0 0.0
        %4637 = vmatprep.subr.mxu0 0.0
        %4638 = vmatpush1.msra.mxu0 0.0
        %4639 = vmatprep.subr.mxu0 0.0
        %4640 = vmatpush1.msra.mxu0 0.0
        %4641 = vmatprep.subr.mxu0 0.0
        %4642 = vmatpush1.msra.mxu0 0.0
        %4643 = vmatprep.subr.mxu0 0.0
        %4644 = vmatpush1.msra.mxu0 0.0
        %4645 = vmatprep.subr.mxu0 0.0
        %4646 = vmatpush1.msra.mxu0 0.0
        %4647 = vmatprep.subr.mxu0 0.0
        %4648 = vmatpush1.msra.mxu0 0.0
        %4649 = vmatprep.subr.mxu0 0.0
        %4650 = vmatpush1.msra.mxu0 0.0
        %4651 = vmatprep.subr.mxu0 0.0
        %4652 = vmatpush1.msra.mxu0 0.0
        %4653 = vmatprep.subr.mxu0 0.0
        %4654 = vmatpush1.msra.mxu0 0.0
        %4655 = vmatprep.subr.mxu0 0.0
        %4656 = vmatpush1.msra.mxu0 0.0
        %4657 = vmatprep.subr.mxu0 0.0
        %4658 = vmatpush1.msra.mxu0 0.0
        %4659 = vmatprep.subr.mxu0 0.0
        %4660 = vmatpush1.msra.mxu0 0.0
        %4661 = vmatprep.mubr.f32.mxu0 0.0
        %4662 = vmatmul.mubr.f32.gmra.mrb[0].mxu0 %v4581
        %v4663 = vpop.f32.mrb[0].mxu0
        %v4664 = vadd.f32 %v4541, %v4663
        %v4665 = vpop.f32.mrb[0].mxu0
        %4666 = vmatprep.mubr.f32.mxu0 0.0
        %4667 = vmatmul.mubr.f32.gmra.mrb[0].mxu0 %v4583
        %v4668 = vpop.f32.mrb[0].mxu0
        %v4669 = vadd.f32 %v4546, %v4668
        %v4670 = vpop.f32.mrb[0].mxu0
        %4671 = vmatprep.mubr.f32.mxu0 0.0
        %4672 = vmatmul.mubr.f32.gmra.mrb[0].mxu0 %v4585
        %v4673 = vpop.f32.mrb[0].mxu0
        %v4674 = vadd.f32 %v4551, %v4673
        %v4675 = vpop.f32.mrb[0].mxu0
        %4676 = vmatprep.mubr.f32.mxu0 0.0
        %4677 = vmatmul.mubr.f32.gmra.mrb[0].mxu0 %v4587
        %v4678 = vpop.f32.mrb[0].mxu0
        %v4679 = vadd.f32 %v4556, %v4678
        %v4680 = vpop.f32.mrb[0].mxu0
        %4681 = vmatprep.mubr.f32.mxu0 0.0
        %4682 = vmatmul.mubr.f32.gmra.mrb[0].mxu0 %v4589
        %v4683 = vpop.f32.mrb[0].mxu0
        %v4684 = vadd.f32 %v4561, %v4683
        %v4685 = vpop.f32.mrb[0].mxu0
        %4686 = vmatprep.mubr.f32.mxu0 0.0
        %4687 = vmatmul.mubr.f32.gmra.mrb[0].mxu0 %v4591
        %v4688 = vpop.f32.mrb[0].mxu0
        %v4689 = vadd.f32 %v4566, %v4688
        %v4690 = vpop.f32.mrb[0].mxu0
        %4691 = vdwg.mxu0
        %v4692 = vsub.f32 0.0, %v4664
        %v4693 = vsub.f32 0.0, %v4669
        %v4694 = vsub.f32 0.0, %v4674
        %v4695 = vsub.f32 0.0, %v4679
        %v4696 = vsub.f32 0.0, %v4684
        %v4697 = vsub.f32 0.0, %v4689
        %v4698 = vmul.f32 %v4692, 1.442695
        %v4699 = vpow.pop %v4698
        %v4700 = vmul.f32 %v4693, 1.442695
        %v4701 = vpow.pop %v4700
        %v4702 = vmul.f32 %v4694, 1.442695
        %v4703 = vpow.pop %v4702
        %v4704 = vmul.f32 %v4695, 1.442695
        %v4705 = vpow.pop %v4704
        %v4706 = vmul.f32 %v4696, 1.442695
        %v4707 = vpow.pop %v4706
        %v4708 = vmul.f32 %v4697, 1.442695
        %v4709 = vpow.pop %v4708
        %v4710 = vadd.f32 %v4699, 1.0
        %v4711 = vadd.f32 %v4701, 1.0
        %v4712 = vadd.f32 %v4703, 1.0
        %v4713 = vadd.f32 %v4705, 1.0
        %v4714 = vadd.f32 %v4707, 1.0
        %v4715 = vadd.f32 %v4709, 1.0
        %v4716 = vrcp.pop %v4710
        %v4717 = vrcp.pop %v4711
        %v4718 = vrcp.pop %v4712
        %v4719 = vrcp.pop %v4713
        %v4720 = vrcp.pop %v4714
        %v4721 = vrcp.pop %v4715
        %v4722 = vld [vmem:[#allocation10] sm:$0xff]
        %v4723 = vld [vmem:[#allocation10 + $0x8] sm:$0xff]
        %v4724 = vld [vmem:[#allocation10 + $0x10] sm:$0xff]
        %v4725 = vld [vmem:[#allocation10 + $0x18] sm:$0xff]
        %v4730 = vcombine.high %v4722, %v4722
        %v4731 = vcombine.high %v4723, %v4723
        %v4732 = vcombine.high %v4724, %v4724
        %v4733 = vcombine.high %v4725, %v4725
        %vm4734 = vcmask 31744
        %v4736 = vsel %vm4734, %v4716, 0
        %v4739 = vsel %vm4734, %v4717, 0
        %v4742 = vsel %vm4734, %v4718, 0
        %v4745 = vsel %vm4734, %v4719, 0
        %v4748 = vsel %vm4734, %v4720, 0
        %v4751 = vsel %vm4734, %v4721, 0
        %vm4753 = vcmask 1043456
        %v4754 = vsel %vm4753, %v4722, 0
        %v4756 = vsel %vm4753, %v4730, 0
        %v4758 = vsel %vm4753, %v4723, 0
        %v4760 = vsel %vm4753, %v4731, 0
        %v4762 = vsel %vm4753, %v4724, 0
        %v4764 = vsel %vm4753, %v4732, 0
        %v4766 = vsel %vm4753, %v4725, 0
        %v4768 = vsel %vm4753, %v4733, 0
        %4770 = vmatprep.subr.mxu0 %v4756
        %4771 = vmatpush1.msra.mxu0 %v4754
        %4772 = vmatprep.subr.mxu0 0.0
        %4773 = vmatpush1.msra.mxu0 0.0
        %4774 = vmatprep.subr.mxu0 0.0
        %4775 = vmatpush1.msra.mxu0 0.0
        %4776 = vmatprep.subr.mxu0 0.0
        %4777 = vmatpush1.msra.mxu0 0.0
        %4778 = vmatprep.subr.mxu0 0.0
        %4779 = vmatpush1.msra.mxu0 0.0
        %4780 = vmatprep.subr.mxu0 0.0
        %4781 = vmatpush1.msra.mxu0 0.0
        %4782 = vmatprep.subr.mxu0 0.0
        %4783 = vmatpush1.msra.mxu0 0.0
        %4784 = vmatprep.subr.mxu0 0.0
        %4785 = vmatpush1.msra.mxu0 0.0
        %4786 = vmatprep.subr.mxu0 0.0
        %4787 = vmatpush1.msra.mxu0 0.0
        %4788 = vmatprep.subr.mxu0 0.0
        %4789 = vmatpush1.msra.mxu0 0.0
        %4790 = vmatprep.subr.mxu0 0.0
        %4791 = vmatpush1.msra.mxu0 0.0
        %4792 = vmatprep.subr.mxu0 0.0
        %4793 = vmatpush1.msra.mxu0 0.0
        %4794 = vmatprep.subr.mxu0 0.0
        %4795 = vmatpush1.msra.mxu0 0.0
        %4796 = vmatprep.subr.mxu0 0.0
        %4797 = vmatpush1.msra.mxu0 0.0
        %4798 = vmatprep.subr.mxu0 0.0
        %4799 = vmatpush1.msra.mxu0 0.0
        %4800 = vmatprep.subr.mxu0 0.0
        %4801 = vmatpush1.msra.mxu0 0.0
        %4802 = vmatprep.subr.mxu0 0.0
        %4803 = vmatpush1.msra.mxu0 0.0
        %4804 = vmatprep.subr.mxu0 0.0
        %4805 = vmatpush1.msra.mxu0 0.0
        %4806 = vmatprep.subr.mxu0 0.0
        %4807 = vmatpush1.msra.mxu0 0.0
        %4808 = vmatprep.subr.mxu0 0.0
        %4809 = vmatpush1.msra.mxu0 0.0
        %4810 = vmatprep.subr.mxu0 0.0
        %4811 = vmatpush1.msra.mxu0 0.0
        %4812 = vmatprep.subr.mxu0 0.0
        %4813 = vmatpush1.msra.mxu0 0.0
        %4814 = vmatprep.subr.mxu0 0.0
        %4815 = vmatpush1.msra.mxu0 0.0
        %4816 = vmatprep.subr.mxu0 0.0
        %4817 = vmatpush1.msra.mxu0 0.0
        %4818 = vmatprep.subr.mxu0 0.0
        %4819 = vmatpush1.msra.mxu0 0.0
        %4820 = vmatprep.subr.mxu0 0.0
        %4821 = vmatpush1.msra.mxu0 0.0
        %4822 = vmatprep.subr.mxu0 0.0
        %4823 = vmatpush1.msra.mxu0 0.0
        %4824 = vmatprep.subr.mxu0 0.0
        %4825 = vmatpush1.msra.mxu0 0.0
        %4826 = vmatprep.subr.mxu0 0.0
        %4827 = vmatpush1.msra.mxu0 0.0
        %4828 = vmatprep.subr.mxu0 0.0
        %4829 = vmatpush1.msra.mxu0 0.0
        %4830 = vmatprep.subr.mxu0 0.0
        %4831 = vmatpush1.msra.mxu0 0.0
        %4832 = vmatprep.subr.mxu0 0.0
        %4833 = vmatpush1.msra.mxu0 0.0
        %4834 = vmatprep.mubr.f32.mxu0 0.0
        %4835 = vmatmul.mubr.f32.gmra.mrb[0].mxu0 %v4736
        %v4836 = vpop.f32.mrb[0].mxu0
        %v4837 = vadd.f32 0.0, %v4836
        %v4838 = vpop.f32.mrb[0].mxu0
        %v4839 = vadd.f32 0.0, %v4838
        %4840 = vmatprep.mubr.f32.mxu0 0.0
        %4841 = vmatmul.mubr.f32.gmra.mrb[0].mxu0 %v4739
        %v4842 = vpop.f32.mrb[0].mxu0
        %v4843 = vadd.f32 0.0, %v4842
        %v4844 = vpop.f32.mrb[0].mxu0
        %v4845 = vadd.f32 0.0, %v4844
        %4846 = vmatprep.mubr.f32.mxu0 0.0
        %4847 = vmatmul.mubr.f32.gmra.mrb[0].mxu0 %v4742
        %v4848 = vpop.f32.mrb[0].mxu0
        %v4849 = vadd.f32 0.0, %v4848
        %v4850 = vpop.f32.mrb[0].mxu0
        %v4851 = vadd.f32 0.0, %v4850
        %4852 = vmatprep.mubr.f32.mxu0 0.0
        %4853 = vmatmul.mubr.f32.gmra.mrb[0].mxu0 %v4745
        %v4854 = vpop.f32.mrb[0].mxu0
        %v4855 = vadd.f32 0.0, %v4854
        %v4856 = vpop.f32.mrb[0].mxu0
        %v4857 = vadd.f32 0.0, %v4856
        %4858 = vmatprep.mubr.f32.mxu0 0.0
        %4859 = vmatmul.mubr.f32.gmra.mrb[0].mxu0 %v4748
        %v4860 = vpop.f32.mrb[0].mxu0
        %v4861 = vadd.f32 0.0, %v4860
        %v4862 = vpop.f32.mrb[0].mxu0
        %v4863 = vadd.f32 0.0, %v4862
        %4864 = vmatprep.mubr.f32.mxu0 0.0
        %4865 = vmatmul.mubr.f32.gmra.mrb[0].mxu0 %v4751
        %v4866 = vpop.f32.mrb[0].mxu0
        %v4867 = vadd.f32 0.0, %v4866
        %v4868 = vpop.f32.mrb[0].mxu0
        %v4869 = vadd.f32 0.0, %v4868
        %4870 = vdwg.mxu0
        %4871 = vmatprep.subr.mxu0 %v4760
        %4872 = vmatpush1.msra.mxu0 %v4758
        %4873 = vmatprep.subr.mxu0 0.0
        %4874 = vmatpush1.msra.mxu0 0.0
        %4875 = vmatprep.subr.mxu0 0.0
        %4876 = vmatpush1.msra.mxu0 0.0
        %4877 = vmatprep.subr.mxu0 0.0
        %4878 = vmatpush1.msra.mxu0 0.0
        %4879 = vmatprep.subr.mxu0 0.0
        %4880 = vmatpush1.msra.mxu0 0.0
        %4881 = vmatprep.subr.mxu0 0.0
        %4882 = vmatpush1.msra.mxu0 0.0
        %4883 = vmatprep.subr.mxu0 0.0
        %4884 = vmatpush1.msra.mxu0 0.0
        %4885 = vmatprep.subr.mxu0 0.0
        %4886 = vmatpush1.msra.mxu0 0.0
        %4887 = vmatprep.subr.mxu0 0.0
        %4888 = vmatpush1.msra.mxu0 0.0
        %4889 = vmatprep.subr.mxu0 0.0
        %4890 = vmatpush1.msra.mxu0 0.0
        %4891 = vmatprep.subr.mxu0 0.0
        %4892 = vmatpush1.msra.mxu0 0.0
        %4893 = vmatprep.subr.mxu0 0.0
        %4894 = vmatpush1.msra.mxu0 0.0
        %4895 = vmatprep.subr.mxu0 0.0
        %4896 = vmatpush1.msra.mxu0 0.0
        %4897 = vmatprep.subr.mxu0 0.0
        %4898 = vmatpush1.msra.mxu0 0.0
        %4899 = vmatprep.subr.mxu0 0.0
        %4900 = vmatpush1.msra.mxu0 0.0
        %4901 = vmatprep.subr.mxu0 0.0
        %4902 = vmatpush1.msra.mxu0 0.0
        %4903 = vmatprep.subr.mxu0 0.0
        %4904 = vmatpush1.msra.mxu0 0.0
        %4905 = vmatprep.subr.mxu0 0.0
        %4906 = vmatpush1.msra.mxu0 0.0
        %4907 = vmatprep.subr.mxu0 0.0
        %4908 = vmatpush1.msra.mxu0 0.0
        %4909 = vmatprep.subr.mxu0 0.0
        %4910 = vmatpush1.msra.mxu0 0.0
        %4911 = vmatprep.subr.mxu0 0.0
        %4912 = vmatpush1.msra.mxu0 0.0
        %4913 = vmatprep.subr.mxu0 0.0
        %4914 = vmatpush1.msra.mxu0 0.0
        %4915 = vmatprep.subr.mxu0 0.0
        %4916 = vmatpush1.msra.mxu0 0.0
        %4917 = vmatprep.subr.mxu0 0.0
        %4918 = vmatpush1.msra.mxu0 0.0
        %4919 = vmatprep.subr.mxu0 0.0
        %4920 = vmatpush1.msra.mxu0 0.0
        %4921 = vmatprep.subr.mxu0 0.0
        %4922 = vmatpush1.msra.mxu0 0.0
        %4923 = vmatprep.subr.mxu0 0.0
        %4924 = vmatpush1.msra.mxu0 0.0
        %4925 = vmatprep.subr.mxu0 0.0
        %4926 = vmatpush1.msra.mxu0 0.0
        %4927 = vmatprep.subr.mxu0 0.0
        %4928 = vmatpush1.msra.mxu0 0.0
        %4929 = vmatprep.subr.mxu0 0.0
        %4930 = vmatpush1.msra.mxu0 0.0
        %4931 = vmatprep.subr.mxu0 0.0
        %4932 = vmatpush1.msra.mxu0 0.0
        %4933 = vmatprep.subr.mxu0 0.0
        %4934 = vmatpush1.msra.mxu0 0.0
        %4935 = vmatprep.mubr.f32.mxu0 0.0
        %4936 = vmatmul.mubr.f32.gmra.mrb[0].mxu0 %v4736
        %v4937 = vpop.f32.mrb[0].mxu0
        %v4938 = vadd.f32 0.0, %v4937
        %v4939 = vpop.f32.mrb[0].mxu0
        %v4940 = vadd.f32 0.0, %v4939
        %4941 = vmatprep.mubr.f32.mxu0 0.0
        %4942 = vmatmul.mubr.f32.gmra.mrb[0].mxu0 %v4739
        %v4943 = vpop.f32.mrb[0].mxu0
        %v4944 = vadd.f32 0.0, %v4943
        %v4945 = vpop.f32.mrb[0].mxu0
        %v4946 = vadd.f32 0.0, %v4945
        %4947 = vmatprep.mubr.f32.mxu0 0.0
        %4948 = vmatmul.mubr.f32.gmra.mrb[0].mxu0 %v4742
        %v4949 = vpop.f32.mrb[0].mxu0
        %v4950 = vadd.f32 0.0, %v4949
        %v4951 = vpop.f32.mrb[0].mxu0
        %v4952 = vadd.f32 0.0, %v4951
        %4953 = vmatprep.mubr.f32.mxu0 0.0
        %4954 = vmatmul.mubr.f32.gmra.mrb[0].mxu0 %v4745
        %v4955 = vpop.f32.mrb[0].mxu0
        %v4956 = vadd.f32 0.0, %v4955
        %v4957 = vpop.f32.mrb[0].mxu0
        %v4958 = vadd.f32 0.0, %v4957
        %4959 = vmatprep.mubr.f32.mxu0 0.0
        %4960 = vmatmul.mubr.f32.gmra.mrb[0].mxu0 %v4748
        %v4961 = vpop.f32.mrb[0].mxu0
        %v4962 = vadd.f32 0.0, %v4961
        %v4963 = vpop.f32.mrb[0].mxu0
        %v4964 = vadd.f32 0.0, %v4963
        %4965 = vmatprep.mubr.f32.mxu0 0.0
        %4966 = vmatmul.mubr.f32.gmra.mrb[0].mxu0 %v4751
        %v4967 = vpop.f32.mrb[0].mxu0
        %v4968 = vadd.f32 0.0, %v4967
        %v4969 = vpop.f32.mrb[0].mxu0
        %v4970 = vadd.f32 0.0, %v4969
        %4971 = vdwg.mxu0
        %4972 = vmatprep.subr.mxu0 %v4764
        %4973 = vmatpush1.msra.mxu0 %v4762
        %4974 = vmatprep.subr.mxu0 0.0
        %4975 = vmatpush1.msra.mxu0 0.0
        %4976 = vmatprep.subr.mxu0 0.0
        %4977 = vmatpush1.msra.mxu0 0.0
        %4978 = vmatprep.subr.mxu0 0.0
        %4979 = vmatpush1.msra.mxu0 0.0
        %4980 = vmatprep.subr.mxu0 0.0
        %4981 = vmatpush1.msra.mxu0 0.0
        %4982 = vmatprep.subr.mxu0 0.0
        %4983 = vmatpush1.msra.mxu0 0.0
        %4984 = vmatprep.subr.mxu0 0.0
        %4985 = vmatpush1.msra.mxu0 0.0
        %4986 = vmatprep.subr.mxu0 0.0
        %4987 = vmatpush1.msra.mxu0 0.0
        %4988 = vmatprep.subr.mxu0 0.0
        %4989 = vmatpush1.msra.mxu0 0.0
        %4990 = vmatprep.subr.mxu0 0.0
        %4991 = vmatpush1.msra.mxu0 0.0
        %4992 = vmatprep.subr.mxu0 0.0
        %4993 = vmatpush1.msra.mxu0 0.0
        %4994 = vmatprep.subr.mxu0 0.0
        %4995 = vmatpush1.msra.mxu0 0.0
        %4996 = vmatprep.subr.mxu0 0.0
        %4997 = vmatpush1.msra.mxu0 0.0
        %4998 = vmatprep.subr.mxu0 0.0
        %4999 = vmatpush1.msra.mxu0 0.0
        %5000 = vmatprep.subr.mxu0 0.0
        %5001 = vmatpush1.msra.mxu0 0.0
        %5002 = vmatprep.subr.mxu0 0.0
        %5003 = vmatpush1.msra.mxu0 0.0
        %5004 = vmatprep.subr.mxu0 0.0
        %5005 = vmatpush1.msra.mxu0 0.0
        %5006 = vmatprep.subr.mxu0 0.0
        %5007 = vmatpush1.msra.mxu0 0.0
        %5008 = vmatprep.subr.mxu0 0.0
        %5009 = vmatpush1.msra.mxu0 0.0
        %5010 = vmatprep.subr.mxu0 0.0
        %5011 = vmatpush1.msra.mxu0 0.0
        %5012 = vmatprep.subr.mxu0 0.0
        %5013 = vmatpush1.msra.mxu0 0.0
        %5014 = vmatprep.subr.mxu0 0.0
        %5015 = vmatpush1.msra.mxu0 0.0
        %5016 = vmatprep.subr.mxu0 0.0
        %5017 = vmatpush1.msra.mxu0 0.0
        %5018 = vmatprep.subr.mxu0 0.0
        %5019 = vmatpush1.msra.mxu0 0.0
        %5020 = vmatprep.subr.mxu0 0.0
        %5021 = vmatpush1.msra.mxu0 0.0
        %5022 = vmatprep.subr.mxu0 0.0
        %5023 = vmatpush1.msra.mxu0 0.0
        %5024 = vmatprep.subr.mxu0 0.0
        %5025 = vmatpush1.msra.mxu0 0.0
        %5026 = vmatprep.subr.mxu0 0.0
        %5027 = vmatpush1.msra.mxu0 0.0
        %5028 = vmatprep.subr.mxu0 0.0
        %5029 = vmatpush1.msra.mxu0 0.0
        %5030 = vmatprep.subr.mxu0 0.0
        %5031 = vmatpush1.msra.mxu0 0.0
        %5032 = vmatprep.subr.mxu0 0.0
        %5033 = vmatpush1.msra.mxu0 0.0
        %5034 = vmatprep.subr.mxu0 0.0
        %5035 = vmatpush1.msra.mxu0 0.0
        %5036 = vmatprep.mubr.f32.mxu0 0.0
        %5037 = vmatmul.mubr.f32.gmra.mrb[0].mxu0 %v4736
        %v5038 = vpop.f32.mrb[0].mxu0
        %v5039 = vadd.f32 0.0, %v5038
        %v5040 = vpop.f32.mrb[0].mxu0
        %v5041 = vadd.f32 0.0, %v5040
        %5042 = vmatprep.mubr.f32.mxu0 0.0
        %5043 = vmatmul.mubr.f32.gmra.mrb[0].mxu0 %v4739
        %v5044 = vpop.f32.mrb[0].mxu0
        %v5045 = vadd.f32 0.0, %v5044
        %v5046 = vpop.f32.mrb[0].mxu0
        %v5047 = vadd.f32 0.0, %v5046
        %5048 = vmatprep.mubr.f32.mxu0 0.0
        %5049 = vmatmul.mubr.f32.gmra.mrb[0].mxu0 %v4742
        %v5050 = vpop.f32.mrb[0].mxu0
        %v5051 = vadd.f32 0.0, %v5050
        %v5052 = vpop.f32.mrb[0].mxu0
        %v5053 = vadd.f32 0.0, %v5052
        %5054 = vmatprep.mubr.f32.mxu0 0.0
        %5055 = vmatmul.mubr.f32.gmra.mrb[0].mxu0 %v4745
        %v5056 = vpop.f32.mrb[0].mxu0
        %v5057 = vadd.f32 0.0, %v5056
        %v5058 = vpop.f32.mrb[0].mxu0
        %v5059 = vadd.f32 0.0, %v5058
        %5060 = vmatprep.mubr.f32.mxu0 0.0
        %5061 = vmatmul.mubr.f32.gmra.mrb[0].mxu0 %v4748
        %v5062 = vpop.f32.mrb[0].mxu0
        %v5063 = vadd.f32 0.0, %v5062
        %v5064 = vpop.f32.mrb[0].mxu0
        %v5065 = vadd.f32 0.0, %v5064
        %5066 = vmatprep.mubr.f32.mxu0 0.0
        %5067 = vmatmul.mubr.f32.gmra.mrb[0].mxu0 %v4751
        %v5068 = vpop.f32.mrb[0].mxu0
        %v5069 = vadd.f32 0.0, %v5068
        %v5070 = vpop.f32.mrb[0].mxu0
        %v5071 = vadd.f32 0.0, %v5070
        %5072 = vdwg.mxu0
        %5073 = vmatprep.subr.mxu0 %v4768
        %5074 = vmatpush1.msra.mxu0 %v4766
        %5075 = vmatprep.subr.mxu0 0.0
        %5076 = vmatpush1.msra.mxu0 0.0
        %5077 = vmatprep.subr.mxu0 0.0
        %5078 = vmatpush1.msra.mxu0 0.0
        %5079 = vmatprep.subr.mxu0 0.0
        %5080 = vmatpush1.msra.mxu0 0.0
        %5081 = vmatprep.subr.mxu0 0.0
        %5082 = vmatpush1.msra.mxu0 0.0
        %5083 = vmatprep.subr.mxu0 0.0
        %5084 = vmatpush1.msra.mxu0 0.0
        %5085 = vmatprep.subr.mxu0 0.0
        %5086 = vmatpush1.msra.mxu0 0.0
        %5087 = vmatprep.subr.mxu0 0.0
        %5088 = vmatpush1.msra.mxu0 0.0
        %5089 = vmatprep.subr.mxu0 0.0
        %5090 = vmatpush1.msra.mxu0 0.0
        %5091 = vmatprep.subr.mxu0 0.0
        %5092 = vmatpush1.msra.mxu0 0.0
        %5093 = vmatprep.subr.mxu0 0.0
        %5094 = vmatpush1.msra.mxu0 0.0
        %5095 = vmatprep.subr.mxu0 0.0
        %5096 = vmatpush1.msra.mxu0 0.0
        %5097 = vmatprep.subr.mxu0 0.0
        %5098 = vmatpush1.msra.mxu0 0.0
        %5099 = vmatprep.subr.mxu0 0.0
        %5100 = vmatpush1.msra.mxu0 0.0
        %5101 = vmatprep.subr.mxu0 0.0
        %5102 = vmatpush1.msra.mxu0 0.0
        %5103 = vmatprep.subr.mxu0 0.0
        %5104 = vmatpush1.msra.mxu0 0.0
        %5105 = vmatprep.subr.mxu0 0.0
        %5106 = vmatpush1.msra.mxu0 0.0
        %5107 = vmatprep.subr.mxu0 0.0
        %5108 = vmatpush1.msra.mxu0 0.0
        %5109 = vmatprep.subr.mxu0 0.0
        %5110 = vmatpush1.msra.mxu0 0.0
        %5111 = vmatprep.subr.mxu0 0.0
        %5112 = vmatpush1.msra.mxu0 0.0
        %5113 = vmatprep.subr.mxu0 0.0
        %5114 = vmatpush1.msra.mxu0 0.0
        %5115 = vmatprep.subr.mxu0 0.0
        %5116 = vmatpush1.msra.mxu0 0.0
        %5117 = vmatprep.subr.mxu0 0.0
        %5118 = vmatpush1.msra.mxu0 0.0
        %5119 = vmatprep.subr.mxu0 0.0
        %5120 = vmatpush1.msra.mxu0 0.0
        %5121 = vmatprep.subr.mxu0 0.0
        %5122 = vmatpush1.msra.mxu0 0.0
        %5123 = vmatprep.subr.mxu0 0.0
        %5124 = vmatpush1.msra.mxu0 0.0
        %5125 = vmatprep.subr.mxu0 0.0
        %5126 = vmatpush1.msra.mxu0 0.0
        %5127 = vmatprep.subr.mxu0 0.0
        %5128 = vmatpush1.msra.mxu0 0.0
        %5129 = vmatprep.subr.mxu0 0.0
        %5130 = vmatpush1.msra.mxu0 0.0
        %5131 = vmatprep.subr.mxu0 0.0
        %5132 = vmatpush1.msra.mxu0 0.0
        %5133 = vmatprep.subr.mxu0 0.0
        %5134 = vmatpush1.msra.mxu0 0.0
        %5135 = vmatprep.subr.mxu0 0.0
        %5136 = vmatpush1.msra.mxu0 0.0
        %5137 = vmatprep.mubr.f32.mxu0 0.0
        %5138 = vmatmul.mubr.f32.gmra.mrb[0].mxu0 %v4736
        %v5139 = vpop.f32.mrb[0].mxu0
        %v5140 = vadd.f32 0.0, %v5139
        %v5141 = vpop.f32.mrb[0].mxu0
        %v5142 = vadd.f32 0.0, %v5141
        %5143 = vmatprep.mubr.f32.mxu0 0.0
        %5144 = vmatmul.mubr.f32.gmra.mrb[0].mxu0 %v4739
        %v5145 = vpop.f32.mrb[0].mxu0
        %v5146 = vadd.f32 0.0, %v5145
        %v5147 = vpop.f32.mrb[0].mxu0
        %v5148 = vadd.f32 0.0, %v5147
        %5149 = vmatprep.mubr.f32.mxu0 0.0
        %5150 = vmatmul.mubr.f32.gmra.mrb[0].mxu0 %v4742
        %v5151 = vpop.f32.mrb[0].mxu0
        %v5152 = vadd.f32 0.0, %v5151
        %v5153 = vpop.f32.mrb[0].mxu0
        %v5154 = vadd.f32 0.0, %v5153
        %5155 = vmatprep.mubr.f32.mxu0 0.0
        %5156 = vmatmul.mubr.f32.gmra.mrb[0].mxu0 %v4745
        %v5157 = vpop.f32.mrb[0].mxu0
        %v5158 = vadd.f32 0.0, %v5157
        %v5159 = vpop.f32.mrb[0].mxu0
        %v5160 = vadd.f32 0.0, %v5159
        %5161 = vmatprep.mubr.f32.mxu0 0.0
        %5162 = vmatmul.mubr.f32.gmra.mrb[0].mxu0 %v4748
        %v5163 = vpop.f32.mrb[0].mxu0
        %v5164 = vadd.f32 0.0, %v5163
        %v5165 = vpop.f32.mrb[0].mxu0
        %v5166 = vadd.f32 0.0, %v5165
        %5167 = vmatprep.mubr.f32.mxu0 0.0
        %5168 = vmatmul.mubr.f32.gmra.mrb[0].mxu0 %v4751
        %v5169 = vpop.f32.mrb[0].mxu0
        %v5170 = vadd.f32 0.0, %v5169
        %v5171 = vpop.f32.mrb[0].mxu0
        %v5172 = vadd.f32 0.0, %v5171
        %5173 = vdwg.mxu0
        %v5174 = vmul.f32 %v3891, %v4837
        %v5175 = vmul.f32 %v3892, %v4839
        %v5176 = vmul.f32 %v3893, %v4938
        %v5177 = vmul.f32 %v3894, %v4940
        %v5178 = vmul.f32 %v3895, %v5039
        %v5179 = vmul.f32 %v3896, %v5041
        %v5180 = vmul.f32 %v3897, %v5140
        %v5181 = vmul.f32 %v3898, %v5142
        %v5182 = vmul.f32 %v3899, %v4843
        %v5183 = vmul.f32 %v3900, %v4845
        %v5184 = vmul.f32 %v3901, %v4944
        %v5185 = vmul.f32 %v3902, %v4946
        %v5186 = vmul.f32 %v3903, %v5045
        %v5187 = vmul.f32 %v3904, %v5047
        %v5188 = vmul.f32 %v3905, %v5146
        %v5189 = vmul.f32 %v3906, %v5148
        %v5190 = vmul.f32 %v3907, %v4849
        %v5191 = vmul.f32 %v3908, %v4851
        %v5192 = vmul.f32 %v3909, %v4950
        %v5193 = vmul.f32 %v3910, %v4952
        %v5194 = vmul.f32 %v3911, %v5051
        %v5195 = vmul.f32 %v3912, %v5053
        %v5196 = vmul.f32 %v3913, %v5152
        %v5197 = vmul.f32 %v3914, %v5154
        %v5198 = vmul.f32 %v3915, %v4855
        %v5199 = vmul.f32 %v3916, %v4857
        %v5200 = vmul.f32 %v3917, %v4956
        %v5201 = vmul.f32 %v3918, %v4958
        %v5202 = vmul.f32 %v3919, %v5057
        %v5203 = vmul.f32 %v3920, %v5059
        %v5204 = vmul.f32 %v3921, %v5158
        %v5205 = vmul.f32 %v3922, %v5160
        %v5206 = vmul.f32 %v3923, %v4861
        %v5207 = vmul.f32 %v3924, %v4863
        %v5208 = vmul.f32 %v3925, %v4962
        %v5209 = vmul.f32 %v3926, %v4964
        %v5210 = vmul.f32 %v3927, %v5063
        %v5211 = vmul.f32 %v3928, %v5065
        %v5212 = vmul.f32 %v3929, %v5164
        %v5213 = vmul.f32 %v3930, %v5166
        %v5214 = vmul.f32 %v3931, %v4867
        %v5215 = vmul.f32 %v3932, %v4869
        %v5216 = vmul.f32 %v3933, %v4968
        %v5217 = vmul.f32 %v3934, %v4970
        %v5218 = vmul.f32 %v3935, %v5069
        %v5219 = vmul.f32 %v3936, %v5071
        %v5220 = vmul.f32 %v3937, %v5170
        %v5221 = vmul.f32 %v3938, %v5172
        %v5222 = vld [vmem:[#allocation8] sm:$0xff]
        %5224 = vset.pattern.permute.xlu0 48
        %5225 = vperm.xlu0 %5224, %v5222
        %v5226 = vpop.permute.xlu0 %5225
        %v5228 = vsel %vm4453, %v5222, 0
        %5230 = vmatprep.subr.mxu0 %v5175
        %5231 = vmatpush1.msra.mxu0 %v5174
        %5232 = vmatprep.subr.mxu0 %v5183
        %5233 = vmatpush1.msra.mxu0 %v5182
        %5234 = vmatprep.subr.mxu0 %v5191
        %5235 = vmatpush1.msra.mxu0 %v5190
        %5236 = vmatprep.subr.mxu0 %v5199
        %5237 = vmatpush1.msra.mxu0 %v5198
        %5238 = vmatprep.subr.mxu0 %v5207
        %5239 = vmatpush1.msra.mxu0 %v5206
        %5240 = vmatprep.subr.mxu0 %v5215
        %5241 = vmatpush1.msra.mxu0 %v5214
        %5242 = vmatprep.subr.mxu0 0.0
        %5243 = vmatpush1.msra.mxu0 0.0
        %5244 = vmatprep.subr.mxu0 0.0
        %5245 = vmatpush1.msra.mxu0 0.0
        %5246 = vmatprep.subr.mxu0 0.0
        %5247 = vmatpush1.msra.mxu0 0.0
        %5248 = vmatprep.subr.mxu0 0.0
        %5249 = vmatpush1.msra.mxu0 0.0
        %5250 = vmatprep.subr.mxu0 0.0
        %5251 = vmatpush1.msra.mxu0 0.0
        %5252 = vmatprep.subr.mxu0 0.0
        %5253 = vmatpush1.msra.mxu0 0.0
        %5254 = vmatprep.subr.mxu0 0.0
        %5255 = vmatpush1.msra.mxu0 0.0
        %5256 = vmatprep.subr.mxu0 0.0
        %5257 = vmatpush1.msra.mxu0 0.0
        %5258 = vmatprep.subr.mxu0 0.0
        %5259 = vmatpush1.msra.mxu0 0.0
        %5260 = vmatprep.subr.mxu0 0.0
        %5261 = vmatpush1.msra.mxu0 0.0
        %5262 = vmatprep.subr.mxu0 0.0
        %5263 = vmatpush1.msra.mxu0 0.0
        %5264 = vmatprep.subr.mxu0 0.0
        %5265 = vmatpush1.msra.mxu0 0.0
        %5266 = vmatprep.subr.mxu0 0.0
        %5267 = vmatpush1.msra.mxu0 0.0
        %5268 = vmatprep.subr.mxu0 0.0
        %5269 = vmatpush1.msra.mxu0 0.0
        %5270 = vmatprep.subr.mxu0 0.0
        %5271 = vmatpush1.msra.mxu0 0.0
        %5272 = vmatprep.subr.mxu0 0.0
        %5273 = vmatpush1.msra.mxu0 0.0
        %5274 = vmatprep.subr.mxu0 0.0
        %5275 = vmatpush1.msra.mxu0 0.0
        %5276 = vmatprep.subr.mxu0 0.0
        %5277 = vmatpush1.msra.mxu0 0.0
        %5278 = vmatprep.subr.mxu0 0.0
        %5279 = vmatpush1.msra.mxu0 0.0
        %5280 = vmatprep.subr.mxu0 0.0
        %5281 = vmatpush1.msra.mxu0 0.0
        %5282 = vmatprep.subr.mxu0 0.0
        %5283 = vmatpush1.msra.mxu0 0.0
        %5284 = vmatprep.subr.mxu0 0.0
        %5285 = vmatpush1.msra.mxu0 0.0
        %5286 = vmatprep.subr.mxu0 0.0
        %5287 = vmatpush1.msra.mxu0 0.0
        %5288 = vmatprep.subr.mxu0 0.0
        %5289 = vmatpush1.msra.mxu0 0.0
        %5290 = vmatprep.subr.mxu0 0.0
        %5291 = vmatpush1.msra.mxu0 0.0
        %5292 = vmatprep.subr.mxu0 0.0
        %5293 = vmatpush1.msra.mxu0 0.0
        %5294 = vmatprep.mubr.f32.mxu0 0.0
        %5295 = vmatmul.mubr.f32.gmra.mrb[0].mxu0 %v5228
        %v5296 = vpop.f32.mrb[0].mxu0
        %v5297 = vadd.f32 %v5226, %v5296
        %v5298 = vpop.f32.mrb[0].mxu0
        %v5299 = vadd.f32 %v5226, %v5298
        %5300 = vdwg.mxu0
        %5301 = vmatprep.subr.mxu0 %v5177
        %5302 = vmatpush1.msra.mxu0 %v5176
        %5303 = vmatprep.subr.mxu0 %v5185
        %5304 = vmatpush1.msra.mxu0 %v5184
        %5305 = vmatprep.subr.mxu0 %v5193
        %5306 = vmatpush1.msra.mxu0 %v5192
        %5307 = vmatprep.subr.mxu0 %v5201
        %5308 = vmatpush1.msra.mxu0 %v5200
        %5309 = vmatprep.subr.mxu0 %v5209
        %5310 = vmatpush1.msra.mxu0 %v5208
        %5311 = vmatprep.subr.mxu0 %v5217
        %5312 = vmatpush1.msra.mxu0 %v5216
        %5313 = vmatprep.subr.mxu0 0.0
        %5314 = vmatpush1.msra.mxu0 0.0
        %5315 = vmatprep.subr.mxu0 0.0
        %5316 = vmatpush1.msra.mxu0 0.0
        %5317 = vmatprep.subr.mxu0 0.0
        %5318 = vmatpush1.msra.mxu0 0.0
        %5319 = vmatprep.subr.mxu0 0.0
        %5320 = vmatpush1.msra.mxu0 0.0
        %5321 = vmatprep.subr.mxu0 0.0
        %5322 = vmatpush1.msra.mxu0 0.0
        %5323 = vmatprep.subr.mxu0 0.0
        %5324 = vmatpush1.msra.mxu0 0.0
        %5325 = vmatprep.subr.mxu0 0.0
        %5326 = vmatpush1.msra.mxu0 0.0
        %5327 = vmatprep.subr.mxu0 0.0
        %5328 = vmatpush1.msra.mxu0 0.0
        %5329 = vmatprep.subr.mxu0 0.0
        %5330 = vmatpush1.msra.mxu0 0.0
        %5331 = vmatprep.subr.mxu0 0.0
        %5332 = vmatpush1.msra.mxu0 0.0
        %5333 = vmatprep.subr.mxu0 0.0
        %5334 = vmatpush1.msra.mxu0 0.0
        %5335 = vmatprep.subr.mxu0 0.0
        %5336 = vmatpush1.msra.mxu0 0.0
        %5337 = vmatprep.subr.mxu0 0.0
        %5338 = vmatpush1.msra.mxu0 0.0
        %5339 = vmatprep.subr.mxu0 0.0
        %5340 = vmatpush1.msra.mxu0 0.0
        %5341 = vmatprep.subr.mxu0 0.0
        %5342 = vmatpush1.msra.mxu0 0.0
        %5343 = vmatprep.subr.mxu0 0.0
        %5344 = vmatpush1.msra.mxu0 0.0
        %5345 = vmatprep.subr.mxu0 0.0
        %5346 = vmatpush1.msra.mxu0 0.0
        %5347 = vmatprep.subr.mxu0 0.0
        %5348 = vmatpush1.msra.mxu0 0.0
        %5349 = vmatprep.subr.mxu0 0.0
        %5350 = vmatpush1.msra.mxu0 0.0
        %5351 = vmatprep.subr.mxu0 0.0
        %5352 = vmatpush1.msra.mxu0 0.0
        %5353 = vmatprep.subr.mxu0 0.0
        %5354 = vmatpush1.msra.mxu0 0.0
        %5355 = vmatprep.subr.mxu0 0.0
        %5356 = vmatpush1.msra.mxu0 0.0
        %5357 = vmatprep.subr.mxu0 0.0
        %5358 = vmatpush1.msra.mxu0 0.0
        %5359 = vmatprep.subr.mxu0 0.0
        %5360 = vmatpush1.msra.mxu0 0.0
        %5361 = vmatprep.subr.mxu0 0.0
        %5362 = vmatpush1.msra.mxu0 0.0
        %5363 = vmatprep.subr.mxu0 0.0
        %5364 = vmatpush1.msra.mxu0 0.0
        %5365 = vmatprep.mubr.f32.mxu0 0.0
        %5366 = vmatmul.mubr.f32.gmra.mrb[0].mxu0 %v5228
        %v5367 = vpop.f32.mrb[0].mxu0
        %v5368 = vadd.f32 %v5226, %v5367
        %v5369 = vpop.f32.mrb[0].mxu0
        %v5370 = vadd.f32 %v5226, %v5369
        %5371 = vdwg.mxu0
        %5372 = vmatprep.subr.mxu0 %v5179
        %5373 = vmatpush1.msra.mxu0 %v5178
        %5374 = vmatprep.subr.mxu0 %v5187
        %5375 = vmatpush1.msra.mxu0 %v5186
        %5376 = vmatprep.subr.mxu0 %v5195
        %5377 = vmatpush1.msra.mxu0 %v5194
        %5378 = vmatprep.subr.mxu0 %v5203
        %5379 = vmatpush1.msra.mxu0 %v5202
        %5380 = vmatprep.subr.mxu0 %v5211
        %5381 = vmatpush1.msra.mxu0 %v5210
        %5382 = vmatprep.subr.mxu0 %v5219
        %5383 = vmatpush1.msra.mxu0 %v5218
        %5384 = vmatprep.subr.mxu0 0.0
        %5385 = vmatpush1.msra.mxu0 0.0
        %5386 = vmatprep.subr.mxu0 0.0
        %5387 = vmatpush1.msra.mxu0 0.0
        %5388 = vmatprep.subr.mxu0 0.0
        %5389 = vmatpush1.msra.mxu0 0.0
        %5390 = vmatprep.subr.mxu0 0.0
        %5391 = vmatpush1.msra.mxu0 0.0
        %5392 = vmatprep.subr.mxu0 0.0
        %5393 = vmatpush1.msra.mxu0 0.0
        %5394 = vmatprep.subr.mxu0 0.0
        %5395 = vmatpush1.msra.mxu0 0.0
        %5396 = vmatprep.subr.mxu0 0.0
        %5397 = vmatpush1.msra.mxu0 0.0
        %5398 = vmatprep.subr.mxu0 0.0
        %5399 = vmatpush1.msra.mxu0 0.0
        %5400 = vmatprep.subr.mxu0 0.0
        %5401 = vmatpush1.msra.mxu0 0.0
        %5402 = vmatprep.subr.mxu0 0.0
        %5403 = vmatpush1.msra.mxu0 0.0
        %5404 = vmatprep.subr.mxu0 0.0
        %5405 = vmatpush1.msra.mxu0 0.0
        %5406 = vmatprep.subr.mxu0 0.0
        %5407 = vmatpush1.msra.mxu0 0.0
        %5408 = vmatprep.subr.mxu0 0.0
        %5409 = vmatpush1.msra.mxu0 0.0
        %5410 = vmatprep.subr.mxu0 0.0
        %5411 = vmatpush1.msra.mxu0 0.0
        %5412 = vmatprep.subr.mxu0 0.0
        %5413 = vmatpush1.msra.mxu0 0.0
        %5414 = vmatprep.subr.mxu0 0.0
        %5415 = vmatpush1.msra.mxu0 0.0
        %5416 = vmatprep.subr.mxu0 0.0
        %5417 = vmatpush1.msra.mxu0 0.0
        %5418 = vmatprep.subr.mxu0 0.0
        %5419 = vmatpush1.msra.mxu0 0.0
        %5420 = vmatprep.subr.mxu0 0.0
        %5421 = vmatpush1.msra.mxu0 0.0
        %5422 = vmatprep.subr.mxu0 0.0
        %5423 = vmatpush1.msra.mxu0 0.0
        %5424 = vmatprep.subr.mxu0 0.0
        %5425 = vmatpush1.msra.mxu0 0.0
        %5426 = vmatprep.subr.mxu0 0.0
        %5427 = vmatpush1.msra.mxu0 0.0
        %5428 = vmatprep.subr.mxu0 0.0
        %5429 = vmatpush1.msra.mxu0 0.0
        %5430 = vmatprep.subr.mxu0 0.0
        %5431 = vmatpush1.msra.mxu0 0.0
        %5432 = vmatprep.subr.mxu0 0.0
        %5433 = vmatpush1.msra.mxu0 0.0
        %5434 = vmatprep.subr.mxu0 0.0
        %5435 = vmatpush1.msra.mxu0 0.0
        %5436 = vmatprep.mubr.f32.mxu0 0.0
        %5437 = vmatmul.mubr.f32.gmra.mrb[0].mxu0 %v5228
        %v5438 = vpop.f32.mrb[0].mxu0
        %v5439 = vadd.f32 %v5226, %v5438
        %v5440 = vpop.f32.mrb[0].mxu0
        %v5441 = vadd.f32 %v5226, %v5440
        %5442 = vdwg.mxu0
        %5443 = vmatprep.subr.mxu0 %v5181
        %5444 = vmatpush1.msra.mxu0 %v5180
        %5445 = vmatprep.subr.mxu0 %v5189
        %5446 = vmatpush1.msra.mxu0 %v5188
        %5447 = vmatprep.subr.mxu0 %v5197
        %5448 = vmatpush1.msra.mxu0 %v5196
        %5449 = vmatprep.subr.mxu0 %v5205
        %5450 = vmatpush1.msra.mxu0 %v5204
        %5451 = vmatprep.subr.mxu0 %v5213
        %5452 = vmatpush1.msra.mxu0 %v5212
        %5453 = vmatprep.subr.mxu0 %v5221
        %5454 = vmatpush1.msra.mxu0 %v5220
        %5455 = vmatprep.subr.mxu0 0.0
        %5456 = vmatpush1.msra.mxu0 0.0
        %5457 = vmatprep.subr.mxu0 0.0
        %5458 = vmatpush1.msra.mxu0 0.0
        %5459 = vmatprep.subr.mxu0 0.0
        %5460 = vmatpush1.msra.mxu0 0.0
        %5461 = vmatprep.subr.mxu0 0.0
        %5462 = vmatpush1.msra.mxu0 0.0
        %5463 = vmatprep.subr.mxu0 0.0
        %5464 = vmatpush1.msra.mxu0 0.0
        %5465 = vmatprep.subr.mxu0 0.0
        %5466 = vmatpush1.msra.mxu0 0.0
        %5467 = vmatprep.subr.mxu0 0.0
        %5468 = vmatpush1.msra.mxu0 0.0
        %5469 = vmatprep.subr.mxu0 0.0
        %5470 = vmatpush1.msra.mxu0 0.0
        %5471 = vmatprep.subr.mxu0 0.0
        %5472 = vmatpush1.msra.mxu0 0.0
        %5473 = vmatprep.subr.mxu0 0.0
        %5474 = vmatpush1.msra.mxu0 0.0
        %5475 = vmatprep.subr.mxu0 0.0
        %5476 = vmatpush1.msra.mxu0 0.0
        %5477 = vmatprep.subr.mxu0 0.0
        %5478 = vmatpush1.msra.mxu0 0.0
        %5479 = vmatprep.subr.mxu0 0.0
        %5480 = vmatpush1.msra.mxu0 0.0
        %5481 = vmatprep.subr.mxu0 0.0
        %5482 = vmatpush1.msra.mxu0 0.0
        %5483 = vmatprep.subr.mxu0 0.0
        %5484 = vmatpush1.msra.mxu0 0.0
        %5485 = vmatprep.subr.mxu0 0.0
        %5486 = vmatpush1.msra.mxu0 0.0
        %5487 = vmatprep.subr.mxu0 0.0
        %5488 = vmatpush1.msra.mxu0 0.0
        %5489 = vmatprep.subr.mxu0 0.0
        %5490 = vmatpush1.msra.mxu0 0.0
        %5491 = vmatprep.subr.mxu0 0.0
        %5492 = vmatpush1.msra.mxu0 0.0
        %5493 = vmatprep.subr.mxu0 0.0
        %5494 = vmatpush1.msra.mxu0 0.0
        %5495 = vmatprep.subr.mxu0 0.0
        %5496 = vmatpush1.msra.mxu0 0.0
        %5497 = vmatprep.subr.mxu0 0.0
        %5498 = vmatpush1.msra.mxu0 0.0
        %5499 = vmatprep.subr.mxu0 0.0
        %5500 = vmatpush1.msra.mxu0 0.0
        %5501 = vmatprep.subr.mxu0 0.0
        %5502 = vmatpush1.msra.mxu0 0.0
        %5503 = vmatprep.subr.mxu0 0.0
        %5504 = vmatpush1.msra.mxu0 0.0
        %5505 = vmatprep.subr.mxu0 0.0
        %5506 = vmatpush1.msra.mxu0 0.0
        %5507 = vmatprep.mubr.f32.mxu0 0.0
        %5508 = vmatmul.mubr.f32.gmra.mrb[0].mxu0 %v5228
        %v5509 = vpop.f32.mrb[0].mxu0
        %v5510 = vadd.f32 %v5226, %v5509
        %v5511 = vpop.f32.mrb[0].mxu0
        %v5512 = vadd.f32 %v5226, %v5511
        %5513 = vdwg.mxu0
        %v5514 = vadd.f32 %v5297, %v378
        %v5515 = vadd.f32 %v5299, %v379
        %v5516 = vadd.f32 %v5368, %v380
        %v5517 = vadd.f32 %v5370, %v381
        %v5518 = vadd.f32 %v5439, %v382
        %v5519 = vadd.f32 %v5441, %v383
        %v5520 = vadd.f32 %v5510, %v384
        %v5521 = vadd.f32 %v5512, %v385
        %5522 = vst [vmem:[%s375] sm:$0xff] %v5514
        %5523 = vst [vmem:[%s375 + $0x8] sm:$0xff] %v5515
        %5524 = vst [vmem:[%s375 + $0x10] sm:$0xff] %v5516
        %5525 = vst [vmem:[%s375 + $0x18] sm:$0xff] %v5517
        %5526 = vst [vmem:[%s375 + $0x20] sm:$0xff] %v5518
        %5527 = vst [vmem:[%s375 + $0x28] sm:$0xff] %v5519
        %5528 = vst [vmem:[%s375 + $0x30] sm:$0xff] %v5520
        %5529 = vst [vmem:[%s375 + $0x38] sm:$0xff] %v5521
        %s5530 = sand.u32 %s208, 1
        %s5531 = scalar_lea.sflag [#allocation4], %s5530
        %s5532 = sand.u32 %s208, 1
        %s5533 = smul.addr %s5532, 64
        %s5534 = scalar_lea.vmem [#allocation11], %s5533
        // Predicated region
        $region73: #{tpu_custom_call.1} parent=51 // pred_check
          %p5535 = pneg %p218
        $region74: #{tpu_custom_call.1} parent=51 // pred_check_branch
          %5537 = sbr.rel (%p5535) target = $region76
        $region75: #{tpu_custom_call.1} parent=51 // pred_region
          %s5538 = smul.u32 8, %s27
          %s5540 = ssub.s32 1024, 1024
          %5541 = vsyncadd %s5531, %s5540
          %s5542 = smul.addr %s5538, 128
          %s5543 = scalar_lea.hbm %s8, %s5542
          %s5545 = sshll.u32 %s5534, 4
          %s5546 = int_to_ptr.vmem [resolvable:$true] %s5545
          %5548 = dma.vmem_to_hbm [thread:$0]  %s5546, 1024, %s5543, %s5531
        $region76: #{tpu_custom_call.1} parent=51 // pred_fallthru
          _
      $region52: #{tpu_custom_call.1} parent=5 // pred_fallthru
        _
      %p5549 = scmp.le.s32.totalorder 2, %s22
      // Predicated region
      $region77: #{tpu_custom_call.1} parent=5 // pred_check
        %p5550 = pneg %p5549
      $region78: #{tpu_custom_call.1} parent=5 // pred_check_branch
        %5552 = sbr.rel (%p5550) target = $region80
      $region79: #{tpu_custom_call.1} parent=5 // pred_region
        %s5553 = ssub.s32 %s22, 2
        // Predicated region
        $region81: #{tpu_custom_call.1} parent=79 // pred_check
          %p5554 = pneg %p224
        $region82: #{tpu_custom_call.1} parent=79 // pred_check_branch
          %5556 = sbr.rel (%p5554) target = $region84
        $region83: #{tpu_custom_call.1} parent=79 // pred_region
          %s5557 = sand.u32 %s209, 1
          %s5558 = scalar_lea.sflag [#allocation4], %s5557
          %s5559 = sand.u32 %s209, 1
          %s5560 = smul.addr %s5559, 64
          %s5561 = scalar_lea.vmem [#allocation11], %s5560
          %5562 = dma.done %s5558, 1024
        $region84: #{tpu_custom_call.1} parent=79 // pred_fallthru
          _
      $region80: #{tpu_custom_call.1} parent=5 // pred_fallthru
        _
    $region6: #{tpu_custom_call.1} parent=1 // loop_footer
      %s26 = sadd.s32 1, %s22
    $region7: #{tpu_custom_call.1} parent=1 // loop_footer_branch
      %21 = sbr.rel target = $region3
    $region8: #{tpu_custom_call.1} parent=1 // loop_exit
      _
    %5563 = vsyncpa [#allocation3], 1
    %s5564 = scalar_lea.sflag [#allocation3], 1
    %5565 = vsyncpa %s5564, 1
    %5566 = vsyncpa [#allocation6], 1
    %5567 = vsyncpa [#allocation9], 1
    %5568 = vsyncpa [#allocation4], 1
    %s5569 = scalar_lea.sflag [#allocation4], 1
    %5570 = vsyncpa %s5569, 1

</llo_original>
